<compile_context>
chip_gen: v6e
topology: v6e:2x2x1
jax: 0.10.0
libtpu: 0.0.40
codegen_flags: <defaults>
</compile_context>

<pallas_src>
import numpy as np
import jax
import jax.numpy as jnp
from jax.experimental import pallas as pl
from jax.experimental.pallas import tpu as pltpu


def _rk4_integrate_kernel(dt_ref, w_ref, b_ref, ic_ref, out_ref):
    """Fixed-step RK4 integrator over one M-block.

    dt_ref  : SMEM (T,)            per-interval step sizes
    w_ref   : SMEM (C*C,)          derivative-net weight, row-major
    b_ref   : SMEM (C,)            derivative-net bias
    ic_ref  : VMEM (C, Sb, 128)    initial condition, per-channel slabs
    out_ref : VMEM (T, C, Sb, 128) all post-t0 states (== solution[1:])
    """
    T, C, Sb, L = out_ref.shape

    # Pre-splat scalars to slab-shaped vreg constants only when the slab is
    # small enough that ~20 extra live values cannot pressure the 64-vreg
    # file; otherwise keep the scalar-operand form.
    prebroadcast = Sb <= 8

    def vconst(s):
        return jnp.broadcast_to(s, (Sb, L)) if prebroadcast else s

    # Hoist SMEM parameter reads (and their splats) out of the time loop.
    w_s = [[vconst(w_ref[c * C + k]) for k in range(C)] for c in range(C)]
    b_s = [vconst(b_ref[c]) for c in range(C)]

    def f(y):
        # tanh(W @ y + b): tiny C=4 channel mix as unrolled FMAs on the VPU
        # over lane/sublane-dense per-channel slabs (MXU would be <4% used).
        # TODO(synk): for C >= ~16-32 switch back to jnp.dot on the MXU.
        out = []
        for c in range(C):
            r = y[0] * w_s[c][0]
            for k in range(1, C):
                r = r + y[k] * w_s[c][k]
            out.append(jnp.tanh(r + b_s[c]))     # bias folded in, no extra bcast
        return out

    y = [ic_ref[c] for c in range(C)]

    # Fully-unrolled time loop (T small & static): the ODE state lives in
    # vregs across steps -- no VMEM scratch round trip.
    # TODO(synk): switch to lax.fori_loop(..., unroll=4) if T grows past ~32.
    for t in range(T):
        dt = dt_ref[t]
        half = vconst(0.5 * dt)          # scalar-unit precompute, splat once
        d6 = vconst(dt * (1.0 / 6.0))
        d3 = vconst(dt * (1.0 / 3.0))
        dt_v = vconst(dt)

        k = f(y)                                               # k1
        acc = [y[c] + d6 * k[c] for c in range(C)]
        k = f([y[c] + half * k[c] for c in range(C)])          # k2
        acc = [acc[c] + d3 * k[c] for c in range(C)]
        k = f([y[c] + half * k[c] for c in range(C)])          # k3
        acc = [acc[c] + d3 * k[c] for c in range(C)]
        k = f([y[c] + dt_v * k[c] for c in range(C)])          # k4
        y = [acc[c] + d6 * k[c] for c in range(C)]

        for c in range(C):
            # (Sb, 128) store: full unmasked tiles whenever Sb % 8 == 0
            # (always true for M >= 1024; at the toy M=512 size the half-tile
            # stores cost only a few masked vst on 64 KiB of output).
            out_ref[t, c] = y[c]


def _pick_block_sublanes(S):
    """Sublane extent (M // 128) of one grid block along M."""
    # Multiples of 8 -> zero sublane padding / masked stores; 16 keeps the
    # unrolled RK4's peak vreg usage (~4*C slabs) well inside the 64-vreg file.
    for cand in (16, 8):
        if S >= cand and S % cand == 0:
            return cand
    # Tiny (toy test) or ragged S: single block over everything.
    # TODO(synk): pad ragged M up to a multiple of 1024 at production sizes.
    return S


def integrator_forward(w, b, ic_nchw, t0, t1):
    """Pallas equivalent of Integrator.forward(f, ic, t0, t1).

    w, b     : parameters of the synthetic derivative field f  (C,C), (C,1)
    ic_nchw  : (N, C, H, W) float32
    t0       : scalar float32
    t1       : (T,) float32
    returns  : (T, N, C, H, W) float32
    """
    N, C, H, W = ic_nchw.shape
    M = N * H * W
    assert M % 128 == 0, "N*H*W must be a multiple of 128 (lane dimension)"
    S = M // 128
    T = int(t1.shape[0])

    all_time = jnp.concatenate(
        [jnp.reshape(jnp.asarray(t0, jnp.float32), (1,)), t1.astype(jnp.float32)]
    )                                                          # (T+1,)
    dt = (all_time[1:] - all_time[:-1]).astype(jnp.float32)    # (T,)

    # NCHW -> (C, S, 128): channel-major, lane+sublane dense per-channel slabs.
    ic_cs = (
        jnp.transpose(ic_nchw, (1, 0, 2, 3)).reshape(C, S, 128).astype(jnp.float32)
    )
    w_flat = jnp.reshape(w, (C * C,)).astype(jnp.float32)      # row-major, SMEM
    b_flat = jnp.reshape(b, (C,)).astype(jnp.float32)          # SMEM

    Sb = _pick_block_sublanes(S)
    num_blocks = S // Sb

    pred_cs = pl.pallas_call(
        _rk4_integrate_kernel,
        out_shape=jax.ShapeDtypeStruct((T, C, S, 128), jnp.float32),
        grid=(num_blocks,),
        in_specs=[
            pl.BlockSpec(memory_space=pltpu.MemorySpace.SMEM),     # dt     (T,)
            pl.BlockSpec(memory_space=pltpu.MemorySpace.SMEM),     # w_flat (C*C,)
            pl.BlockSpec(memory_space=pltpu.MemorySpace.SMEM),     # b_flat (C,)
            pl.BlockSpec((C, Sb, 128), lambda i: (0, i, 0)),       # ic
        ],
        out_specs=pl.BlockSpec((T, C, Sb, 128), lambda i: (0, 0, i, 0)),
        compiler_params=pltpu.CompilerParams(
            dimension_semantics=("parallel",),
        ),
    )(dt, w_flat, b_flat, ic_cs)

    # (T, C, S, 128) -> (T, N, C, H, W)
    pred = pred_cs.reshape(T, C, N, H, W).transpose(0, 2, 1, 3, 4)
    return pred


def _reference_forward(w, b, ic_nchw, t0, t1):
    """Pure-JAX RK4 reference (same semantics) for validation."""
    N, C, H, W = ic_nchw.shape
    M = N * H * W
    all_time = jnp.concatenate(
        [jnp.reshape(jnp.asarray(t0, jnp.float32), (1,)), t1.astype(jnp.float32)]
    )
    dt = all_time[1:] - all_time[:-1]
    y0 = jnp.transpose(ic_nchw, (1, 0, 2, 3)).reshape(C, M).astype(jnp.float32)

    def f(y):
        return jnp.tanh(w @ y + b)

    def step(y, d):
        k1 = f(y)
        k2 = f(y + 0.5 * d * k1)
        k3 = f(y + 0.5 * d * k2)
        k4 = f(y + d * k3)
        y_new = y + (d / 6.0) * (k1 + 2 * k2 + 2 * k3 + k4)
        return y_new, y_new

    _, ys = jax.lax.scan(step, y0, dt)                    # (T, C, M)
    return ys.reshape(-1, C, N, H, W).transpose(0, 2, 1, 3, 4)


if __name__ == "__main__":
    key = jax.random.PRNGKey(0)
    kw, kb, kic = jax.random.split(key, 3)

    # Small shapes: batch=2, channels=4, spatial=16x16, seq (output times)=8
    N, C, H, Wd, T = 2, 4, 16, 16, 8

    # Deterministic synthetic derivative-field parameters
    w = jax.random.normal(kw, (C, C), dtype=jnp.float32) * 0.3
    b = jax.random.normal(kb, (C, 1), dtype=jnp.float32) * 0.1

    ic = jax.random.normal(kic, (N, C, H, Wd), dtype=jnp.float32)
    t0 = jnp.float32(0.0)
    t1 = jnp.linspace(0.1, 0.8, T, dtype=jnp.float32)

    pred = integrator_forward(w, b, ic, t0, t1)
    pred = jax.block_until_ready(pred)

    ref = jax.block_until_ready(_reference_forward(w, b, ic, t0, t1))
    assert pred.shape == (T, N, C, H, Wd), pred.shape
    np.testing.assert_allclose(np.asarray(pred), np.asarray(ref), rtol=1e-5, atol=1e-5)

    print("KERNEL_OK")
</pallas_src>

<mosaic_0001>
module attributes {stable_mosaic.version = 11 : i64} {
  func.func @_rk4_integrate_kernel(%arg0: i32, %arg1: memref<8xf32, #tpu.memory_space<smem>>, %arg2: memref<16xf32, #tpu.memory_space<smem>>, %arg3: memref<4xf32, #tpu.memory_space<smem>>, %arg4: memref<4x4x128xf32, #tpu.memory_space<vmem>>, %arg5: memref<8x4x4x128xf32, #tpu.memory_space<vmem>>) attributes {dimension_semantics = [#tpu.dimension_semantics<parallel>], iteration_bounds = array<i64: 1>, scalar_prefetch = 0 : i64, scratch_operands = 0 : i64, tpu.core_type = #tpu.core_type<tc>, window_params = [{transform_indices = @transform_0, window_bounds = array<i64: 8>}, {transform_indices = @transform_1, window_bounds = array<i64: 16>}, {transform_indices = @transform_2, window_bounds = array<i64: 4>}, {transform_indices = @transform_3, window_bounds = array<i64: 4, 4, 128>}, {transform_indices = @transform_4, window_bounds = array<i64: 8, 4, 4, 128>}]} {
    %c0 = arith.constant 0 : index
    %0 = memref.load %arg2[%c0] : memref<16xf32, #tpu.memory_space<smem>>
    %1 = vector.broadcast %0 : f32 to vector<4x128xf32>
    %c1 = arith.constant 1 : index
    %2 = memref.load %arg2[%c1] : memref<16xf32, #tpu.memory_space<smem>>
    %3 = vector.broadcast %2 : f32 to vector<4x128xf32>
    %c2 = arith.constant 2 : index
    %4 = memref.load %arg2[%c2] : memref<16xf32, #tpu.memory_space<smem>>
    %5 = vector.broadcast %4 : f32 to vector<4x128xf32>
    %c3 = arith.constant 3 : index
    %6 = memref.load %arg2[%c3] : memref<16xf32, #tpu.memory_space<smem>>
    %7 = vector.broadcast %6 : f32 to vector<4x128xf32>
    %c4 = arith.constant 4 : index
    %8 = memref.load %arg2[%c4] : memref<16xf32, #tpu.memory_space<smem>>
    %9 = vector.broadcast %8 : f32 to vector<4x128xf32>
    %c5 = arith.constant 5 : index
    %10 = memref.load %arg2[%c5] : memref<16xf32, #tpu.memory_space<smem>>
    %11 = vector.broadcast %10 : f32 to vector<4x128xf32>
    %c6 = arith.constant 6 : index
    %12 = memref.load %arg2[%c6] : memref<16xf32, #tpu.memory_space<smem>>
    %13 = vector.broadcast %12 : f32 to vector<4x128xf32>
    %c7 = arith.constant 7 : index
    %14 = memref.load %arg2[%c7] : memref<16xf32, #tpu.memory_space<smem>>
    %15 = vector.broadcast %14 : f32 to vector<4x128xf32>
    %c8 = arith.constant 8 : index
    %16 = memref.load %arg2[%c8] : memref<16xf32, #tpu.memory_space<smem>>
    %17 = vector.broadcast %16 : f32 to vector<4x128xf32>
    %c9 = arith.constant 9 : index
    %18 = memref.load %arg2[%c9] : memref<16xf32, #tpu.memory_space<smem>>
    %19 = vector.broadcast %18 : f32 to vector<4x128xf32>
    %c10 = arith.constant 10 : index
    %20 = memref.load %arg2[%c10] : memref<16xf32, #tpu.memory_space<smem>>
    %21 = vector.broadcast %20 : f32 to vector<4x128xf32>
    %c11 = arith.constant 11 : index
    %22 = memref.load %arg2[%c11] : memref<16xf32, #tpu.memory_space<smem>>
    %23 = vector.broadcast %22 : f32 to vector<4x128xf32>
    %c12 = arith.constant 12 : index
    %24 = memref.load %arg2[%c12] : memref<16xf32, #tpu.memory_space<smem>>
    %25 = vector.broadcast %24 : f32 to vector<4x128xf32>
    %c13 = arith.constant 13 : index
    %26 = memref.load %arg2[%c13] : memref<16xf32, #tpu.memory_space<smem>>
    %27 = vector.broadcast %26 : f32 to vector<4x128xf32>
    %c14 = arith.constant 14 : index
    %28 = memref.load %arg2[%c14] : memref<16xf32, #tpu.memory_space<smem>>
    %29 = vector.broadcast %28 : f32 to vector<4x128xf32>
    %c15 = arith.constant 15 : index
    %30 = memref.load %arg2[%c15] : memref<16xf32, #tpu.memory_space<smem>>
    %31 = vector.broadcast %30 : f32 to vector<4x128xf32>
    %c0_0 = arith.constant 0 : index
    %32 = memref.load %arg3[%c0_0] : memref<4xf32, #tpu.memory_space<smem>>
    %33 = vector.broadcast %32 : f32 to vector<4x128xf32>
    %c1_1 = arith.constant 1 : index
    %34 = memref.load %arg3[%c1_1] : memref<4xf32, #tpu.memory_space<smem>>
    %35 = vector.broadcast %34 : f32 to vector<4x128xf32>
    %c2_2 = arith.constant 2 : index
    %36 = memref.load %arg3[%c2_2] : memref<4xf32, #tpu.memory_space<smem>>
    %37 = vector.broadcast %36 : f32 to vector<4x128xf32>
    %c3_3 = arith.constant 3 : index
    %38 = memref.load %arg3[%c3_3] : memref<4xf32, #tpu.memory_space<smem>>
    %39 = vector.broadcast %38 : f32 to vector<4x128xf32>
    %c0_4 = arith.constant 0 : index
    %c0_5 = arith.constant 0 : index
    %c0_6 = arith.constant 0 : index
    %40 = vector.load %arg4[%c0_4, %c0_5, %c0_6] : memref<4x4x128xf32, #tpu.memory_space<vmem>>, vector<1x4x128xf32>
    %41 = vector.shape_cast %40 : vector<1x4x128xf32> to vector<4x128xf32>
    %c1_7 = arith.constant 1 : index
    %c0_8 = arith.constant 0 : index
    %c0_9 = arith.constant 0 : index
    %42 = vector.load %arg4[%c1_7, %c0_8, %c0_9] : memref<4x4x128xf32, #tpu.memory_space<vmem>>, vector<1x4x128xf32>
    %43 = vector.shape_cast %42 : vector<1x4x128xf32> to vector<4x128xf32>
    %c2_10 = arith.constant 2 : index
    %c0_11 = arith.constant 0 : index
    %c0_12 = arith.constant 0 : index
    %44 = vector.load %arg4[%c2_10, %c0_11, %c0_12] : memref<4x4x128xf32, #tpu.memory_space<vmem>>, vector<1x4x128xf32>
    %45 = vector.shape_cast %44 : vector<1x4x128xf32> to vector<4x128xf32>
    %c3_13 = arith.constant 3 : index
    %c0_14 = arith.constant 0 : index
    %c0_15 = arith.constant 0 : index
    %46 = vector.load %arg4[%c3_13, %c0_14, %c0_15] : memref<4x4x128xf32, #tpu.memory_space<vmem>>, vector<1x4x128xf32>
    %47 = vector.shape_cast %46 : vector<1x4x128xf32> to vector<4x128xf32>
    %c0_16 = arith.constant 0 : index
    %48 = memref.load %arg1[%c0_16] : memref<8xf32, #tpu.memory_space<smem>>
    %cst = arith.constant 5.000000e-01 : f32
    %49 = arith.mulf %cst, %48 : f32
    %50 = vector.broadcast %49 : f32 to vector<4x128xf32>
    %cst_17 = arith.constant 0.166666672 : f32
    %51 = arith.mulf %48, %cst_17 : f32
    %52 = vector.broadcast %51 : f32 to vector<4x128xf32>
    %cst_18 = arith.constant 0.333333343 : f32
    %53 = arith.mulf %48, %cst_18 : f32
    %54 = vector.broadcast %53 : f32 to vector<4x128xf32>
    %55 = vector.broadcast %48 : f32 to vector<4x128xf32>
    %56 = arith.mulf %41, %1 : vector<4x128xf32>
    %57 = arith.mulf %43, %3 : vector<4x128xf32>
    %58 = arith.addf %56, %57 : vector<4x128xf32>
    %59 = arith.mulf %45, %5 : vector<4x128xf32>
    %60 = arith.addf %58, %59 : vector<4x128xf32>
    %61 = arith.mulf %47, %7 : vector<4x128xf32>
    %62 = arith.addf %60, %61 : vector<4x128xf32>
    %63 = arith.addf %62, %33 : vector<4x128xf32>
    %64 = math.tanh %63 : vector<4x128xf32>
    %65 = arith.mulf %41, %9 : vector<4x128xf32>
    %66 = arith.mulf %43, %11 : vector<4x128xf32>
    %67 = arith.addf %65, %66 : vector<4x128xf32>
    %68 = arith.mulf %45, %13 : vector<4x128xf32>
    %69 = arith.addf %67, %68 : vector<4x128xf32>
    %70 = arith.mulf %47, %15 : vector<4x128xf32>
    %71 = arith.addf %69, %70 : vector<4x128xf32>
    %72 = arith.addf %71, %35 : vector<4x128xf32>
    %73 = math.tanh %72 : vector<4x128xf32>
    %74 = arith.mulf %41, %17 : vector<4x128xf32>
    %75 = arith.mulf %43, %19 : vector<4x128xf32>
    %76 = arith.addf %74, %75 : vector<4x128xf32>
    %77 = arith.mulf %45, %21 : vector<4x128xf32>
    %78 = arith.addf %76, %77 : vector<4x128xf32>
    %79 = arith.mulf %47, %23 : vector<4x128xf32>
    %80 = arith.addf %78, %79 : vector<4x128xf32>
    %81 = arith.addf %80, %37 : vector<4x128xf32>
    %82 = math.tanh %81 : vector<4x128xf32>
    %83 = arith.mulf %41, %25 : vector<4x128xf32>
    %84 = arith.mulf %43, %27 : vector<4x128xf32>
    %85 = arith.addf %83, %84 : vector<4x128xf32>
    %86 = arith.mulf %45, %29 : vector<4x128xf32>
    %87 = arith.addf %85, %86 : vector<4x128xf32>
    %88 = arith.mulf %47, %31 : vector<4x128xf32>
    %89 = arith.addf %87, %88 : vector<4x128xf32>
    %90 = arith.addf %89, %39 : vector<4x128xf32>
    %91 = math.tanh %90 : vector<4x128xf32>
    %92 = arith.mulf %52, %64 : vector<4x128xf32>
    %93 = arith.addf %41, %92 : vector<4x128xf32>
    %94 = arith.mulf %52, %73 : vector<4x128xf32>
    %95 = arith.addf %43, %94 : vector<4x128xf32>
    %96 = arith.mulf %52, %82 : vector<4x128xf32>
    %97 = arith.addf %45, %96 : vector<4x128xf32>
    %98 = arith.mulf %52, %91 : vector<4x128xf32>
    %99 = arith.addf %47, %98 : vector<4x128xf32>
    %100 = arith.mulf %50, %64 : vector<4x128xf32>
    %101 = arith.addf %41, %100 : vector<4x128xf32>
    %102 = arith.mulf %50, %73 : vector<4x128xf32>
    %103 = arith.addf %43, %102 : vector<4x128xf32>
    %104 = arith.mulf %50, %82 : vector<4x128xf32>
    %105 = arith.addf %45, %104 : vector<4x128xf32>
    %106 = arith.mulf %50, %91 : vector<4x128xf32>
    %107 = arith.addf %47, %106 : vector<4x128xf32>
    %108 = arith.mulf %101, %1 : vector<4x128xf32>
    %109 = arith.mulf %103, %3 : vector<4x128xf32>
    %110 = arith.addf %108, %109 : vector<4x128xf32>
    %111 = arith.mulf %105, %5 : vector<4x128xf32>
    %112 = arith.addf %110, %111 : vector<4x128xf32>
    %113 = arith.mulf %107, %7 : vector<4x128xf32>
    %114 = arith.addf %112, %113 : vector<4x128xf32>
    %115 = arith.addf %114, %33 : vector<4x128xf32>
    %116 = math.tanh %115 : vector<4x128xf32>
    %117 = arith.mulf %101, %9 : vector<4x128xf32>
    %118 = arith.mulf %103, %11 : vector<4x128xf32>
    %119 = arith.addf %117, %118 : vector<4x128xf32>
    %120 = arith.mulf %105, %13 : vector<4x128xf32>
    %121 = arith.addf %119, %120 : vector<4x128xf32>
    %122 = arith.mulf %107, %15 : vector<4x128xf32>
    %123 = arith.addf %121, %122 : vector<4x128xf32>
    %124 = arith.addf %123, %35 : vector<4x128xf32>
    %125 = math.tanh %124 : vector<4x128xf32>
    %126 = arith.mulf %101, %17 : vector<4x128xf32>
    %127 = arith.mulf %103, %19 : vector<4x128xf32>
    %128 = arith.addf %126, %127 : vector<4x128xf32>
    %129 = arith.mulf %105, %21 : vector<4x128xf32>
    %130 = arith.addf %128, %129 : vector<4x128xf32>
    %131 = arith.mulf %107, %23 : vector<4x128xf32>
    %132 = arith.addf %130, %131 : vector<4x128xf32>
    %133 = arith.addf %132, %37 : vector<4x128xf32>
    %134 = math.tanh %133 : vector<4x128xf32>
    %135 = arith.mulf %101, %25 : vector<4x128xf32>
    %136 = arith.mulf %103, %27 : vector<4x128xf32>
    %137 = arith.addf %135, %136 : vector<4x128xf32>
    %138 = arith.mulf %105, %29 : vector<4x128xf32>
    %139 = arith.addf %137, %138 : vector<4x128xf32>
    %140 = arith.mulf %107, %31 : vector<4x128xf32>
    %141 = arith.addf %139, %140 : vector<4x128xf32>
    %142 = arith.addf %141, %39 : vector<4x128xf32>
    %143 = math.tanh %142 : vector<4x128xf32>
    %144 = arith.mulf %54, %116 : vector<4x128xf32>
    %145 = arith.addf %93, %144 : vector<4x128xf32>
    %146 = arith.mulf %54, %125 : vector<4x128xf32>
    %147 = arith.addf %95, %146 : vector<4x128xf32>
    %148 = arith.mulf %54, %134 : vector<4x128xf32>
    %149 = arith.addf %97, %148 : vector<4x128xf32>
    %150 = arith.mulf %54, %143 : vector<4x128xf32>
    %151 = arith.addf %99, %150 : vector<4x128xf32>
    %152 = arith.mulf %50, %116 : vector<4x128xf32>
    %153 = arith.addf %41, %152 : vector<4x128xf32>
    %154 = arith.mulf %50, %125 : vector<4x128xf32>
    %155 = arith.addf %43, %154 : vector<4x128xf32>
    %156 = arith.mulf %50, %134 : vector<4x128xf32>
    %157 = arith.addf %45, %156 : vector<4x128xf32>
    %158 = arith.mulf %50, %143 : vector<4x128xf32>
    %159 = arith.addf %47, %158 : vector<4x128xf32>
    %160 = arith.mulf %153, %1 : vector<4x128xf32>
    %161 = arith.mulf %155, %3 : vector<4x128xf32>
    %162 = arith.addf %160, %161 : vector<4x128xf32>
    %163 = arith.mulf %157, %5 : vector<4x128xf32>
    %164 = arith.addf %162, %163 : vector<4x128xf32>
    %165 = arith.mulf %159, %7 : vector<4x128xf32>
    %166 = arith.addf %164, %165 : vector<4x128xf32>
    %167 = arith.addf %166, %33 : vector<4x128xf32>
    %168 = math.tanh %167 : vector<4x128xf32>
    %169 = arith.mulf %153, %9 : vector<4x128xf32>
    %170 = arith.mulf %155, %11 : vector<4x128xf32>
    %171 = arith.addf %169, %170 : vector<4x128xf32>
    %172 = arith.mulf %157, %13 : vector<4x128xf32>
    %173 = arith.addf %171, %172 : vector<4x128xf32>
    %174 = arith.mulf %159, %15 : vector<4x128xf32>
    %175 = arith.addf %173, %174 : vector<4x128xf32>
    %176 = arith.addf %175, %35 : vector<4x128xf32>
    %177 = math.tanh %176 : vector<4x128xf32>
    %178 = arith.mulf %153, %17 : vector<4x128xf32>
    %179 = arith.mulf %155, %19 : vector<4x128xf32>
    %180 = arith.addf %178, %179 : vector<4x128xf32>
    %181 = arith.mulf %157, %21 : vector<4x128xf32>
    %182 = arith.addf %180, %181 : vector<4x128xf32>
    %183 = arith.mulf %159, %23 : vector<4x128xf32>
    %184 = arith.addf %182, %183 : vector<4x128xf32>
    %185 = arith.addf %184, %37 : vector<4x128xf32>
    %186 = math.tanh %185 : vector<4x128xf32>
    %187 = arith.mulf %153, %25 : vector<4x128xf32>
    %188 = arith.mulf %155, %27 : vector<4x128xf32>
    %189 = arith.addf %187, %188 : vector<4x128xf32>
    %190 = arith.mulf %157, %29 : vector<4x128xf32>
    %191 = arith.addf %189, %190 : vector<4x128xf32>
    %192 = arith.mulf %159, %31 : vector<4x128xf32>
    %193 = arith.addf %191, %192 : vector<4x128xf32>
    %194 = arith.addf %193, %39 : vector<4x128xf32>
    %195 = math.tanh %194 : vector<4x128xf32>
    %196 = arith.mulf %54, %168 : vector<4x128xf32>
    %197 = arith.addf %145, %196 : vector<4x128xf32>
    %198 = arith.mulf %54, %177 : vector<4x128xf32>
    %199 = arith.addf %147, %198 : vector<4x128xf32>
    %200 = arith.mulf %54, %186 : vector<4x128xf32>
    %201 = arith.addf %149, %200 : vector<4x128xf32>
    %202 = arith.mulf %54, %195 : vector<4x128xf32>
    %203 = arith.addf %151, %202 : vector<4x128xf32>
    %204 = arith.mulf %55, %168 : vector<4x128xf32>
    %205 = arith.addf %41, %204 : vector<4x128xf32>
    %206 = arith.mulf %55, %177 : vector<4x128xf32>
    %207 = arith.addf %43, %206 : vector<4x128xf32>
    %208 = arith.mulf %55, %186 : vector<4x128xf32>
    %209 = arith.addf %45, %208 : vector<4x128xf32>
    %210 = arith.mulf %55, %195 : vector<4x128xf32>
    %211 = arith.addf %47, %210 : vector<4x128xf32>
    %212 = arith.mulf %205, %1 : vector<4x128xf32>
    %213 = arith.mulf %207, %3 : vector<4x128xf32>
    %214 = arith.addf %212, %213 : vector<4x128xf32>
    %215 = arith.mulf %209, %5 : vector<4x128xf32>
    %216 = arith.addf %214, %215 : vector<4x128xf32>
    %217 = arith.mulf %211, %7 : vector<4x128xf32>
    %218 = arith.addf %216, %217 : vector<4x128xf32>
    %219 = arith.addf %218, %33 : vector<4x128xf32>
    %220 = math.tanh %219 : vector<4x128xf32>
    %221 = arith.mulf %205, %9 : vector<4x128xf32>
    %222 = arith.mulf %207, %11 : vector<4x128xf32>
    %223 = arith.addf %221, %222 : vector<4x128xf32>
    %224 = arith.mulf %209, %13 : vector<4x128xf32>
    %225 = arith.addf %223, %224 : vector<4x128xf32>
    %226 = arith.mulf %211, %15 : vector<4x128xf32>
    %227 = arith.addf %225, %226 : vector<4x128xf32>
    %228 = arith.addf %227, %35 : vector<4x128xf32>
    %229 = math.tanh %228 : vector<4x128xf32>
    %230 = arith.mulf %205, %17 : vector<4x128xf32>
    %231 = arith.mulf %207, %19 : vector<4x128xf32>
    %232 = arith.addf %230, %231 : vector<4x128xf32>
    %233 = arith.mulf %209, %21 : vector<4x128xf32>
    %234 = arith.addf %232, %233 : vector<4x128xf32>
    %235 = arith.mulf %211, %23 : vector<4x128xf32>
    %236 = arith.addf %234, %235 : vector<4x128xf32>
    %237 = arith.addf %236, %37 : vector<4x128xf32>
    %238 = math.tanh %237 : vector<4x128xf32>
    %239 = arith.mulf %205, %25 : vector<4x128xf32>
    %240 = arith.mulf %207, %27 : vector<4x128xf32>
    %241 = arith.addf %239, %240 : vector<4x128xf32>
    %242 = arith.mulf %209, %29 : vector<4x128xf32>
    %243 = arith.addf %241, %242 : vector<4x128xf32>
    %244 = arith.mulf %211, %31 : vector<4x128xf32>
    %245 = arith.addf %243, %244 : vector<4x128xf32>
    %246 = arith.addf %245, %39 : vector<4x128xf32>
    %247 = math.tanh %246 : vector<4x128xf32>
    %248 = arith.mulf %52, %220 : vector<4x128xf32>
    %249 = arith.addf %197, %248 : vector<4x128xf32>
    %250 = arith.mulf %52, %229 : vector<4x128xf32>
    %251 = arith.addf %199, %250 : vector<4x128xf32>
    %252 = arith.mulf %52, %238 : vector<4x128xf32>
    %253 = arith.addf %201, %252 : vector<4x128xf32>
    %254 = arith.mulf %52, %247 : vector<4x128xf32>
    %255 = arith.addf %203, %254 : vector<4x128xf32>
    %c0_19 = arith.constant 0 : index
    %c0_20 = arith.constant 0 : index
    %c0_21 = arith.constant 0 : index
    %c0_22 = arith.constant 0 : index
    %256 = vector.load %arg5[%c0_19, %c0_20, %c0_21, %c0_22] : memref<8x4x4x128xf32, #tpu.memory_space<vmem>>, vector<1x1x4x128xf32>
    %257 = vector.shape_cast %256 : vector<1x1x4x128xf32> to vector<4x128xf32>
    %258 = vector.shape_cast %249 : vector<4x128xf32> to vector<1x1x4x128xf32>
    tpu.vector_store %arg5[%c0_19, %c0_20, %c0_21, %c0_22], %258 {strides = array<i32>} : memref<8x4x4x128xf32, #tpu.memory_space<vmem>>, vector<1x1x4x128xf32>,
    %c0_23 = arith.constant 0 : index
    %c1_24 = arith.constant 1 : index
    %c0_25 = arith.constant 0 : index
    %c0_26 = arith.constant 0 : index
    %259 = vector.load %arg5[%c0_23, %c1_24, %c0_25, %c0_26] : memref<8x4x4x128xf32, #tpu.memory_space<vmem>>, vector<1x1x4x128xf32>
    %260 = vector.shape_cast %259 : vector<1x1x4x128xf32> to vector<4x128xf32>
    %261 = vector.shape_cast %251 : vector<4x128xf32> to vector<1x1x4x128xf32>
    tpu.vector_store %arg5[%c0_23, %c1_24, %c0_25, %c0_26], %261 {strides = array<i32>} : memref<8x4x4x128xf32, #tpu.memory_space<vmem>>, vector<1x1x4x128xf32>,
    %c0_27 = arith.constant 0 : index
    %c2_28 = arith.constant 2 : index
    %c0_29 = arith.constant 0 : index
    %c0_30 = arith.constant 0 : index
    %262 = vector.load %arg5[%c0_27, %c2_28, %c0_29, %c0_30] : memref<8x4x4x128xf32, #tpu.memory_space<vmem>>, vector<1x1x4x128xf32>
    %263 = vector.shape_cast %262 : vector<1x1x4x128xf32> to vector<4x128xf32>
    %264 = vector.shape_cast %253 : vector<4x128xf32> to vector<1x1x4x128xf32>
    tpu.vector_store %arg5[%c0_27, %c2_28, %c0_29, %c0_30], %264 {strides = array<i32>} : memref<8x4x4x128xf32, #tpu.memory_space<vmem>>, vector<1x1x4x128xf32>,
    %c0_31 = arith.constant 0 : index
    %c3_32 = arith.constant 3 : index
    %c0_33 = arith.constant 0 : index
    %c0_34 = arith.constant 0 : index
    %265 = vector.load %arg5[%c0_31, %c3_32, %c0_33, %c0_34] : memref<8x4x4x128xf32, #tpu.memory_space<vmem>>, vector<1x1x4x128xf32>
    %266 = vector.shape_cast %265 : vector<1x1x4x128xf32> to vector<4x128xf32>
    %267 = vector.shape_cast %255 : vector<4x128xf32> to vector<1x1x4x128xf32>
    tpu.vector_store %arg5[%c0_31, %c3_32, %c0_33, %c0_34], %267 {strides = array<i32>} : memref<8x4x4x128xf32, #tpu.memory_space<vmem>>, vector<1x1x4x128xf32>,
    %c1_35 = arith.constant 1 : index
    %268 = memref.load %arg1[%c1_35] : memref<8xf32, #tpu.memory_space<smem>>
    %cst_36 = arith.constant 5.000000e-01 : f32
    %269 = arith.mulf %cst_36, %268 : f32
    %270 = vector.broadcast %269 : f32 to vector<4x128xf32>
    %cst_37 = arith.constant 0.166666672 : f32
    %271 = arith.mulf %268, %cst_37 : f32
    %272 = vector.broadcast %271 : f32 to vector<4x128xf32>
    %cst_38 = arith.constant 0.333333343 : f32
    %273 = arith.mulf %268, %cst_38 : f32
    %274 = vector.broadcast %273 : f32 to vector<4x128xf32>
    %275 = vector.broadcast %268 : f32 to vector<4x128xf32>
    %276 = arith.mulf %249, %1 : vector<4x128xf32>
    %277 = arith.mulf %251, %3 : vector<4x128xf32>
    %278 = arith.addf %276, %277 : vector<4x128xf32>
    %279 = arith.mulf %253, %5 : vector<4x128xf32>
    %280 = arith.addf %278, %279 : vector<4x128xf32>
    %281 = arith.mulf %255, %7 : vector<4x128xf32>
    %282 = arith.addf %280, %281 : vector<4x128xf32>
    %283 = arith.addf %282, %33 : vector<4x128xf32>
    %284 = math.tanh %283 : vector<4x128xf32>
    %285 = arith.mulf %249, %9 : vector<4x128xf32>
    %286 = arith.mulf %251, %11 : vector<4x128xf32>
    %287 = arith.addf %285, %286 : vector<4x128xf32>
    %288 = arith.mulf %253, %13 : vector<4x128xf32>
    %289 = arith.addf %287, %288 : vector<4x128xf32>
    %290 = arith.mulf %255, %15 : vector<4x128xf32>
    %291 = arith.addf %289, %290 : vector<4x128xf32>
    %292 = arith.addf %291, %35 : vector<4x128xf32>
    %293 = math.tanh %292 : vector<4x128xf32>
    %294 = arith.mulf %249, %17 : vector<4x128xf32>
    %295 = arith.mulf %251, %19 : vector<4x128xf32>
    %296 = arith.addf %294, %295 : vector<4x128xf32>
    %297 = arith.mulf %253, %21 : vector<4x128xf32>
    %298 = arith.addf %296, %297 : vector<4x128xf32>
    %299 = arith.mulf %255, %23 : vector<4x128xf32>
    %300 = arith.addf %298, %299 : vector<4x128xf32>
    %301 = arith.addf %300, %37 : vector<4x128xf32>
    %302 = math.tanh %301 : vector<4x128xf32>
    %303 = arith.mulf %249, %25 : vector<4x128xf32>
    %304 = arith.mulf %251, %27 : vector<4x128xf32>
    %305 = arith.addf %303, %304 : vector<4x128xf32>
    %306 = arith.mulf %253, %29 : vector<4x128xf32>
    %307 = arith.addf %305, %306 : vector<4x128xf32>
    %308 = arith.mulf %255, %31 : vector<4x128xf32>
    %309 = arith.addf %307, %308 : vector<4x128xf32>
    %310 = arith.addf %309, %39 : vector<4x128xf32>
    %311 = math.tanh %310 : vector<4x128xf32>
    %312 = arith.mulf %272, %284 : vector<4x128xf32>
    %313 = arith.addf %249, %312 : vector<4x128xf32>
    %314 = arith.mulf %272, %293 : vector<4x128xf32>
    %315 = arith.addf %251, %314 : vector<4x128xf32>
    %316 = arith.mulf %272, %302 : vector<4x128xf32>
    %317 = arith.addf %253, %316 : vector<4x128xf32>
    %318 = arith.mulf %272, %311 : vector<4x128xf32>
    %319 = arith.addf %255, %318 : vector<4x128xf32>
    %320 = arith.mulf %270, %284 : vector<4x128xf32>
    %321 = arith.addf %249, %320 : vector<4x128xf32>
    %322 = arith.mulf %270, %293 : vector<4x128xf32>
    %323 = arith.addf %251, %322 : vector<4x128xf32>
    %324 = arith.mulf %270, %302 : vector<4x128xf32>
    %325 = arith.addf %253, %324 : vector<4x128xf32>
    %326 = arith.mulf %270, %311 : vector<4x128xf32>
    %327 = arith.addf %255, %326 : vector<4x128xf32>
    %328 = arith.mulf %321, %1 : vector<4x128xf32>
    %329 = arith.mulf %323, %3 : vector<4x128xf32>
    %330 = arith.addf %328, %329 : vector<4x128xf32>
    %331 = arith.mulf %325, %5 : vector<4x128xf32>
    %332 = arith.addf %330, %331 : vector<4x128xf32>
    %333 = arith.mulf %327, %7 : vector<4x128xf32>
    %334 = arith.addf %332, %333 : vector<4x128xf32>
    %335 = arith.addf %334, %33 : vector<4x128xf32>
    %336 = math.tanh %335 : vector<4x128xf32>
    %337 = arith.mulf %321, %9 : vector<4x128xf32>
    %338 = arith.mulf %323, %11 : vector<4x128xf32>
    %339 = arith.addf %337, %338 : vector<4x128xf32>
    %340 = arith.mulf %325, %13 : vector<4x128xf32>
    %341 = arith.addf %339, %340 : vector<4x128xf32>
    %342 = arith.mulf %327, %15 : vector<4x128xf32>
    %343 = arith.addf %341, %342 : vector<4x128xf32>
    %344 = arith.addf %343, %35 : vector<4x128xf32>
    %345 = math.tanh %344 : vector<4x128xf32>
    %346 = arith.mulf %321, %17 : vector<4x128xf32>
    %347 = arith.mulf %323, %19 : vector<4x128xf32>
    %348 = arith.addf %346, %347 : vector<4x128xf32>
    %349 = arith.mulf %325, %21 : vector<4x128xf32>
    %350 = arith.addf %348, %349 : vector<4x128xf32>
    %351 = arith.mulf %327, %23 : vector<4x128xf32>
    %352 = arith.addf %350, %351 : vector<4x128xf32>
    %353 = arith.addf %352, %37 : vector<4x128xf32>
    %354 = math.tanh %353 : vector<4x128xf32>
    %355 = arith.mulf %321, %25 : vector<4x128xf32>
    %356 = arith.mulf %323, %27 : vector<4x128xf32>
    %357 = arith.addf %355, %356 : vector<4x128xf32>
    %358 = arith.mulf %325, %29 : vector<4x128xf32>
    %359 = arith.addf %357, %358 : vector<4x128xf32>
    %360 = arith.mulf %327, %31 : vector<4x128xf32>
    %361 = arith.addf %359, %360 : vector<4x128xf32>
    %362 = arith.addf %361, %39 : vector<4x128xf32>
    %363 = math.tanh %362 : vector<4x128xf32>
    %364 = arith.mulf %274, %336 : vector<4x128xf32>
    %365 = arith.addf %313, %364 : vector<4x128xf32>
    %366 = arith.mulf %274, %345 : vector<4x128xf32>
    %367 = arith.addf %315, %366 : vector<4x128xf32>
    %368 = arith.mulf %274, %354 : vector<4x128xf32>
    %369 = arith.addf %317, %368 : vector<4x128xf32>
    %370 = arith.mulf %274, %363 : vector<4x128xf32>
    %371 = arith.addf %319, %370 : vector<4x128xf32>
    %372 = arith.mulf %270, %336 : vector<4x128xf32>
    %373 = arith.addf %249, %372 : vector<4x128xf32>
    %374 = arith.mulf %270, %345 : vector<4x128xf32>
    %375 = arith.addf %251, %374 : vector<4x128xf32>
    %376 = arith.mulf %270, %354 : vector<4x128xf32>
    %377 = arith.addf %253, %376 : vector<4x128xf32>
    %378 = arith.mulf %270, %363 : vector<4x128xf32>
    %379 = arith.addf %255, %378 : vector<4x128xf32>
    %380 = arith.mulf %373, %1 : vector<4x128xf32>
    %381 = arith.mulf %375, %3 : vector<4x128xf32>
    %382 = arith.addf %380, %381 : vector<4x128xf32>
    %383 = arith.mulf %377, %5 : vector<4x128xf32>
    %384 = arith.addf %382, %383 : vector<4x128xf32>
    %385 = arith.mulf %379, %7 : vector<4x128xf32>
    %386 = arith.addf %384, %385 : vector<4x128xf32>
    %387 = arith.addf %386, %33 : vector<4x128xf32>
    %388 = math.tanh %387 : vector<4x128xf32>
    %389 = arith.mulf %373, %9 : vector<4x128xf32>
    %390 = arith.mulf %375, %11 : vector<4x128xf32>
    %391 = arith.addf %389, %390 : vector<4x128xf32>
    %392 = arith.mulf %377, %13 : vector<4x128xf32>
    %393 = arith.addf %391, %392 : vector<4x128xf32>
    %394 = arith.mulf %379, %15 : vector<4x128xf32>
    %395 = arith.addf %393, %394 : vector<4x128xf32>
    %396 = arith.addf %395, %35 : vector<4x128xf32>
    %397 = math.tanh %396 : vector<4x128xf32>
    %398 = arith.mulf %373, %17 : vector<4x128xf32>
    %399 = arith.mulf %375, %19 : vector<4x128xf32>
    %400 = arith.addf %398, %399 : vector<4x128xf32>
    %401 = arith.mulf %377, %21 : vector<4x128xf32>
    %402 = arith.addf %400, %401 : vector<4x128xf32>
    %403 = arith.mulf %379, %23 : vector<4x128xf32>
    %404 = arith.addf %402, %403 : vector<4x128xf32>
    %405 = arith.addf %404, %37 : vector<4x128xf32>
    %406 = math.tanh %405 : vector<4x128xf32>
    %407 = arith.mulf %373, %25 : vector<4x128xf32>
    %408 = arith.mulf %375, %27 : vector<4x128xf32>
    %409 = arith.addf %407, %408 : vector<4x128xf32>
    %410 = arith.mulf %377, %29 : vector<4x128xf32>
    %411 = arith.addf %409, %410 : vector<4x128xf32>
    %412 = arith.mulf %379, %31 : vector<4x128xf32>
    %413 = arith.addf %411, %412 : vector<4x128xf32>
    %414 = arith.addf %413, %39 : vector<4x128xf32>
    %415 = math.tanh %414 : vector<4x128xf32>
    %416 = arith.mulf %274, %388 : vector<4x128xf32>
    %417 = arith.addf %365, %416 : vector<4x128xf32>
    %418 = arith.mulf %274, %397 : vector<4x128xf32>
    %419 = arith.addf %367, %418 : vector<4x128xf32>
    %420 = arith.mulf %274, %406 : vector<4x128xf32>
    %421 = arith.addf %369, %420 : vector<4x128xf32>
    %422 = arith.mulf %274, %415 : vector<4x128xf32>
    %423 = arith.addf %371, %422 : vector<4x128xf32>
    %424 = arith.mulf %275, %388 : vector<4x128xf32>
    %425 = arith.addf %249, %424 : vector<4x128xf32>
    %426 = arith.mulf %275, %397 : vector<4x128xf32>
    %427 = arith.addf %251, %426 : vector<4x128xf32>
    %428 = arith.mulf %275, %406 : vector<4x128xf32>
    %429 = arith.addf %253, %428 : vector<4x128xf32>
    %430 = arith.mulf %275, %415 : vector<4x128xf32>
    %431 = arith.addf %255, %430 : vector<4x128xf32>
    %432 = arith.mulf %425, %1 : vector<4x128xf32>
    %433 = arith.mulf %427, %3 : vector<4x128xf32>
    %434 = arith.addf %432, %433 : vector<4x128xf32>
    %435 = arith.mulf %429, %5 : vector<4x128xf32>
    %436 = arith.addf %434, %435 : vector<4x128xf32>
    %437 = arith.mulf %431, %7 : vector<4x128xf32>
    %438 = arith.addf %436, %437 : vector<4x128xf32>
    %439 = arith.addf %438, %33 : vector<4x128xf32>
    %440 = math.tanh %439 : vector<4x128xf32>
    %441 = arith.mulf %425, %9 : vector<4x128xf32>
    %442 = arith.mulf %427, %11 : vector<4x128xf32>
    %443 = arith.addf %441, %442 : vector<4x128xf32>
    %444 = arith.mulf %429, %13 : vector<4x128xf32>
    %445 = arith.addf %443, %444 : vector<4x128xf32>
    %446 = arith.mulf %431, %15 : vector<4x128xf32>
    %447 = arith.addf %445, %446 : vector<4x128xf32>
    %448 = arith.addf %447, %35 : vector<4x128xf32>
    %449 = math.tanh %448 : vector<4x128xf32>
    %450 = arith.mulf %425, %17 : vector<4x128xf32>
    %451 = arith.mulf %427, %19 : vector<4x128xf32>
    %452 = arith.addf %450, %451 : vector<4x128xf32>
    %453 = arith.mulf %429, %21 : vector<4x128xf32>
    %454 = arith.addf %452, %453 : vector<4x128xf32>
    %455 = arith.mulf %431, %23 : vector<4x128xf32>
    %456 = arith.addf %454, %455 : vector<4x128xf32>
    %457 = arith.addf %456, %37 : vector<4x128xf32>
    %458 = math.tanh %457 : vector<4x128xf32>
    %459 = arith.mulf %425, %25 : vector<4x128xf32>
    %460 = arith.mulf %427, %27 : vector<4x128xf32>
    %461 = arith.addf %459, %460 : vector<4x128xf32>
    %462 = arith.mulf %429, %29 : vector<4x128xf32>
    %463 = arith.addf %461, %462 : vector<4x128xf32>
    %464 = arith.mulf %431, %31 : vector<4x128xf32>
    %465 = arith.addf %463, %464 : vector<4x128xf32>
    %466 = arith.addf %465, %39 : vector<4x128xf32>
    %467 = math.tanh %466 : vector<4x128xf32>
    %468 = arith.mulf %272, %440 : vector<4x128xf32>
    %469 = arith.addf %417, %468 : vector<4x128xf32>
    %470 = arith.mulf %272, %449 : vector<4x128xf32>
    %471 = arith.addf %419, %470 : vector<4x128xf32>
    %472 = arith.mulf %272, %458 : vector<4x128xf32>
    %473 = arith.addf %421, %472 : vector<4x128xf32>
    %474 = arith.mulf %272, %467 : vector<4x128xf32>
    %475 = arith.addf %423, %474 : vector<4x128xf32>
    %c1_39 = arith.constant 1 : index
    %c0_40 = arith.constant 0 : index
    %c0_41 = arith.constant 0 : index
    %c0_42 = arith.constant 0 : index
    %476 = vector.load %arg5[%c1_39, %c0_40, %c0_41, %c0_42] : memref<8x4x4x128xf32, #tpu.memory_space<vmem>>, vector<1x1x4x128xf32>
    %477 = vector.shape_cast %476 : vector<1x1x4x128xf32> to vector<4x128xf32>
    %478 = vector.shape_cast %469 : vector<4x128xf32> to vector<1x1x4x128xf32>
    tpu.vector_store %arg5[%c1_39, %c0_40, %c0_41, %c0_42], %478 {strides = array<i32>} : memref<8x4x4x128xf32, #tpu.memory_space<vmem>>, vector<1x1x4x128xf32>,
    %c1_43 = arith.constant 1 : index
    %c1_44 = arith.constant 1 : index
    %c0_45 = arith.constant 0 : index
    %c0_46 = arith.constant 0 : index
    %479 = vector.load %arg5[%c1_43, %c1_44, %c0_45, %c0_46] : memref<8x4x4x128xf32, #tpu.memory_space<vmem>>, vector<1x1x4x128xf32>
    %480 = vector.shape_cast %479 : vector<1x1x4x128xf32> to vector<4x128xf32>
    %481 = vector.shape_cast %471 : vector<4x128xf32> to vector<1x1x4x128xf32>
    tpu.vector_store %arg5[%c1_43, %c1_44, %c0_45, %c0_46], %481 {strides = array<i32>} : memref<8x4x4x128xf32, #tpu.memory_space<vmem>>, vector<1x1x4x128xf32>,
    %c1_47 = arith.constant 1 : index
    %c2_48 = arith.constant 2 : index
    %c0_49 = arith.constant 0 : index
    %c0_50 = arith.constant 0 : index
    %482 = vector.load %arg5[%c1_47, %c2_48, %c0_49, %c0_50] : memref<8x4x4x128xf32, #tpu.memory_space<vmem>>, vector<1x1x4x128xf32>
    %483 = vector.shape_cast %482 : vector<1x1x4x128xf32> to vector<4x128xf32>
    %484 = vector.shape_cast %473 : vector<4x128xf32> to vector<1x1x4x128xf32>
    tpu.vector_store %arg5[%c1_47, %c2_48, %c0_49, %c0_50], %484 {strides = array<i32>} : memref<8x4x4x128xf32, #tpu.memory_space<vmem>>, vector<1x1x4x128xf32>,
    %c1_51 = arith.constant 1 : index
    %c3_52 = arith.constant 3 : index
    %c0_53 = arith.constant 0 : index
    %c0_54 = arith.constant 0 : index
    %485 = vector.load %arg5[%c1_51, %c3_52, %c0_53, %c0_54] : memref<8x4x4x128xf32, #tpu.memory_space<vmem>>, vector<1x1x4x128xf32>
    %486 = vector.shape_cast %485 : vector<1x1x4x128xf32> to vector<4x128xf32>
    %487 = vector.shape_cast %475 : vector<4x128xf32> to vector<1x1x4x128xf32>
    tpu.vector_store %arg5[%c1_51, %c3_52, %c0_53, %c0_54], %487 {strides = array<i32>} : memref<8x4x4x128xf32, #tpu.memory_space<vmem>>, vector<1x1x4x128xf32>,
    %c2_55 = arith.constant 2 : index
    %488 = memref.load %arg1[%c2_55] : memref<8xf32, #tpu.memory_space<smem>>
    %cst_56 = arith.constant 5.000000e-01 : f32
    %489 = arith.mulf %cst_56, %488 : f32
    %490 = vector.broadcast %489 : f32 to vector<4x128xf32>
    %cst_57 = arith.constant 0.166666672 : f32
    %491 = arith.mulf %488, %cst_57 : f32
    %492 = vector.broadcast %491 : f32 to vector<4x128xf32>
    %cst_58 = arith.constant 0.333333343 : f32
    %493 = arith.mulf %488, %cst_58 : f32
    %494 = vector.broadcast %493 : f32 to vector<4x128xf32>
    %495 = vector.broadcast %488 : f32 to vector<4x128xf32>
    %496 = arith.mulf %469, %1 : vector<4x128xf32>
    %497 = arith.mulf %471, %3 : vector<4x128xf32>
    %498 = arith.addf %496, %497 : vector<4x128xf32>
    %499 = arith.mulf %473, %5 : vector<4x128xf32>
    %500 = arith.addf %498, %499 : vector<4x128xf32>
    %501 = arith.mulf %475, %7 : vector<4x128xf32>
    %502 = arith.addf %500, %501 : vector<4x128xf32>
    %503 = arith.addf %502, %33 : vector<4x128xf32>
    %504 = math.tanh %503 : vector<4x128xf32>
    %505 = arith.mulf %469, %9 : vector<4x128xf32>
    %506 = arith.mulf %471, %11 : vector<4x128xf32>
    %507 = arith.addf %505, %506 : vector<4x128xf32>
    %508 = arith.mulf %473, %13 : vector<4x128xf32>
    %509 = arith.addf %507, %508 : vector<4x128xf32>
    %510 = arith.mulf %475, %15 : vector<4x128xf32>
    %511 = arith.addf %509, %510 : vector<4x128xf32>
    %512 = arith.addf %511, %35 : vector<4x128xf32>
    %513 = math.tanh %512 : vector<4x128xf32>
    %514 = arith.mulf %469, %17 : vector<4x128xf32>
    %515 = arith.mulf %471, %19 : vector<4x128xf32>
    %516 = arith.addf %514, %515 : vector<4x128xf32>
    %517 = arith.mulf %473, %21 : vector<4x128xf32>
    %518 = arith.addf %516, %517 : vector<4x128xf32>
    %519 = arith.mulf %475, %23 : vector<4x128xf32>
    %520 = arith.addf %518, %519 : vector<4x128xf32>
    %521 = arith.addf %520, %37 : vector<4x128xf32>
    %522 = math.tanh %521 : vector<4x128xf32>
    %523 = arith.mulf %469, %25 : vector<4x128xf32>
    %524 = arith.mulf %471, %27 : vector<4x128xf32>
    %525 = arith.addf %523, %524 : vector<4x128xf32>
    %526 = arith.mulf %473, %29 : vector<4x128xf32>
    %527 = arith.addf %525, %526 : vector<4x128xf32>
    %528 = arith.mulf %475, %31 : vector<4x128xf32>
    %529 = arith.addf %527, %528 : vector<4x128xf32>
    %530 = arith.addf %529, %39 : vector<4x128xf32>
    %531 = math.tanh %530 : vector<4x128xf32>
    %532 = arith.mulf %492, %504 : vector<4x128xf32>
    %533 = arith.addf %469, %532 : vector<4x128xf32>
    %534 = arith.mulf %492, %513 : vector<4x128xf32>
    %535 = arith.addf %471, %534 : vector<4x128xf32>
    %536 = arith.mulf %492, %522 : vector<4x128xf32>
    %537 = arith.addf %473, %536 : vector<4x128xf32>
    %538 = arith.mulf %492, %531 : vector<4x128xf32>
    %539 = arith.addf %475, %538 : vector<4x128xf32>
    %540 = arith.mulf %490, %504 : vector<4x128xf32>
    %541 = arith.addf %469, %540 : vector<4x128xf32>
    %542 = arith.mulf %490, %513 : vector<4x128xf32>
    %543 = arith.addf %471, %542 : vector<4x128xf32>
    %544 = arith.mulf %490, %522 : vector<4x128xf32>
    %545 = arith.addf %473, %544 : vector<4x128xf32>
    %546 = arith.mulf %490, %531 : vector<4x128xf32>
    %547 = arith.addf %475, %546 : vector<4x128xf32>
    %548 = arith.mulf %541, %1 : vector<4x128xf32>
    %549 = arith.mulf %543, %3 : vector<4x128xf32>
    %550 = arith.addf %548, %549 : vector<4x128xf32>
    %551 = arith.mulf %545, %5 : vector<4x128xf32>
    %552 = arith.addf %550, %551 : vector<4x128xf32>
    %553 = arith.mulf %547, %7 : vector<4x128xf32>
    %554 = arith.addf %552, %553 : vector<4x128xf32>
    %555 = arith.addf %554, %33 : vector<4x128xf32>
    %556 = math.tanh %555 : vector<4x128xf32>
    %557 = arith.mulf %541, %9 : vector<4x128xf32>
    %558 = arith.mulf %543, %11 : vector<4x128xf32>
    %559 = arith.addf %557, %558 : vector<4x128xf32>
    %560 = arith.mulf %545, %13 : vector<4x128xf32>
    %561 = arith.addf %559, %560 : vector<4x128xf32>
    %562 = arith.mulf %547, %15 : vector<4x128xf32>
    %563 = arith.addf %561, %562 : vector<4x128xf32>
    %564 = arith.addf %563, %35 : vector<4x128xf32>
    %565 = math.tanh %564 : vector<4x128xf32>
    %566 = arith.mulf %541, %17 : vector<4x128xf32>
    %567 = arith.mulf %543, %19 : vector<4x128xf32>
    %568 = arith.addf %566, %567 : vector<4x128xf32>
    %569 = arith.mulf %545, %21 : vector<4x128xf32>
    %570 = arith.addf %568, %569 : vector<4x128xf32>
    %571 = arith.mulf %547, %23 : vector<4x128xf32>
    %572 = arith.addf %570, %571 : vector<4x128xf32>
    %573 = arith.addf %572, %37 : vector<4x128xf32>
    %574 = math.tanh %573 : vector<4x128xf32>
    %575 = arith.mulf %541, %25 : vector<4x128xf32>
    %576 = arith.mulf %543, %27 : vector<4x128xf32>
    %577 = arith.addf %575, %576 : vector<4x128xf32>
    %578 = arith.mulf %545, %29 : vector<4x128xf32>
    %579 = arith.addf %577, %578 : vector<4x128xf32>
    %580 = arith.mulf %547, %31 : vector<4x128xf32>
    %581 = arith.addf %579, %580 : vector<4x128xf32>
    %582 = arith.addf %581, %39 : vector<4x128xf32>
    %583 = math.tanh %582 : vector<4x128xf32>
    %584 = arith.mulf %494, %556 : vector<4x128xf32>
    %585 = arith.addf %533, %584 : vector<4x128xf32>
    %586 = arith.mulf %494, %565 : vector<4x128xf32>
    %587 = arith.addf %535, %586 : vector<4x128xf32>
    %588 = arith.mulf %494, %574 : vector<4x128xf32>
    %589 = arith.addf %537, %588 : vector<4x128xf32>
    %590 = arith.mulf %494, %583 : vector<4x128xf32>
    %591 = arith.addf %539, %590 : vector<4x128xf32>
    %592 = arith.mulf %490, %556 : vector<4x128xf32>
    %593 = arith.addf %469, %592 : vector<4x128xf32>
    %594 = arith.mulf %490, %565 : vector<4x128xf32>
    %595 = arith.addf %471, %594 : vector<4x128xf32>
    %596 = arith.mulf %490, %574 : vector<4x128xf32>
    %597 = arith.addf %473, %596 : vector<4x128xf32>
    %598 = arith.mulf %490, %583 : vector<4x128xf32>
    %599 = arith.addf %475, %598 : vector<4x128xf32>
    %600 = arith.mulf %593, %1 : vector<4x128xf32>
    %601 = arith.mulf %595, %3 : vector<4x128xf32>
    %602 = arith.addf %600, %601 : vector<4x128xf32>
    %603 = arith.mulf %597, %5 : vector<4x128xf32>
    %604 = arith.addf %602, %603 : vector<4x128xf32>
    %605 = arith.mulf %599, %7 : vector<4x128xf32>
    %606 = arith.addf %604, %605 : vector<4x128xf32>
    %607 = arith.addf %606, %33 : vector<4x128xf32>
    %608 = math.tanh %607 : vector<4x128xf32>
    %609 = arith.mulf %593, %9 : vector<4x128xf32>
    %610 = arith.mulf %595, %11 : vector<4x128xf32>
    %611 = arith.addf %609, %610 : vector<4x128xf32>
    %612 = arith.mulf %597, %13 : vector<4x128xf32>
    %613 = arith.addf %611, %612 : vector<4x128xf32>
    %614 = arith.mulf %599, %15 : vector<4x128xf32>
    %615 = arith.addf %613, %614 : vector<4x128xf32>
    %616 = arith.addf %615, %35 : vector<4x128xf32>
    %617 = math.tanh %616 : vector<4x128xf32>
    %618 = arith.mulf %593, %17 : vector<4x128xf32>
    %619 = arith.mulf %595, %19 : vector<4x128xf32>
    %620 = arith.addf %618, %619 : vector<4x128xf32>
    %621 = arith.mulf %597, %21 : vector<4x128xf32>
    %622 = arith.addf %620, %621 : vector<4x128xf32>
    %623 = arith.mulf %599, %23 : vector<4x128xf32>
    %624 = arith.addf %622, %623 : vector<4x128xf32>
    %625 = arith.addf %624, %37 : vector<4x128xf32>
    %626 = math.tanh %625 : vector<4x128xf32>
    %627 = arith.mulf %593, %25 : vector<4x128xf32>
    %628 = arith.mulf %595, %27 : vector<4x128xf32>
    %629 = arith.addf %627, %628 : vector<4x128xf32>
    %630 = arith.mulf %597, %29 : vector<4x128xf32>
    %631 = arith.addf %629, %630 : vector<4x128xf32>
    %632 = arith.mulf %599, %31 : vector<4x128xf32>
    %633 = arith.addf %631, %632 : vector<4x128xf32>
    %634 = arith.addf %633, %39 : vector<4x128xf32>
    %635 = math.tanh %634 : vector<4x128xf32>
    %636 = arith.mulf %494, %608 : vector<4x128xf32>
    %637 = arith.addf %585, %636 : vector<4x128xf32>
    %638 = arith.mulf %494, %617 : vector<4x128xf32>
    %639 = arith.addf %587, %638 : vector<4x128xf32>
    %640 = arith.mulf %494, %626 : vector<4x128xf32>
    %641 = arith.addf %589, %640 : vector<4x128xf32>
    %642 = arith.mulf %494, %635 : vector<4x128xf32>
    %643 = arith.addf %591, %642 : vector<4x128xf32>
    %644 = arith.mulf %495, %608 : vector<4x128xf32>
    %645 = arith.addf %469, %644 : vector<4x128xf32>
    %646 = arith.mulf %495, %617 : vector<4x128xf32>
    %647 = arith.addf %471, %646 : vector<4x128xf32>
    %648 = arith.mulf %495, %626 : vector<4x128xf32>
    %649 = arith.addf %473, %648 : vector<4x128xf32>
    %650 = arith.mulf %495, %635 : vector<4x128xf32>
    %651 = arith.addf %475, %650 : vector<4x128xf32>
    %652 = arith.mulf %645, %1 : vector<4x128xf32>
    %653 = arith.mulf %647, %3 : vector<4x128xf32>
    %654 = arith.addf %652, %653 : vector<4x128xf32>
    %655 = arith.mulf %649, %5 : vector<4x128xf32>
    %656 = arith.addf %654, %655 : vector<4x128xf32>
    %657 = arith.mulf %651, %7 : vector<4x128xf32>
    %658 = arith.addf %656, %657 : vector<4x128xf32>
    %659 = arith.addf %658, %33 : vector<4x128xf32>
    %660 = math.tanh %659 : vector<4x128xf32>
    %661 = arith.mulf %645, %9 : vector<4x128xf32>
    %662 = arith.mulf %647, %11 : vector<4x128xf32>
    %663 = arith.addf %661, %662 : vector<4x128xf32>
    %664 = arith.mulf %649, %13 : vector<4x128xf32>
    %665 = arith.addf %663, %664 : vector<4x128xf32>
    %666 = arith.mulf %651, %15 : vector<4x128xf32>
    %667 = arith.addf %665, %666 : vector<4x128xf32>
    %668 = arith.addf %667, %35 : vector<4x128xf32>
    %669 = math.tanh %668 : vector<4x128xf32>
    %670 = arith.mulf %645, %17 : vector<4x128xf32>
    %671 = arith.mulf %647, %19 : vector<4x128xf32>
    %672 = arith.addf %670, %671 : vector<4x128xf32>
    %673 = arith.mulf %649, %21 : vector<4x128xf32>
    %674 = arith.addf %672, %673 : vector<4x128xf32>
    %675 = arith.mulf %651, %23 : vector<4x128xf32>
    %676 = arith.addf %674, %675 : vector<4x128xf32>
    %677 = arith.addf %676, %37 : vector<4x128xf32>
    %678 = math.tanh %677 : vector<4x128xf32>
    %679 = arith.mulf %645, %25 : vector<4x128xf32>
    %680 = arith.mulf %647, %27 : vector<4x128xf32>
    %681 = arith.addf %679, %680 : vector<4x128xf32>
    %682 = arith.mulf %649, %29 : vector<4x128xf32>
    %683 = arith.addf %681, %682 : vector<4x128xf32>
    %684 = arith.mulf %651, %31 : vector<4x128xf32>
    %685 = arith.addf %683, %684 : vector<4x128xf32>
    %686 = arith.addf %685, %39 : vector<4x128xf32>
    %687 = math.tanh %686 : vector<4x128xf32>
    %688 = arith.mulf %492, %660 : vector<4x128xf32>
    %689 = arith.addf %637, %688 : vector<4x128xf32>
    %690 = arith.mulf %492, %669 : vector<4x128xf32>
    %691 = arith.addf %639, %690 : vector<4x128xf32>
    %692 = arith.mulf %492, %678 : vector<4x128xf32>
    %693 = arith.addf %641, %692 : vector<4x128xf32>
    %694 = arith.mulf %492, %687 : vector<4x128xf32>
    %695 = arith.addf %643, %694 : vector<4x128xf32>
    %c2_59 = arith.constant 2 : index
    %c0_60 = arith.constant 0 : index
    %c0_61 = arith.constant 0 : index
    %c0_62 = arith.constant 0 : index
    %696 = vector.load %arg5[%c2_59, %c0_60, %c0_61, %c0_62] : memref<8x4x4x128xf32, #tpu.memory_space<vmem>>, vector<1x1x4x128xf32>
    %697 = vector.shape_cast %696 : vector<1x1x4x128xf32> to vector<4x128xf32>
    %698 = vector.shape_cast %689 : vector<4x128xf32> to vector<1x1x4x128xf32>
    tpu.vector_store %arg5[%c2_59, %c0_60, %c0_61, %c0_62], %698 {strides = array<i32>} : memref<8x4x4x128xf32, #tpu.memory_space<vmem>>, vector<1x1x4x128xf32>,
    %c2_63 = arith.constant 2 : index
    %c1_64 = arith.constant 1 : index
    %c0_65 = arith.constant 0 : index
    %c0_66 = arith.constant 0 : index
    %699 = vector.load %arg5[%c2_63, %c1_64, %c0_65, %c0_66] : memref<8x4x4x128xf32, #tpu.memory_space<vmem>>, vector<1x1x4x128xf32>
    %700 = vector.shape_cast %699 : vector<1x1x4x128xf32> to vector<4x128xf32>
    %701 = vector.shape_cast %691 : vector<4x128xf32> to vector<1x1x4x128xf32>
    tpu.vector_store %arg5[%c2_63, %c1_64, %c0_65, %c0_66], %701 {strides = array<i32>} : memref<8x4x4x128xf32, #tpu.memory_space<vmem>>, vector<1x1x4x128xf32>,
    %c2_67 = arith.constant 2 : index
    %c2_68 = arith.constant 2 : index
    %c0_69 = arith.constant 0 : index
    %c0_70 = arith.constant 0 : index
    %702 = vector.load %arg5[%c2_67, %c2_68, %c0_69, %c0_70] : memref<8x4x4x128xf32, #tpu.memory_space<vmem>>, vector<1x1x4x128xf32>
    %703 = vector.shape_cast %702 : vector<1x1x4x128xf32> to vector<4x128xf32>
    %704 = vector.shape_cast %693 : vector<4x128xf32> to vector<1x1x4x128xf32>
    tpu.vector_store %arg5[%c2_67, %c2_68, %c0_69, %c0_70], %704 {strides = array<i32>} : memref<8x4x4x128xf32, #tpu.memory_space<vmem>>, vector<1x1x4x128xf32>,
    %c2_71 = arith.constant 2 : index
    %c3_72 = arith.constant 3 : index
    %c0_73 = arith.constant 0 : index
    %c0_74 = arith.constant 0 : index
    %705 = vector.load %arg5[%c2_71, %c3_72, %c0_73, %c0_74] : memref<8x4x4x128xf32, #tpu.memory_space<vmem>>, vector<1x1x4x128xf32>
    %706 = vector.shape_cast %705 : vector<1x1x4x128xf32> to vector<4x128xf32>
    %707 = vector.shape_cast %695 : vector<4x128xf32> to vector<1x1x4x128xf32>
    tpu.vector_store %arg5[%c2_71, %c3_72, %c0_73, %c0_74], %707 {strides = array<i32>} : memref<8x4x4x128xf32, #tpu.memory_space<vmem>>, vector<1x1x4x128xf32>,
    %c3_75 = arith.constant 3 : index
    %708 = memref.load %arg1[%c3_75] : memref<8xf32, #tpu.memory_space<smem>>
    %cst_76 = arith.constant 5.000000e-01 : f32
    %709 = arith.mulf %cst_76, %708 : f32
    %710 = vector.broadcast %709 : f32 to vector<4x128xf32>
    %cst_77 = arith.constant 0.166666672 : f32
    %711 = arith.mulf %708, %cst_77 : f32
    %712 = vector.broadcast %711 : f32 to vector<4x128xf32>
    %cst_78 = arith.constant 0.333333343 : f32
    %713 = arith.mulf %708, %cst_78 : f32
    %714 = vector.broadcast %713 : f32 to vector<4x128xf32>
    %715 = vector.broadcast %708 : f32 to vector<4x128xf32>
    %716 = arith.mulf %689, %1 : vector<4x128xf32>
    %717 = arith.mulf %691, %3 : vector<4x128xf32>
    %718 = arith.addf %716, %717 : vector<4x128xf32>
    %719 = arith.mulf %693, %5 : vector<4x128xf32>
    %720 = arith.addf %718, %719 : vector<4x128xf32>
    %721 = arith.mulf %695, %7 : vector<4x128xf32>
    %722 = arith.addf %720, %721 : vector<4x128xf32>
    %723 = arith.addf %722, %33 : vector<4x128xf32>
    %724 = math.tanh %723 : vector<4x128xf32>
    %725 = arith.mulf %689, %9 : vector<4x128xf32>
    %726 = arith.mulf %691, %11 : vector<4x128xf32>
    %727 = arith.addf %725, %726 : vector<4x128xf32>
    %728 = arith.mulf %693, %13 : vector<4x128xf32>
    %729 = arith.addf %727, %728 : vector<4x128xf32>
    %730 = arith.mulf %695, %15 : vector<4x128xf32>
    %731 = arith.addf %729, %730 : vector<4x128xf32>
    %732 = arith.addf %731, %35 : vector<4x128xf32>
    %733 = math.tanh %732 : vector<4x128xf32>
    %734 = arith.mulf %689, %17 : vector<4x128xf32>
    %735 = arith.mulf %691, %19 : vector<4x128xf32>
    %736 = arith.addf %734, %735 : vector<4x128xf32>
    %737 = arith.mulf %693, %21 : vector<4x128xf32>
    %738 = arith.addf %736, %737 : vector<4x128xf32>
    %739 = arith.mulf %695, %23 : vector<4x128xf32>
    %740 = arith.addf %738, %739 : vector<4x128xf32>
    %741 = arith.addf %740, %37 : vector<4x128xf32>
    %742 = math.tanh %741 : vector<4x128xf32>
    %743 = arith.mulf %689, %25 : vector<4x128xf32>
    %744 = arith.mulf %691, %27 : vector<4x128xf32>
    %745 = arith.addf %743, %744 : vector<4x128xf32>
    %746 = arith.mulf %693, %29 : vector<4x128xf32>
    %747 = arith.addf %745, %746 : vector<4x128xf32>
    %748 = arith.mulf %695, %31 : vector<4x128xf32>
    %749 = arith.addf %747, %748 : vector<4x128xf32>
    %750 = arith.addf %749, %39 : vector<4x128xf32>
    %751 = math.tanh %750 : vector<4x128xf32>
    %752 = arith.mulf %712, %724 : vector<4x128xf32>
    %753 = arith.addf %689, %752 : vector<4x128xf32>
    %754 = arith.mulf %712, %733 : vector<4x128xf32>
    %755 = arith.addf %691, %754 : vector<4x128xf32>
    %756 = arith.mulf %712, %742 : vector<4x128xf32>
    %757 = arith.addf %693, %756 : vector<4x128xf32>
    %758 = arith.mulf %712, %751 : vector<4x128xf32>
    %759 = arith.addf %695, %758 : vector<4x128xf32>
    %760 = arith.mulf %710, %724 : vector<4x128xf32>
    %761 = arith.addf %689, %760 : vector<4x128xf32>
    %762 = arith.mulf %710, %733 : vector<4x128xf32>
    %763 = arith.addf %691, %762 : vector<4x128xf32>
    %764 = arith.mulf %710, %742 : vector<4x128xf32>
    %765 = arith.addf %693, %764 : vector<4x128xf32>
    %766 = arith.mulf %710, %751 : vector<4x128xf32>
    %767 = arith.addf %695, %766 : vector<4x128xf32>
    %768 = arith.mulf %761, %1 : vector<4x128xf32>
    %769 = arith.mulf %763, %3 : vector<4x128xf32>
    %770 = arith.addf %768, %769 : vector<4x128xf32>
    %771 = arith.mulf %765, %5 : vector<4x128xf32>
    %772 = arith.addf %770, %771 : vector<4x128xf32>
    %773 = arith.mulf %767, %7 : vector<4x128xf32>
    %774 = arith.addf %772, %773 : vector<4x128xf32>
    %775 = arith.addf %774, %33 : vector<4x128xf32>
    %776 = math.tanh %775 : vector<4x128xf32>
    %777 = arith.mulf %761, %9 : vector<4x128xf32>
    %778 = arith.mulf %763, %11 : vector<4x128xf32>
    %779 = arith.addf %777, %778 : vector<4x128xf32>
    %780 = arith.mulf %765, %13 : vector<4x128xf32>
    %781 = arith.addf %779, %780 : vector<4x128xf32>
    %782 = arith.mulf %767, %15 : vector<4x128xf32>
    %783 = arith.addf %781, %782 : vector<4x128xf32>
    %784 = arith.addf %783, %35 : vector<4x128xf32>
    %785 = math.tanh %784 : vector<4x128xf32>
    %786 = arith.mulf %761, %17 : vector<4x128xf32>
    %787 = arith.mulf %763, %19 : vector<4x128xf32>
    %788 = arith.addf %786, %787 : vector<4x128xf32>
    %789 = arith.mulf %765, %21 : vector<4x128xf32>
    %790 = arith.addf %788, %789 : vector<4x128xf32>
    %791 = arith.mulf %767, %23 : vector<4x128xf32>
    %792 = arith.addf %790, %791 : vector<4x128xf32>
    %793 = arith.addf %792, %37 : vector<4x128xf32>
    %794 = math.tanh %793 : vector<4x128xf32>
    %795 = arith.mulf %761, %25 : vector<4x128xf32>
    %796 = arith.mulf %763, %27 : vector<4x128xf32>
    %797 = arith.addf %795, %796 : vector<4x128xf32>
    %798 = arith.mulf %765, %29 : vector<4x128xf32>
    %799 = arith.addf %797, %798 : vector<4x128xf32>
    %800 = arith.mulf %767, %31 : vector<4x128xf32>
    %801 = arith.addf %799, %800 : vector<4x128xf32>
    %802 = arith.addf %801, %39 : vector<4x128xf32>
    %803 = math.tanh %802 : vector<4x128xf32>
    %804 = arith.mulf %714, %776 : vector<4x128xf32>
    %805 = arith.addf %753, %804 : vector<4x128xf32>
    %806 = arith.mulf %714, %785 : vector<4x128xf32>
    %807 = arith.addf %755, %806 : vector<4x128xf32>
    %808 = arith.mulf %714, %794 : vector<4x128xf32>
    %809 = arith.addf %757, %808 : vector<4x128xf32>
    %810 = arith.mulf %714, %803 : vector<4x128xf32>
    %811 = arith.addf %759, %810 : vector<4x128xf32>
    %812 = arith.mulf %710, %776 : vector<4x128xf32>
    %813 = arith.addf %689, %812 : vector<4x128xf32>
    %814 = arith.mulf %710, %785 : vector<4x128xf32>
    %815 = arith.addf %691, %814 : vector<4x128xf32>
    %816 = arith.mulf %710, %794 : vector<4x128xf32>
    %817 = arith.addf %693, %816 : vector<4x128xf32>
    %818 = arith.mulf %710, %803 : vector<4x128xf32>
    %819 = arith.addf %695, %818 : vector<4x128xf32>
    %820 = arith.mulf %813, %1 : vector<4x128xf32>
    %821 = arith.mulf %815, %3 : vector<4x128xf32>
    %822 = arith.addf %820, %821 : vector<4x128xf32>
    %823 = arith.mulf %817, %5 : vector<4x128xf32>
    %824 = arith.addf %822, %823 : vector<4x128xf32>
    %825 = arith.mulf %819, %7 : vector<4x128xf32>
    %826 = arith.addf %824, %825 : vector<4x128xf32>
    %827 = arith.addf %826, %33 : vector<4x128xf32>
    %828 = math.tanh %827 : vector<4x128xf32>
    %829 = arith.mulf %813, %9 : vector<4x128xf32>
    %830 = arith.mulf %815, %11 : vector<4x128xf32>
    %831 = arith.addf %829, %830 : vector<4x128xf32>
    %832 = arith.mulf %817, %13 : vector<4x128xf32>
    %833 = arith.addf %831, %832 : vector<4x128xf32>
    %834 = arith.mulf %819, %15 : vector<4x128xf32>
    %835 = arith.addf %833, %834 : vector<4x128xf32>
    %836 = arith.addf %835, %35 : vector<4x128xf32>
    %837 = math.tanh %836 : vector<4x128xf32>
    %838 = arith.mulf %813, %17 : vector<4x128xf32>
    %839 = arith.mulf %815, %19 : vector<4x128xf32>
    %840 = arith.addf %838, %839 : vector<4x128xf32>
    %841 = arith.mulf %817, %21 : vector<4x128xf32>
    %842 = arith.addf %840, %841 : vector<4x128xf32>
    %843 = arith.mulf %819, %23 : vector<4x128xf32>
    %844 = arith.addf %842, %843 : vector<4x128xf32>
    %845 = arith.addf %844, %37 : vector<4x128xf32>
    %846 = math.tanh %845 : vector<4x128xf32>
    %847 = arith.mulf %813, %25 : vector<4x128xf32>
    %848 = arith.mulf %815, %27 : vector<4x128xf32>
    %849 = arith.addf %847, %848 : vector<4x128xf32>
    %850 = arith.mulf %817, %29 : vector<4x128xf32>
    %851 = arith.addf %849, %850 : vector<4x128xf32>
    %852 = arith.mulf %819, %31 : vector<4x128xf32>
    %853 = arith.addf %851, %852 : vector<4x128xf32>
    %854 = arith.addf %853, %39 : vector<4x128xf32>
    %855 = math.tanh %854 : vector<4x128xf32>
    %856 = arith.mulf %714, %828 : vector<4x128xf32>
    %857 = arith.addf %805, %856 : vector<4x128xf32>
    %858 = arith.mulf %714, %837 : vector<4x128xf32>
    %859 = arith.addf %807, %858 : vector<4x128xf32>
    %860 = arith.mulf %714, %846 : vector<4x128xf32>
    %861 = arith.addf %809, %860 : vector<4x128xf32>
    %862 = arith.mulf %714, %855 : vector<4x128xf32>
    %863 = arith.addf %811, %862 : vector<4x128xf32>
    %864 = arith.mulf %715, %828 : vector<4x128xf32>
    %865 = arith.addf %689, %864 : vector<4x128xf32>
    %866 = arith.mulf %715, %837 : vector<4x128xf32>
    %867 = arith.addf %691, %866 : vector<4x128xf32>
    %868 = arith.mulf %715, %846 : vector<4x128xf32>
    %869 = arith.addf %693, %868 : vector<4x128xf32>
    %870 = arith.mulf %715, %855 : vector<4x128xf32>
    %871 = arith.addf %695, %870 : vector<4x128xf32>
    %872 = arith.mulf %865, %1 : vector<4x128xf32>
    %873 = arith.mulf %867, %3 : vector<4x128xf32>
    %874 = arith.addf %872, %873 : vector<4x128xf32>
    %875 = arith.mulf %869, %5 : vector<4x128xf32>
    %876 = arith.addf %874, %875 : vector<4x128xf32>
    %877 = arith.mulf %871, %7 : vector<4x128xf32>
    %878 = arith.addf %876, %877 : vector<4x128xf32>
    %879 = arith.addf %878, %33 : vector<4x128xf32>
    %880 = math.tanh %879 : vector<4x128xf32>
    %881 = arith.mulf %865, %9 : vector<4x128xf32>
    %882 = arith.mulf %867, %11 : vector<4x128xf32>
    %883 = arith.addf %881, %882 : vector<4x128xf32>
    %884 = arith.mulf %869, %13 : vector<4x128xf32>
    %885 = arith.addf %883, %884 : vector<4x128xf32>
    %886 = arith.mulf %871, %15 : vector<4x128xf32>
    %887 = arith.addf %885, %886 : vector<4x128xf32>
    %888 = arith.addf %887, %35 : vector<4x128xf32>
    %889 = math.tanh %888 : vector<4x128xf32>
    %890 = arith.mulf %865, %17 : vector<4x128xf32>
    %891 = arith.mulf %867, %19 : vector<4x128xf32>
    %892 = arith.addf %890, %891 : vector<4x128xf32>
    %893 = arith.mulf %869, %21 : vector<4x128xf32>
    %894 = arith.addf %892, %893 : vector<4x128xf32>
    %895 = arith.mulf %871, %23 : vector<4x128xf32>
    %896 = arith.addf %894, %895 : vector<4x128xf32>
    %897 = arith.addf %896, %37 : vector<4x128xf32>
    %898 = math.tanh %897 : vector<4x128xf32>
    %899 = arith.mulf %865, %25 : vector<4x128xf32>
    %900 = arith.mulf %867, %27 : vector<4x128xf32>
    %901 = arith.addf %899, %900 : vector<4x128xf32>
    %902 = arith.mulf %869, %29 : vector<4x128xf32>
    %903 = arith.addf %901, %902 : vector<4x128xf32>
    %904 = arith.mulf %871, %31 : vector<4x128xf32>
    %905 = arith.addf %903, %904 : vector<4x128xf32>
    %906 = arith.addf %905, %39 : vector<4x128xf32>
    %907 = math.tanh %906 : vector<4x128xf32>
    %908 = arith.mulf %712, %880 : vector<4x128xf32>
    %909 = arith.addf %857, %908 : vector<4x128xf32>
    %910 = arith.mulf %712, %889 : vector<4x128xf32>
    %911 = arith.addf %859, %910 : vector<4x128xf32>
    %912 = arith.mulf %712, %898 : vector<4x128xf32>
    %913 = arith.addf %861, %912 : vector<4x128xf32>
    %914 = arith.mulf %712, %907 : vector<4x128xf32>
    %915 = arith.addf %863, %914 : vector<4x128xf32>
    %c3_79 = arith.constant 3 : index
    %c0_80 = arith.constant 0 : index
    %c0_81 = arith.constant 0 : index
    %c0_82 = arith.constant 0 : index
    %916 = vector.load %arg5[%c3_79, %c0_80, %c0_81, %c0_82] : memref<8x4x4x128xf32, #tpu.memory_space<vmem>>, vector<1x1x4x128xf32>
    %917 = vector.shape_cast %916 : vector<1x1x4x128xf32> to vector<4x128xf32>
    %918 = vector.shape_cast %909 : vector<4x128xf32> to vector<1x1x4x128xf32>
    tpu.vector_store %arg5[%c3_79, %c0_80, %c0_81, %c0_82], %918 {strides = array<i32>} : memref<8x4x4x128xf32, #tpu.memory_space<vmem>>, vector<1x1x4x128xf32>,
    %c3_83 = arith.constant 3 : index
    %c1_84 = arith.constant 1 : index
    %c0_85 = arith.constant 0 : index
    %c0_86 = arith.constant 0 : index
    %919 = vector.load %arg5[%c3_83, %c1_84, %c0_85, %c0_86] : memref<8x4x4x128xf32, #tpu.memory_space<vmem>>, vector<1x1x4x128xf32>
    %920 = vector.shape_cast %919 : vector<1x1x4x128xf32> to vector<4x128xf32>
    %921 = vector.shape_cast %911 : vector<4x128xf32> to vector<1x1x4x128xf32>
    tpu.vector_store %arg5[%c3_83, %c1_84, %c0_85, %c0_86], %921 {strides = array<i32>} : memref<8x4x4x128xf32, #tpu.memory_space<vmem>>, vector<1x1x4x128xf32>,
    %c3_87 = arith.constant 3 : index
    %c2_88 = arith.constant 2 : index
    %c0_89 = arith.constant 0 : index
    %c0_90 = arith.constant 0 : index
    %922 = vector.load %arg5[%c3_87, %c2_88, %c0_89, %c0_90] : memref<8x4x4x128xf32, #tpu.memory_space<vmem>>, vector<1x1x4x128xf32>
    %923 = vector.shape_cast %922 : vector<1x1x4x128xf32> to vector<4x128xf32>
    %924 = vector.shape_cast %913 : vector<4x128xf32> to vector<1x1x4x128xf32>
    tpu.vector_store %arg5[%c3_87, %c2_88, %c0_89, %c0_90], %924 {strides = array<i32>} : memref<8x4x4x128xf32, #tpu.memory_space<vmem>>, vector<1x1x4x128xf32>,
    %c3_91 = arith.constant 3 : index
    %c3_92 = arith.constant 3 : index
    %c0_93 = arith.constant 0 : index
    %c0_94 = arith.constant 0 : index
    %925 = vector.load %arg5[%c3_91, %c3_92, %c0_93, %c0_94] : memref<8x4x4x128xf32, #tpu.memory_space<vmem>>, vector<1x1x4x128xf32>
    %926 = vector.shape_cast %925 : vector<1x1x4x128xf32> to vector<4x128xf32>
    %927 = vector.shape_cast %915 : vector<4x128xf32> to vector<1x1x4x128xf32>
    tpu.vector_store %arg5[%c3_91, %c3_92, %c0_93, %c0_94], %927 {strides = array<i32>} : memref<8x4x4x128xf32, #tpu.memory_space<vmem>>, vector<1x1x4x128xf32>,
    %c4_95 = arith.constant 4 : index
    %928 = memref.load %arg1[%c4_95] : memref<8xf32, #tpu.memory_space<smem>>
    %cst_96 = arith.constant 5.000000e-01 : f32
    %929 = arith.mulf %cst_96, %928 : f32
    %930 = vector.broadcast %929 : f32 to vector<4x128xf32>
    %cst_97 = arith.constant 0.166666672 : f32
    %931 = arith.mulf %928, %cst_97 : f32
    %932 = vector.broadcast %931 : f32 to vector<4x128xf32>
    %cst_98 = arith.constant 0.333333343 : f32
    %933 = arith.mulf %928, %cst_98 : f32
    %934 = vector.broadcast %933 : f32 to vector<4x128xf32>
    %935 = vector.broadcast %928 : f32 to vector<4x128xf32>
    %936 = arith.mulf %909, %1 : vector<4x128xf32>
    %937 = arith.mulf %911, %3 : vector<4x128xf32>
    %938 = arith.addf %936, %937 : vector<4x128xf32>
    %939 = arith.mulf %913, %5 : vector<4x128xf32>
    %940 = arith.addf %938, %939 : vector<4x128xf32>
    %941 = arith.mulf %915, %7 : vector<4x128xf32>
    %942 = arith.addf %940, %941 : vector<4x128xf32>
    %943 = arith.addf %942, %33 : vector<4x128xf32>
    %944 = math.tanh %943 : vector<4x128xf32>
    %945 = arith.mulf %909, %9 : vector<4x128xf32>
    %946 = arith.mulf %911, %11 : vector<4x128xf32>
    %947 = arith.addf %945, %946 : vector<4x128xf32>
    %948 = arith.mulf %913, %13 : vector<4x128xf32>
    %949 = arith.addf %947, %948 : vector<4x128xf32>
    %950 = arith.mulf %915, %15 : vector<4x128xf32>
    %951 = arith.addf %949, %950 : vector<4x128xf32>
    %952 = arith.addf %951, %35 : vector<4x128xf32>
    %953 = math.tanh %952 : vector<4x128xf32>
    %954 = arith.mulf %909, %17 : vector<4x128xf32>
    %955 = arith.mulf %911, %19 : vector<4x128xf32>
    %956 = arith.addf %954, %955 : vector<4x128xf32>
    %957 = arith.mulf %913, %21 : vector<4x128xf32>
    %958 = arith.addf %956, %957 : vector<4x128xf32>
    %959 = arith.mulf %915, %23 : vector<4x128xf32>
    %960 = arith.addf %958, %959 : vector<4x128xf32>
    %961 = arith.addf %960, %37 : vector<4x128xf32>
    %962 = math.tanh %961 : vector<4x128xf32>
    %963 = arith.mulf %909, %25 : vector<4x128xf32>
    %964 = arith.mulf %911, %27 : vector<4x128xf32>
    %965 = arith.addf %963, %964 : vector<4x128xf32>
    %966 = arith.mulf %913, %29 : vector<4x128xf32>
    %967 = arith.addf %965, %966 : vector<4x128xf32>
    %968 = arith.mulf %915, %31 : vector<4x128xf32>
    %969 = arith.addf %967, %968 : vector<4x128xf32>
    %970 = arith.addf %969, %39 : vector<4x128xf32>
    %971 = math.tanh %970 : vector<4x128xf32>
    %972 = arith.mulf %932, %944 : vector<4x128xf32>
    %973 = arith.addf %909, %972 : vector<4x128xf32>
    %974 = arith.mulf %932, %953 : vector<4x128xf32>
    %975 = arith.addf %911, %974 : vector<4x128xf32>
    %976 = arith.mulf %932, %962 : vector<4x128xf32>
    %977 = arith.addf %913, %976 : vector<4x128xf32>
    %978 = arith.mulf %932, %971 : vector<4x128xf32>
    %979 = arith.addf %915, %978 : vector<4x128xf32>
    %980 = arith.mulf %930, %944 : vector<4x128xf32>
    %981 = arith.addf %909, %980 : vector<4x128xf32>
    %982 = arith.mulf %930, %953 : vector<4x128xf32>
    %983 = arith.addf %911, %982 : vector<4x128xf32>
    %984 = arith.mulf %930, %962 : vector<4x128xf32>
    %985 = arith.addf %913, %984 : vector<4x128xf32>
    %986 = arith.mulf %930, %971 : vector<4x128xf32>
    %987 = arith.addf %915, %986 : vector<4x128xf32>
    %988 = arith.mulf %981, %1 : vector<4x128xf32>
    %989 = arith.mulf %983, %3 : vector<4x128xf32>
    %990 = arith.addf %988, %989 : vector<4x128xf32>
    %991 = arith.mulf %985, %5 : vector<4x128xf32>
    %992 = arith.addf %990, %991 : vector<4x128xf32>
    %993 = arith.mulf %987, %7 : vector<4x128xf32>
    %994 = arith.addf %992, %993 : vector<4x128xf32>
    %995 = arith.addf %994, %33 : vector<4x128xf32>
    %996 = math.tanh %995 : vector<4x128xf32>
    %997 = arith.mulf %981, %9 : vector<4x128xf32>
    %998 = arith.mulf %983, %11 : vector<4x128xf32>
    %999 = arith.addf %997, %998 : vector<4x128xf32>
    %1000 = arith.mulf %985, %13 : vector<4x128xf32>
    %1001 = arith.addf %999, %1000 : vector<4x128xf32>
    %1002 = arith.mulf %987, %15 : vector<4x128xf32>
    %1003 = arith.addf %1001, %1002 : vector<4x128xf32>
    %1004 = arith.addf %1003, %35 : vector<4x128xf32>
    %1005 = math.tanh %1004 : vector<4x128xf32>
    %1006 = arith.mulf %981, %17 : vector<4x128xf32>
    %1007 = arith.mulf %983, %19 : vector<4x128xf32>
    %1008 = arith.addf %1006, %1007 : vector<4x128xf32>
    %1009 = arith.mulf %985, %21 : vector<4x128xf32>
    %1010 = arith.addf %1008, %1009 : vector<4x128xf32>
    %1011 = arith.mulf %987, %23 : vector<4x128xf32>
    %1012 = arith.addf %1010, %1011 : vector<4x128xf32>
    %1013 = arith.addf %1012, %37 : vector<4x128xf32>
    %1014 = math.tanh %1013 : vector<4x128xf32>
    %1015 = arith.mulf %981, %25 : vector<4x128xf32>
    %1016 = arith.mulf %983, %27 : vector<4x128xf32>
    %1017 = arith.addf %1015, %1016 : vector<4x128xf32>
    %1018 = arith.mulf %985, %29 : vector<4x128xf32>
    %1019 = arith.addf %1017, %1018 : vector<4x128xf32>
    %1020 = arith.mulf %987, %31 : vector<4x128xf32>
    %1021 = arith.addf %1019, %1020 : vector<4x128xf32>
    %1022 = arith.addf %1021, %39 : vector<4x128xf32>
    %1023 = math.tanh %1022 : vector<4x128xf32>
    %1024 = arith.mulf %934, %996 : vector<4x128xf32>
    %1025 = arith.addf %973, %1024 : vector<4x128xf32>
    %1026 = arith.mulf %934, %1005 : vector<4x128xf32>
    %1027 = arith.addf %975, %1026 : vector<4x128xf32>
    %1028 = arith.mulf %934, %1014 : vector<4x128xf32>
    %1029 = arith.addf %977, %1028 : vector<4x128xf32>
    %1030 = arith.mulf %934, %1023 : vector<4x128xf32>
    %1031 = arith.addf %979, %1030 : vector<4x128xf32>
    %1032 = arith.mulf %930, %996 : vector<4x128xf32>
    %1033 = arith.addf %909, %1032 : vector<4x128xf32>
    %1034 = arith.mulf %930, %1005 : vector<4x128xf32>
    %1035 = arith.addf %911, %1034 : vector<4x128xf32>
    %1036 = arith.mulf %930, %1014 : vector<4x128xf32>
    %1037 = arith.addf %913, %1036 : vector<4x128xf32>
    %1038 = arith.mulf %930, %1023 : vector<4x128xf32>
    %1039 = arith.addf %915, %1038 : vector<4x128xf32>
    %1040 = arith.mulf %1033, %1 : vector<4x128xf32>
    %1041 = arith.mulf %1035, %3 : vector<4x128xf32>
    %1042 = arith.addf %1040, %1041 : vector<4x128xf32>
    %1043 = arith.mulf %1037, %5 : vector<4x128xf32>
    %1044 = arith.addf %1042, %1043 : vector<4x128xf32>
    %1045 = arith.mulf %1039, %7 : vector<4x128xf32>
    %1046 = arith.addf %1044, %1045 : vector<4x128xf32>
    %1047 = arith.addf %1046, %33 : vector<4x128xf32>
    %1048 = math.tanh %1047 : vector<4x128xf32>
    %1049 = arith.mulf %1033, %9 : vector<4x128xf32>
    %1050 = arith.mulf %1035, %11 : vector<4x128xf32>
    %1051 = arith.addf %1049, %1050 : vector<4x128xf32>
    %1052 = arith.mulf %1037, %13 : vector<4x128xf32>
    %1053 = arith.addf %1051, %1052 : vector<4x128xf32>
    %1054 = arith.mulf %1039, %15 : vector<4x128xf32>
    %1055 = arith.addf %1053, %1054 : vector<4x128xf32>
    %1056 = arith.addf %1055, %35 : vector<4x128xf32>
    %1057 = math.tanh %1056 : vector<4x128xf32>
    %1058 = arith.mulf %1033, %17 : vector<4x128xf32>
    %1059 = arith.mulf %1035, %19 : vector<4x128xf32>
    %1060 = arith.addf %1058, %1059 : vector<4x128xf32>
    %1061 = arith.mulf %1037, %21 : vector<4x128xf32>
    %1062 = arith.addf %1060, %1061 : vector<4x128xf32>
    %1063 = arith.mulf %1039, %23 : vector<4x128xf32>
    %1064 = arith.addf %1062, %1063 : vector<4x128xf32>
    %1065 = arith.addf %1064, %37 : vector<4x128xf32>
    %1066 = math.tanh %1065 : vector<4x128xf32>
    %1067 = arith.mulf %1033, %25 : vector<4x128xf32>
    %1068 = arith.mulf %1035, %27 : vector<4x128xf32>
    %1069 = arith.addf %1067, %1068 : vector<4x128xf32>
    %1070 = arith.mulf %1037, %29 : vector<4x128xf32>
    %1071 = arith.addf %1069, %1070 : vector<4x128xf32>
    %1072 = arith.mulf %1039, %31 : vector<4x128xf32>
    %1073 = arith.addf %1071, %1072 : vector<4x128xf32>
    %1074 = arith.addf %1073, %39 : vector<4x128xf32>
    %1075 = math.tanh %1074 : vector<4x128xf32>
    %1076 = arith.mulf %934, %1048 : vector<4x128xf32>
    %1077 = arith.addf %1025, %1076 : vector<4x128xf32>
    %1078 = arith.mulf %934, %1057 : vector<4x128xf32>
    %1079 = arith.addf %1027, %1078 : vector<4x128xf32>
    %1080 = arith.mulf %934, %1066 : vector<4x128xf32>
    %1081 = arith.addf %1029, %1080 : vector<4x128xf32>
    %1082 = arith.mulf %934, %1075 : vector<4x128xf32>
    %1083 = arith.addf %1031, %1082 : vector<4x128xf32>
    %1084 = arith.mulf %935, %1048 : vector<4x128xf32>
    %1085 = arith.addf %909, %1084 : vector<4x128xf32>
    %1086 = arith.mulf %935, %1057 : vector<4x128xf32>
    %1087 = arith.addf %911, %1086 : vector<4x128xf32>
    %1088 = arith.mulf %935, %1066 : vector<4x128xf32>
    %1089 = arith.addf %913, %1088 : vector<4x128xf32>
    %1090 = arith.mulf %935, %1075 : vector<4x128xf32>
    %1091 = arith.addf %915, %1090 : vector<4x128xf32>
    %1092 = arith.mulf %1085, %1 : vector<4x128xf32>
    %1093 = arith.mulf %1087, %3 : vector<4x128xf32>
    %1094 = arith.addf %1092, %1093 : vector<4x128xf32>
    %1095 = arith.mulf %1089, %5 : vector<4x128xf32>
    %1096 = arith.addf %1094, %1095 : vector<4x128xf32>
    %1097 = arith.mulf %1091, %7 : vector<4x128xf32>
    %1098 = arith.addf %1096, %1097 : vector<4x128xf32>
    %1099 = arith.addf %1098, %33 : vector<4x128xf32>
    %1100 = math.tanh %1099 : vector<4x128xf32>
    %1101 = arith.mulf %1085, %9 : vector<4x128xf32>
    %1102 = arith.mulf %1087, %11 : vector<4x128xf32>
    %1103 = arith.addf %1101, %1102 : vector<4x128xf32>
    %1104 = arith.mulf %1089, %13 : vector<4x128xf32>
    %1105 = arith.addf %1103, %1104 : vector<4x128xf32>
    %1106 = arith.mulf %1091, %15 : vector<4x128xf32>
    %1107 = arith.addf %1105, %1106 : vector<4x128xf32>
    %1108 = arith.addf %1107, %35 : vector<4x128xf32>
    %1109 = math.tanh %1108 : vector<4x128xf32>
    %1110 = arith.mulf %1085, %17 : vector<4x128xf32>
    %1111 = arith.mulf %1087, %19 : vector<4x128xf32>
    %1112 = arith.addf %1110, %1111 : vector<4x128xf32>
    %1113 = arith.mulf %1089, %21 : vector<4x128xf32>
    %1114 = arith.addf %1112, %1113 : vector<4x128xf32>
    %1115 = arith.mulf %1091, %23 : vector<4x128xf32>
    %1116 = arith.addf %1114, %1115 : vector<4x128xf32>
    %1117 = arith.addf %1116, %37 : vector<4x128xf32>
    %1118 = math.tanh %1117 : vector<4x128xf32>
    %1119 = arith.mulf %1085, %25 : vector<4x128xf32>
    %1120 = arith.mulf %1087, %27 : vector<4x128xf32>
    %1121 = arith.addf %1119, %1120 : vector<4x128xf32>
    %1122 = arith.mulf %1089, %29 : vector<4x128xf32>
    %1123 = arith.addf %1121, %1122 : vector<4x128xf32>
    %1124 = arith.mulf %1091, %31 : vector<4x128xf32>
    %1125 = arith.addf %1123, %1124 : vector<4x128xf32>
    %1126 = arith.addf %1125, %39 : vector<4x128xf32>
    %1127 = math.tanh %1126 : vector<4x128xf32>
    %1128 = arith.mulf %932, %1100 : vector<4x128xf32>
    %1129 = arith.addf %1077, %1128 : vector<4x128xf32>
    %1130 = arith.mulf %932, %1109 : vector<4x128xf32>
    %1131 = arith.addf %1079, %1130 : vector<4x128xf32>
    %1132 = arith.mulf %932, %1118 : vector<4x128xf32>
    %1133 = arith.addf %1081, %1132 : vector<4x128xf32>
    %1134 = arith.mulf %932, %1127 : vector<4x128xf32>
    %1135 = arith.addf %1083, %1134 : vector<4x128xf32>
    %c4_99 = arith.constant 4 : index
    %c0_100 = arith.constant 0 : index
    %c0_101 = arith.constant 0 : index
    %c0_102 = arith.constant 0 : index
    %1136 = vector.load %arg5[%c4_99, %c0_100, %c0_101, %c0_102] : memref<8x4x4x128xf32, #tpu.memory_space<vmem>>, vector<1x1x4x128xf32>
    %1137 = vector.shape_cast %1136 : vector<1x1x4x128xf32> to vector<4x128xf32>
    %1138 = vector.shape_cast %1129 : vector<4x128xf32> to vector<1x1x4x128xf32>
    tpu.vector_store %arg5[%c4_99, %c0_100, %c0_101, %c0_102], %1138 {strides = array<i32>} : memref<8x4x4x128xf32, #tpu.memory_space<vmem>>, vector<1x1x4x128xf32>,
    %c4_103 = arith.constant 4 : index
    %c1_104 = arith.constant 1 : index
    %c0_105 = arith.constant 0 : index
    %c0_106 = arith.constant 0 : index
    %1139 = vector.load %arg5[%c4_103, %c1_104, %c0_105, %c0_106] : memref<8x4x4x128xf32, #tpu.memory_space<vmem>>, vector<1x1x4x128xf32>
    %1140 = vector.shape_cast %1139 : vector<1x1x4x128xf32> to vector<4x128xf32>
    %1141 = vector.shape_cast %1131 : vector<4x128xf32> to vector<1x1x4x128xf32>
    tpu.vector_store %arg5[%c4_103, %c1_104, %c0_105, %c0_106], %1141 {strides = array<i32>} : memref<8x4x4x128xf32, #tpu.memory_space<vmem>>, vector<1x1x4x128xf32>,
    %c4_107 = arith.constant 4 : index
    %c2_108 = arith.constant 2 : index
    %c0_109 = arith.constant 0 : index
    %c0_110 = arith.constant 0 : index
    %1142 = vector.load %arg5[%c4_107, %c2_108, %c0_109, %c0_110] : memref<8x4x4x128xf32, #tpu.memory_space<vmem>>, vector<1x1x4x128xf32>
    %1143 = vector.shape_cast %1142 : vector<1x1x4x128xf32> to vector<4x128xf32>
    %1144 = vector.shape_cast %1133 : vector<4x128xf32> to vector<1x1x4x128xf32>
    tpu.vector_store %arg5[%c4_107, %c2_108, %c0_109, %c0_110], %1144 {strides = array<i32>} : memref<8x4x4x128xf32, #tpu.memory_space<vmem>>, vector<1x1x4x128xf32>,
    %c4_111 = arith.constant 4 : index
    %c3_112 = arith.constant 3 : index
    %c0_113 = arith.constant 0 : index
    %c0_114 = arith.constant 0 : index
    %1145 = vector.load %arg5[%c4_111, %c3_112, %c0_113, %c0_114] : memref<8x4x4x128xf32, #tpu.memory_space<vmem>>, vector<1x1x4x128xf32>
    %1146 = vector.shape_cast %1145 : vector<1x1x4x128xf32> to vector<4x128xf32>
    %1147 = vector.shape_cast %1135 : vector<4x128xf32> to vector<1x1x4x128xf32>
    tpu.vector_store %arg5[%c4_111, %c3_112, %c0_113, %c0_114], %1147 {strides = array<i32>} : memref<8x4x4x128xf32, #tpu.memory_space<vmem>>, vector<1x1x4x128xf32>,
    %c5_115 = arith.constant 5 : index
    %1148 = memref.load %arg1[%c5_115] : memref<8xf32, #tpu.memory_space<smem>>
    %cst_116 = arith.constant 5.000000e-01 : f32
    %1149 = arith.mulf %cst_116, %1148 : f32
    %1150 = vector.broadcast %1149 : f32 to vector<4x128xf32>
    %cst_117 = arith.constant 0.166666672 : f32
    %1151 = arith.mulf %1148, %cst_117 : f32
    %1152 = vector.broadcast %1151 : f32 to vector<4x128xf32>
    %cst_118 = arith.constant 0.333333343 : f32
    %1153 = arith.mulf %1148, %cst_118 : f32
    %1154 = vector.broadcast %1153 : f32 to vector<4x128xf32>
    %1155 = vector.broadcast %1148 : f32 to vector<4x128xf32>
    %1156 = arith.mulf %1129, %1 : vector<4x128xf32>
    %1157 = arith.mulf %1131, %3 : vector<4x128xf32>
    %1158 = arith.addf %1156, %1157 : vector<4x128xf32>
    %1159 = arith.mulf %1133, %5 : vector<4x128xf32>
    %1160 = arith.addf %1158, %1159 : vector<4x128xf32>
    %1161 = arith.mulf %1135, %7 : vector<4x128xf32>
    %1162 = arith.addf %1160, %1161 : vector<4x128xf32>
    %1163 = arith.addf %1162, %33 : vector<4x128xf32>
    %1164 = math.tanh %1163 : vector<4x128xf32>
    %1165 = arith.mulf %1129, %9 : vector<4x128xf32>
    %1166 = arith.mulf %1131, %11 : vector<4x128xf32>
    %1167 = arith.addf %1165, %1166 : vector<4x128xf32>
    %1168 = arith.mulf %1133, %13 : vector<4x128xf32>
    %1169 = arith.addf %1167, %1168 : vector<4x128xf32>
    %1170 = arith.mulf %1135, %15 : vector<4x128xf32>
    %1171 = arith.addf %1169, %1170 : vector<4x128xf32>
    %1172 = arith.addf %1171, %35 : vector<4x128xf32>
    %1173 = math.tanh %1172 : vector<4x128xf32>
    %1174 = arith.mulf %1129, %17 : vector<4x128xf32>
    %1175 = arith.mulf %1131, %19 : vector<4x128xf32>
    %1176 = arith.addf %1174, %1175 : vector<4x128xf32>
    %1177 = arith.mulf %1133, %21 : vector<4x128xf32>
    %1178 = arith.addf %1176, %1177 : vector<4x128xf32>
    %1179 = arith.mulf %1135, %23 : vector<4x128xf32>
    %1180 = arith.addf %1178, %1179 : vector<4x128xf32>
    %1181 = arith.addf %1180, %37 : vector<4x128xf32>
    %1182 = math.tanh %1181 : vector<4x128xf32>
    %1183 = arith.mulf %1129, %25 : vector<4x128xf32>
    %1184 = arith.mulf %1131, %27 : vector<4x128xf32>
    %1185 = arith.addf %1183, %1184 : vector<4x128xf32>
    %1186 = arith.mulf %1133, %29 : vector<4x128xf32>
    %1187 = arith.addf %1185, %1186 : vector<4x128xf32>
    %1188 = arith.mulf %1135, %31 : vector<4x128xf32>
    %1189 = arith.addf %1187, %1188 : vector<4x128xf32>
    %1190 = arith.addf %1189, %39 : vector<4x128xf32>
    %1191 = math.tanh %1190 : vector<4x128xf32>
    %1192 = arith.mulf %1152, %1164 : vector<4x128xf32>
    %1193 = arith.addf %1129, %1192 : vector<4x128xf32>
    %1194 = arith.mulf %1152, %1173 : vector<4x128xf32>
    %1195 = arith.addf %1131, %1194 : vector<4x128xf32>
    %1196 = arith.mulf %1152, %1182 : vector<4x128xf32>
    %1197 = arith.addf %1133, %1196 : vector<4x128xf32>
    %1198 = arith.mulf %1152, %1191 : vector<4x128xf32>
    %1199 = arith.addf %1135, %1198 : vector<4x128xf32>
    %1200 = arith.mulf %1150, %1164 : vector<4x128xf32>
    %1201 = arith.addf %1129, %1200 : vector<4x128xf32>
    %1202 = arith.mulf %1150, %1173 : vector<4x128xf32>
    %1203 = arith.addf %1131, %1202 : vector<4x128xf32>
    %1204 = arith.mulf %1150, %1182 : vector<4x128xf32>
    %1205 = arith.addf %1133, %1204 : vector<4x128xf32>
    %1206 = arith.mulf %1150, %1191 : vector<4x128xf32>
    %1207 = arith.addf %1135, %1206 : vector<4x128xf32>
    %1208 = arith.mulf %1201, %1 : vector<4x128xf32>
    %1209 = arith.mulf %1203, %3 : vector<4x128xf32>
    %1210 = arith.addf %1208, %1209 : vector<4x128xf32>
    %1211 = arith.mulf %1205, %5 : vector<4x128xf32>
    %1212 = arith.addf %1210, %1211 : vector<4x128xf32>
    %1213 = arith.mulf %1207, %7 : vector<4x128xf32>
    %1214 = arith.addf %1212, %1213 : vector<4x128xf32>
    %1215 = arith.addf %1214, %33 : vector<4x128xf32>
    %1216 = math.tanh %1215 : vector<4x128xf32>
    %1217 = arith.mulf %1201, %9 : vector<4x128xf32>
    %1218 = arith.mulf %1203, %11 : vector<4x128xf32>
    %1219 = arith.addf %1217, %1218 : vector<4x128xf32>
    %1220 = arith.mulf %1205, %13 : vector<4x128xf32>
    %1221 = arith.addf %1219, %1220 : vector<4x128xf32>
    %1222 = arith.mulf %1207, %15 : vector<4x128xf32>
    %1223 = arith.addf %1221, %1222 : vector<4x128xf32>
    %1224 = arith.addf %1223, %35 : vector<4x128xf32>
    %1225 = math.tanh %1224 : vector<4x128xf32>
    %1226 = arith.mulf %1201, %17 : vector<4x128xf32>
    %1227 = arith.mulf %1203, %19 : vector<4x128xf32>
    %1228 = arith.addf %1226, %1227 : vector<4x128xf32>
    %1229 = arith.mulf %1205, %21 : vector<4x128xf32>
    %1230 = arith.addf %1228, %1229 : vector<4x128xf32>
    %1231 = arith.mulf %1207, %23 : vector<4x128xf32>
    %1232 = arith.addf %1230, %1231 : vector<4x128xf32>
    %1233 = arith.addf %1232, %37 : vector<4x128xf32>
    %1234 = math.tanh %1233 : vector<4x128xf32>
    %1235 = arith.mulf %1201, %25 : vector<4x128xf32>
    %1236 = arith.mulf %1203, %27 : vector<4x128xf32>
    %1237 = arith.addf %1235, %1236 : vector<4x128xf32>
    %1238 = arith.mulf %1205, %29 : vector<4x128xf32>
    %1239 = arith.addf %1237, %1238 : vector<4x128xf32>
    %1240 = arith.mulf %1207, %31 : vector<4x128xf32>
    %1241 = arith.addf %1239, %1240 : vector<4x128xf32>
    %1242 = arith.addf %1241, %39 : vector<4x128xf32>
    %1243 = math.tanh %1242 : vector<4x128xf32>
    %1244 = arith.mulf %1154, %1216 : vector<4x128xf32>
    %1245 = arith.addf %1193, %1244 : vector<4x128xf32>
    %1246 = arith.mulf %1154, %1225 : vector<4x128xf32>
    %1247 = arith.addf %1195, %1246 : vector<4x128xf32>
    %1248 = arith.mulf %1154, %1234 : vector<4x128xf32>
    %1249 = arith.addf %1197, %1248 : vector<4x128xf32>
    %1250 = arith.mulf %1154, %1243 : vector<4x128xf32>
    %1251 = arith.addf %1199, %1250 : vector<4x128xf32>
    %1252 = arith.mulf %1150, %1216 : vector<4x128xf32>
    %1253 = arith.addf %1129, %1252 : vector<4x128xf32>
    %1254 = arith.mulf %1150, %1225 : vector<4x128xf32>
    %1255 = arith.addf %1131, %1254 : vector<4x128xf32>
    %1256 = arith.mulf %1150, %1234 : vector<4x128xf32>
    %1257 = arith.addf %1133, %1256 : vector<4x128xf32>
    %1258 = arith.mulf %1150, %1243 : vector<4x128xf32>
    %1259 = arith.addf %1135, %1258 : vector<4x128xf32>
    %1260 = arith.mulf %1253, %1 : vector<4x128xf32>
    %1261 = arith.mulf %1255, %3 : vector<4x128xf32>
    %1262 = arith.addf %1260, %1261 : vector<4x128xf32>
    %1263 = arith.mulf %1257, %5 : vector<4x128xf32>
    %1264 = arith.addf %1262, %1263 : vector<4x128xf32>
    %1265 = arith.mulf %1259, %7 : vector<4x128xf32>
    %1266 = arith.addf %1264, %1265 : vector<4x128xf32>
    %1267 = arith.addf %1266, %33 : vector<4x128xf32>
    %1268 = math.tanh %1267 : vector<4x128xf32>
    %1269 = arith.mulf %1253, %9 : vector<4x128xf32>
    %1270 = arith.mulf %1255, %11 : vector<4x128xf32>
    %1271 = arith.addf %1269, %1270 : vector<4x128xf32>
    %1272 = arith.mulf %1257, %13 : vector<4x128xf32>
    %1273 = arith.addf %1271, %1272 : vector<4x128xf32>
    %1274 = arith.mulf %1259, %15 : vector<4x128xf32>
    %1275 = arith.addf %1273, %1274 : vector<4x128xf32>
    %1276 = arith.addf %1275, %35 : vector<4x128xf32>
    %1277 = math.tanh %1276 : vector<4x128xf32>
    %1278 = arith.mulf %1253, %17 : vector<4x128xf32>
    %1279 = arith.mulf %1255, %19 : vector<4x128xf32>
    %1280 = arith.addf %1278, %1279 : vector<4x128xf32>
    %1281 = arith.mulf %1257, %21 : vector<4x128xf32>
    %1282 = arith.addf %1280, %1281 : vector<4x128xf32>
    %1283 = arith.mulf %1259, %23 : vector<4x128xf32>
    %1284 = arith.addf %1282, %1283 : vector<4x128xf32>
    %1285 = arith.addf %1284, %37 : vector<4x128xf32>
    %1286 = math.tanh %1285 : vector<4x128xf32>
    %1287 = arith.mulf %1253, %25 : vector<4x128xf32>
    %1288 = arith.mulf %1255, %27 : vector<4x128xf32>
    %1289 = arith.addf %1287, %1288 : vector<4x128xf32>
    %1290 = arith.mulf %1257, %29 : vector<4x128xf32>
    %1291 = arith.addf %1289, %1290 : vector<4x128xf32>
    %1292 = arith.mulf %1259, %31 : vector<4x128xf32>
    %1293 = arith.addf %1291, %1292 : vector<4x128xf32>
    %1294 = arith.addf %1293, %39 : vector<4x128xf32>
    %1295 = math.tanh %1294 : vector<4x128xf32>
    %1296 = arith.mulf %1154, %1268 : vector<4x128xf32>
    %1297 = arith.addf %1245, %1296 : vector<4x128xf32>
    %1298 = arith.mulf %1154, %1277 : vector<4x128xf32>
    %1299 = arith.addf %1247, %1298 : vector<4x128xf32>
    %1300 = arith.mulf %1154, %1286 : vector<4x128xf32>
    %1301 = arith.addf %1249, %1300 : vector<4x128xf32>
    %1302 = arith.mulf %1154, %1295 : vector<4x128xf32>
    %1303 = arith.addf %1251, %1302 : vector<4x128xf32>
    %1304 = arith.mulf %1155, %1268 : vector<4x128xf32>
    %1305 = arith.addf %1129, %1304 : vector<4x128xf32>
    %1306 = arith.mulf %1155, %1277 : vector<4x128xf32>
    %1307 = arith.addf %1131, %1306 : vector<4x128xf32>
    %1308 = arith.mulf %1155, %1286 : vector<4x128xf32>
    %1309 = arith.addf %1133, %1308 : vector<4x128xf32>
    %1310 = arith.mulf %1155, %1295 : vector<4x128xf32>
    %1311 = arith.addf %1135, %1310 : vector<4x128xf32>
    %1312 = arith.mulf %1305, %1 : vector<4x128xf32>
    %1313 = arith.mulf %1307, %3 : vector<4x128xf32>
    %1314 = arith.addf %1312, %1313 : vector<4x128xf32>
    %1315 = arith.mulf %1309, %5 : vector<4x128xf32>
    %1316 = arith.addf %1314, %1315 : vector<4x128xf32>
    %1317 = arith.mulf %1311, %7 : vector<4x128xf32>
    %1318 = arith.addf %1316, %1317 : vector<4x128xf32>
    %1319 = arith.addf %1318, %33 : vector<4x128xf32>
    %1320 = math.tanh %1319 : vector<4x128xf32>
    %1321 = arith.mulf %1305, %9 : vector<4x128xf32>
    %1322 = arith.mulf %1307, %11 : vector<4x128xf32>
    %1323 = arith.addf %1321, %1322 : vector<4x128xf32>
    %1324 = arith.mulf %1309, %13 : vector<4x128xf32>
    %1325 = arith.addf %1323, %1324 : vector<4x128xf32>
    %1326 = arith.mulf %1311, %15 : vector<4x128xf32>
    %1327 = arith.addf %1325, %1326 : vector<4x128xf32>
    %1328 = arith.addf %1327, %35 : vector<4x128xf32>
    %1329 = math.tanh %1328 : vector<4x128xf32>
    %1330 = arith.mulf %1305, %17 : vector<4x128xf32>
    %1331 = arith.mulf %1307, %19 : vector<4x128xf32>
    %1332 = arith.addf %1330, %1331 : vector<4x128xf32>
    %1333 = arith.mulf %1309, %21 : vector<4x128xf32>
    %1334 = arith.addf %1332, %1333 : vector<4x128xf32>
    %1335 = arith.mulf %1311, %23 : vector<4x128xf32>
    %1336 = arith.addf %1334, %1335 : vector<4x128xf32>
    %1337 = arith.addf %1336, %37 : vector<4x128xf32>
    %1338 = math.tanh %1337 : vector<4x128xf32>
    %1339 = arith.mulf %1305, %25 : vector<4x128xf32>
    %1340 = arith.mulf %1307, %27 : vector<4x128xf32>
    %1341 = arith.addf %1339, %1340 : vector<4x128xf32>
    %1342 = arith.mulf %1309, %29 : vector<4x128xf32>
    %1343 = arith.addf %1341, %1342 : vector<4x128xf32>
    %1344 = arith.mulf %1311, %31 : vector<4x128xf32>
    %1345 = arith.addf %1343, %1344 : vector<4x128xf32>
    %1346 = arith.addf %1345, %39 : vector<4x128xf32>
    %1347 = math.tanh %1346 : vector<4x128xf32>
    %1348 = arith.mulf %1152, %1320 : vector<4x128xf32>
    %1349 = arith.addf %1297, %1348 : vector<4x128xf32>
    %1350 = arith.mulf %1152, %1329 : vector<4x128xf32>
    %1351 = arith.addf %1299, %1350 : vector<4x128xf32>
    %1352 = arith.mulf %1152, %1338 : vector<4x128xf32>
    %1353 = arith.addf %1301, %1352 : vector<4x128xf32>
    %1354 = arith.mulf %1152, %1347 : vector<4x128xf32>
    %1355 = arith.addf %1303, %1354 : vector<4x128xf32>
    %c5_119 = arith.constant 5 : index
    %c0_120 = arith.constant 0 : index
    %c0_121 = arith.constant 0 : index
    %c0_122 = arith.constant 0 : index
    %1356 = vector.load %arg5[%c5_119, %c0_120, %c0_121, %c0_122] : memref<8x4x4x128xf32, #tpu.memory_space<vmem>>, vector<1x1x4x128xf32>
    %1357 = vector.shape_cast %1356 : vector<1x1x4x128xf32> to vector<4x128xf32>
    %1358 = vector.shape_cast %1349 : vector<4x128xf32> to vector<1x1x4x128xf32>
    tpu.vector_store %arg5[%c5_119, %c0_120, %c0_121, %c0_122], %1358 {strides = array<i32>} : memref<8x4x4x128xf32, #tpu.memory_space<vmem>>, vector<1x1x4x128xf32>,
    %c5_123 = arith.constant 5 : index
    %c1_124 = arith.constant 1 : index
    %c0_125 = arith.constant 0 : index
    %c0_126 = arith.constant 0 : index
    %1359 = vector.load %arg5[%c5_123, %c1_124, %c0_125, %c0_126] : memref<8x4x4x128xf32, #tpu.memory_space<vmem>>, vector<1x1x4x128xf32>
    %1360 = vector.shape_cast %1359 : vector<1x1x4x128xf32> to vector<4x128xf32>
    %1361 = vector.shape_cast %1351 : vector<4x128xf32> to vector<1x1x4x128xf32>
    tpu.vector_store %arg5[%c5_123, %c1_124, %c0_125, %c0_126], %1361 {strides = array<i32>} : memref<8x4x4x128xf32, #tpu.memory_space<vmem>>, vector<1x1x4x128xf32>,
    %c5_127 = arith.constant 5 : index
    %c2_128 = arith.constant 2 : index
    %c0_129 = arith.constant 0 : index
    %c0_130 = arith.constant 0 : index
    %1362 = vector.load %arg5[%c5_127, %c2_128, %c0_129, %c0_130] : memref<8x4x4x128xf32, #tpu.memory_space<vmem>>, vector<1x1x4x128xf32>
    %1363 = vector.shape_cast %1362 : vector<1x1x4x128xf32> to vector<4x128xf32>
    %1364 = vector.shape_cast %1353 : vector<4x128xf32> to vector<1x1x4x128xf32>
    tpu.vector_store %arg5[%c5_127, %c2_128, %c0_129, %c0_130], %1364 {strides = array<i32>} : memref<8x4x4x128xf32, #tpu.memory_space<vmem>>, vector<1x1x4x128xf32>,
    %c5_131 = arith.constant 5 : index
    %c3_132 = arith.constant 3 : index
    %c0_133 = arith.constant 0 : index
    %c0_134 = arith.constant 0 : index
    %1365 = vector.load %arg5[%c5_131, %c3_132, %c0_133, %c0_134] : memref<8x4x4x128xf32, #tpu.memory_space<vmem>>, vector<1x1x4x128xf32>
    %1366 = vector.shape_cast %1365 : vector<1x1x4x128xf32> to vector<4x128xf32>
    %1367 = vector.shape_cast %1355 : vector<4x128xf32> to vector<1x1x4x128xf32>
    tpu.vector_store %arg5[%c5_131, %c3_132, %c0_133, %c0_134], %1367 {strides = array<i32>} : memref<8x4x4x128xf32, #tpu.memory_space<vmem>>, vector<1x1x4x128xf32>,
    %c6_135 = arith.constant 6 : index
    %1368 = memref.load %arg1[%c6_135] : memref<8xf32, #tpu.memory_space<smem>>
    %cst_136 = arith.constant 5.000000e-01 : f32
    %1369 = arith.mulf %cst_136, %1368 : f32
    %1370 = vector.broadcast %1369 : f32 to vector<4x128xf32>
    %cst_137 = arith.constant 0.166666672 : f32
    %1371 = arith.mulf %1368, %cst_137 : f32
    %1372 = vector.broadcast %1371 : f32 to vector<4x128xf32>
    %cst_138 = arith.constant 0.333333343 : f32
    %1373 = arith.mulf %1368, %cst_138 : f32
    %1374 = vector.broadcast %1373 : f32 to vector<4x128xf32>
    %1375 = vector.broadcast %1368 : f32 to vector<4x128xf32>
    %1376 = arith.mulf %1349, %1 : vector<4x128xf32>
    %1377 = arith.mulf %1351, %3 : vector<4x128xf32>
    %1378 = arith.addf %1376, %1377 : vector<4x128xf32>
    %1379 = arith.mulf %1353, %5 : vector<4x128xf32>
    %1380 = arith.addf %1378, %1379 : vector<4x128xf32>
    %1381 = arith.mulf %1355, %7 : vector<4x128xf32>
    %1382 = arith.addf %1380, %1381 : vector<4x128xf32>
    %1383 = arith.addf %1382, %33 : vector<4x128xf32>
    %1384 = math.tanh %1383 : vector<4x128xf32>
    %1385 = arith.mulf %1349, %9 : vector<4x128xf32>
    %1386 = arith.mulf %1351, %11 : vector<4x128xf32>
    %1387 = arith.addf %1385, %1386 : vector<4x128xf32>
    %1388 = arith.mulf %1353, %13 : vector<4x128xf32>
    %1389 = arith.addf %1387, %1388 : vector<4x128xf32>
    %1390 = arith.mulf %1355, %15 : vector<4x128xf32>
    %1391 = arith.addf %1389, %1390 : vector<4x128xf32>
    %1392 = arith.addf %1391, %35 : vector<4x128xf32>
    %1393 = math.tanh %1392 : vector<4x128xf32>
    %1394 = arith.mulf %1349, %17 : vector<4x128xf32>
    %1395 = arith.mulf %1351, %19 : vector<4x128xf32>
    %1396 = arith.addf %1394, %1395 : vector<4x128xf32>
    %1397 = arith.mulf %1353, %21 : vector<4x128xf32>
    %1398 = arith.addf %1396, %1397 : vector<4x128xf32>
    %1399 = arith.mulf %1355, %23 : vector<4x128xf32>
    %1400 = arith.addf %1398, %1399 : vector<4x128xf32>
    %1401 = arith.addf %1400, %37 : vector<4x128xf32>
    %1402 = math.tanh %1401 : vector<4x128xf32>
    %1403 = arith.mulf %1349, %25 : vector<4x128xf32>
    %1404 = arith.mulf %1351, %27 : vector<4x128xf32>
    %1405 = arith.addf %1403, %1404 : vector<4x128xf32>
    %1406 = arith.mulf %1353, %29 : vector<4x128xf32>
    %1407 = arith.addf %1405, %1406 : vector<4x128xf32>
    %1408 = arith.mulf %1355, %31 : vector<4x128xf32>
    %1409 = arith.addf %1407, %1408 : vector<4x128xf32>
    %1410 = arith.addf %1409, %39 : vector<4x128xf32>
    %1411 = math.tanh %1410 : vector<4x128xf32>
    %1412 = arith.mulf %1372, %1384 : vector<4x128xf32>
    %1413 = arith.addf %1349, %1412 : vector<4x128xf32>
    %1414 = arith.mulf %1372, %1393 : vector<4x128xf32>
    %1415 = arith.addf %1351, %1414 : vector<4x128xf32>
    %1416 = arith.mulf %1372, %1402 : vector<4x128xf32>
    %1417 = arith.addf %1353, %1416 : vector<4x128xf32>
    %1418 = arith.mulf %1372, %1411 : vector<4x128xf32>
    %1419 = arith.addf %1355, %1418 : vector<4x128xf32>
    %1420 = arith.mulf %1370, %1384 : vector<4x128xf32>
    %1421 = arith.addf %1349, %1420 : vector<4x128xf32>
    %1422 = arith.mulf %1370, %1393 : vector<4x128xf32>
    %1423 = arith.addf %1351, %1422 : vector<4x128xf32>
    %1424 = arith.mulf %1370, %1402 : vector<4x128xf32>
    %1425 = arith.addf %1353, %1424 : vector<4x128xf32>
    %1426 = arith.mulf %1370, %1411 : vector<4x128xf32>
    %1427 = arith.addf %1355, %1426 : vector<4x128xf32>
    %1428 = arith.mulf %1421, %1 : vector<4x128xf32>
    %1429 = arith.mulf %1423, %3 : vector<4x128xf32>
    %1430 = arith.addf %1428, %1429 : vector<4x128xf32>
    %1431 = arith.mulf %1425, %5 : vector<4x128xf32>
    %1432 = arith.addf %1430, %1431 : vector<4x128xf32>
    %1433 = arith.mulf %1427, %7 : vector<4x128xf32>
    %1434 = arith.addf %1432, %1433 : vector<4x128xf32>
    %1435 = arith.addf %1434, %33 : vector<4x128xf32>
    %1436 = math.tanh %1435 : vector<4x128xf32>
    %1437 = arith.mulf %1421, %9 : vector<4x128xf32>
    %1438 = arith.mulf %1423, %11 : vector<4x128xf32>
    %1439 = arith.addf %1437, %1438 : vector<4x128xf32>
    %1440 = arith.mulf %1425, %13 : vector<4x128xf32>
    %1441 = arith.addf %1439, %1440 : vector<4x128xf32>
    %1442 = arith.mulf %1427, %15 : vector<4x128xf32>
    %1443 = arith.addf %1441, %1442 : vector<4x128xf32>
    %1444 = arith.addf %1443, %35 : vector<4x128xf32>
    %1445 = math.tanh %1444 : vector<4x128xf32>
    %1446 = arith.mulf %1421, %17 : vector<4x128xf32>
    %1447 = arith.mulf %1423, %19 : vector<4x128xf32>
    %1448 = arith.addf %1446, %1447 : vector<4x128xf32>
    %1449 = arith.mulf %1425, %21 : vector<4x128xf32>
    %1450 = arith.addf %1448, %1449 : vector<4x128xf32>
    %1451 = arith.mulf %1427, %23 : vector<4x128xf32>
    %1452 = arith.addf %1450, %1451 : vector<4x128xf32>
    %1453 = arith.addf %1452, %37 : vector<4x128xf32>
    %1454 = math.tanh %1453 : vector<4x128xf32>
    %1455 = arith.mulf %1421, %25 : vector<4x128xf32>
    %1456 = arith.mulf %1423, %27 : vector<4x128xf32>
    %1457 = arith.addf %1455, %1456 : vector<4x128xf32>
    %1458 = arith.mulf %1425, %29 : vector<4x128xf32>
    %1459 = arith.addf %1457, %1458 : vector<4x128xf32>
    %1460 = arith.mulf %1427, %31 : vector<4x128xf32>
    %1461 = arith.addf %1459, %1460 : vector<4x128xf32>
    %1462 = arith.addf %1461, %39 : vector<4x128xf32>
    %1463 = math.tanh %1462 : vector<4x128xf32>
    %1464 = arith.mulf %1374, %1436 : vector<4x128xf32>
    %1465 = arith.addf %1413, %1464 : vector<4x128xf32>
    %1466 = arith.mulf %1374, %1445 : vector<4x128xf32>
    %1467 = arith.addf %1415, %1466 : vector<4x128xf32>
    %1468 = arith.mulf %1374, %1454 : vector<4x128xf32>
    %1469 = arith.addf %1417, %1468 : vector<4x128xf32>
    %1470 = arith.mulf %1374, %1463 : vector<4x128xf32>
    %1471 = arith.addf %1419, %1470 : vector<4x128xf32>
    %1472 = arith.mulf %1370, %1436 : vector<4x128xf32>
    %1473 = arith.addf %1349, %1472 : vector<4x128xf32>
    %1474 = arith.mulf %1370, %1445 : vector<4x128xf32>
    %1475 = arith.addf %1351, %1474 : vector<4x128xf32>
    %1476 = arith.mulf %1370, %1454 : vector<4x128xf32>
    %1477 = arith.addf %1353, %1476 : vector<4x128xf32>
    %1478 = arith.mulf %1370, %1463 : vector<4x128xf32>
    %1479 = arith.addf %1355, %1478 : vector<4x128xf32>
    %1480 = arith.mulf %1473, %1 : vector<4x128xf32>
    %1481 = arith.mulf %1475, %3 : vector<4x128xf32>
    %1482 = arith.addf %1480, %1481 : vector<4x128xf32>
    %1483 = arith.mulf %1477, %5 : vector<4x128xf32>
    %1484 = arith.addf %1482, %1483 : vector<4x128xf32>
    %1485 = arith.mulf %1479, %7 : vector<4x128xf32>
    %1486 = arith.addf %1484, %1485 : vector<4x128xf32>
    %1487 = arith.addf %1486, %33 : vector<4x128xf32>
    %1488 = math.tanh %1487 : vector<4x128xf32>
    %1489 = arith.mulf %1473, %9 : vector<4x128xf32>
    %1490 = arith.mulf %1475, %11 : vector<4x128xf32>
    %1491 = arith.addf %1489, %1490 : vector<4x128xf32>
    %1492 = arith.mulf %1477, %13 : vector<4x128xf32>
    %1493 = arith.addf %1491, %1492 : vector<4x128xf32>
    %1494 = arith.mulf %1479, %15 : vector<4x128xf32>
    %1495 = arith.addf %1493, %1494 : vector<4x128xf32>
    %1496 = arith.addf %1495, %35 : vector<4x128xf32>
    %1497 = math.tanh %1496 : vector<4x128xf32>
    %1498 = arith.mulf %1473, %17 : vector<4x128xf32>
    %1499 = arith.mulf %1475, %19 : vector<4x128xf32>
    %1500 = arith.addf %1498, %1499 : vector<4x128xf32>
    %1501 = arith.mulf %1477, %21 : vector<4x128xf32>
    %1502 = arith.addf %1500, %1501 : vector<4x128xf32>
    %1503 = arith.mulf %1479, %23 : vector<4x128xf32>
    %1504 = arith.addf %1502, %1503 : vector<4x128xf32>
    %1505 = arith.addf %1504, %37 : vector<4x128xf32>
    %1506 = math.tanh %1505 : vector<4x128xf32>
    %1507 = arith.mulf %1473, %25 : vector<4x128xf32>
    %1508 = arith.mulf %1475, %27 : vector<4x128xf32>
    %1509 = arith.addf %1507, %1508 : vector<4x128xf32>
    %1510 = arith.mulf %1477, %29 : vector<4x128xf32>
    %1511 = arith.addf %1509, %1510 : vector<4x128xf32>
    %1512 = arith.mulf %1479, %31 : vector<4x128xf32>
    %1513 = arith.addf %1511, %1512 : vector<4x128xf32>
    %1514 = arith.addf %1513, %39 : vector<4x128xf32>
    %1515 = math.tanh %1514 : vector<4x128xf32>
    %1516 = arith.mulf %1374, %1488 : vector<4x128xf32>
    %1517 = arith.addf %1465, %1516 : vector<4x128xf32>
    %1518 = arith.mulf %1374, %1497 : vector<4x128xf32>
    %1519 = arith.addf %1467, %1518 : vector<4x128xf32>
    %1520 = arith.mulf %1374, %1506 : vector<4x128xf32>
    %1521 = arith.addf %1469, %1520 : vector<4x128xf32>
    %1522 = arith.mulf %1374, %1515 : vector<4x128xf32>
    %1523 = arith.addf %1471, %1522 : vector<4x128xf32>
    %1524 = arith.mulf %1375, %1488 : vector<4x128xf32>
    %1525 = arith.addf %1349, %1524 : vector<4x128xf32>
    %1526 = arith.mulf %1375, %1497 : vector<4x128xf32>
    %1527 = arith.addf %1351, %1526 : vector<4x128xf32>
    %1528 = arith.mulf %1375, %1506 : vector<4x128xf32>
    %1529 = arith.addf %1353, %1528 : vector<4x128xf32>
    %1530 = arith.mulf %1375, %1515 : vector<4x128xf32>
    %1531 = arith.addf %1355, %1530 : vector<4x128xf32>
    %1532 = arith.mulf %1525, %1 : vector<4x128xf32>
    %1533 = arith.mulf %1527, %3 : vector<4x128xf32>
    %1534 = arith.addf %1532, %1533 : vector<4x128xf32>
    %1535 = arith.mulf %1529, %5 : vector<4x128xf32>
    %1536 = arith.addf %1534, %1535 : vector<4x128xf32>
    %1537 = arith.mulf %1531, %7 : vector<4x128xf32>
    %1538 = arith.addf %1536, %1537 : vector<4x128xf32>
    %1539 = arith.addf %1538, %33 : vector<4x128xf32>
    %1540 = math.tanh %1539 : vector<4x128xf32>
    %1541 = arith.mulf %1525, %9 : vector<4x128xf32>
    %1542 = arith.mulf %1527, %11 : vector<4x128xf32>
    %1543 = arith.addf %1541, %1542 : vector<4x128xf32>
    %1544 = arith.mulf %1529, %13 : vector<4x128xf32>
    %1545 = arith.addf %1543, %1544 : vector<4x128xf32>
    %1546 = arith.mulf %1531, %15 : vector<4x128xf32>
    %1547 = arith.addf %1545, %1546 : vector<4x128xf32>
    %1548 = arith.addf %1547, %35 : vector<4x128xf32>
    %1549 = math.tanh %1548 : vector<4x128xf32>
    %1550 = arith.mulf %1525, %17 : vector<4x128xf32>
    %1551 = arith.mulf %1527, %19 : vector<4x128xf32>
    %1552 = arith.addf %1550, %1551 : vector<4x128xf32>
    %1553 = arith.mulf %1529, %21 : vector<4x128xf32>
    %1554 = arith.addf %1552, %1553 : vector<4x128xf32>
    %1555 = arith.mulf %1531, %23 : vector<4x128xf32>
    %1556 = arith.addf %1554, %1555 : vector<4x128xf32>
    %1557 = arith.addf %1556, %37 : vector<4x128xf32>
    %1558 = math.tanh %1557 : vector<4x128xf32>
    %1559 = arith.mulf %1525, %25 : vector<4x128xf32>
    %1560 = arith.mulf %1527, %27 : vector<4x128xf32>
    %1561 = arith.addf %1559, %1560 : vector<4x128xf32>
    %1562 = arith.mulf %1529, %29 : vector<4x128xf32>
    %1563 = arith.addf %1561, %1562 : vector<4x128xf32>
    %1564 = arith.mulf %1531, %31 : vector<4x128xf32>
    %1565 = arith.addf %1563, %1564 : vector<4x128xf32>
    %1566 = arith.addf %1565, %39 : vector<4x128xf32>
    %1567 = math.tanh %1566 : vector<4x128xf32>
    %1568 = arith.mulf %1372, %1540 : vector<4x128xf32>
    %1569 = arith.addf %1517, %1568 : vector<4x128xf32>
    %1570 = arith.mulf %1372, %1549 : vector<4x128xf32>
    %1571 = arith.addf %1519, %1570 : vector<4x128xf32>
    %1572 = arith.mulf %1372, %1558 : vector<4x128xf32>
    %1573 = arith.addf %1521, %1572 : vector<4x128xf32>
    %1574 = arith.mulf %1372, %1567 : vector<4x128xf32>
    %1575 = arith.addf %1523, %1574 : vector<4x128xf32>
    %c6_139 = arith.constant 6 : index
    %c0_140 = arith.constant 0 : index
    %c0_141 = arith.constant 0 : index
    %c0_142 = arith.constant 0 : index
    %1576 = vector.load %arg5[%c6_139, %c0_140, %c0_141, %c0_142] : memref<8x4x4x128xf32, #tpu.memory_space<vmem>>, vector<1x1x4x128xf32>
    %1577 = vector.shape_cast %1576 : vector<1x1x4x128xf32> to vector<4x128xf32>
    %1578 = vector.shape_cast %1569 : vector<4x128xf32> to vector<1x1x4x128xf32>
    tpu.vector_store %arg5[%c6_139, %c0_140, %c0_141, %c0_142], %1578 {strides = array<i32>} : memref<8x4x4x128xf32, #tpu.memory_space<vmem>>, vector<1x1x4x128xf32>,
    %c6_143 = arith.constant 6 : index
    %c1_144 = arith.constant 1 : index
    %c0_145 = arith.constant 0 : index
    %c0_146 = arith.constant 0 : index
    %1579 = vector.load %arg5[%c6_143, %c1_144, %c0_145, %c0_146] : memref<8x4x4x128xf32, #tpu.memory_space<vmem>>, vector<1x1x4x128xf32>
    %1580 = vector.shape_cast %1579 : vector<1x1x4x128xf32> to vector<4x128xf32>
    %1581 = vector.shape_cast %1571 : vector<4x128xf32> to vector<1x1x4x128xf32>
    tpu.vector_store %arg5[%c6_143, %c1_144, %c0_145, %c0_146], %1581 {strides = array<i32>} : memref<8x4x4x128xf32, #tpu.memory_space<vmem>>, vector<1x1x4x128xf32>,
    %c6_147 = arith.constant 6 : index
    %c2_148 = arith.constant 2 : index
    %c0_149 = arith.constant 0 : index
    %c0_150 = arith.constant 0 : index
    %1582 = vector.load %arg5[%c6_147, %c2_148, %c0_149, %c0_150] : memref<8x4x4x128xf32, #tpu.memory_space<vmem>>, vector<1x1x4x128xf32>
    %1583 = vector.shape_cast %1582 : vector<1x1x4x128xf32> to vector<4x128xf32>
    %1584 = vector.shape_cast %1573 : vector<4x128xf32> to vector<1x1x4x128xf32>
    tpu.vector_store %arg5[%c6_147, %c2_148, %c0_149, %c0_150], %1584 {strides = array<i32>} : memref<8x4x4x128xf32, #tpu.memory_space<vmem>>, vector<1x1x4x128xf32>,
    %c6_151 = arith.constant 6 : index
    %c3_152 = arith.constant 3 : index
    %c0_153 = arith.constant 0 : index
    %c0_154 = arith.constant 0 : index
    %1585 = vector.load %arg5[%c6_151, %c3_152, %c0_153, %c0_154] : memref<8x4x4x128xf32, #tpu.memory_space<vmem>>, vector<1x1x4x128xf32>
    %1586 = vector.shape_cast %1585 : vector<1x1x4x128xf32> to vector<4x128xf32>
    %1587 = vector.shape_cast %1575 : vector<4x128xf32> to vector<1x1x4x128xf32>
    tpu.vector_store %arg5[%c6_151, %c3_152, %c0_153, %c0_154], %1587 {strides = array<i32>} : memref<8x4x4x128xf32, #tpu.memory_space<vmem>>, vector<1x1x4x128xf32>,
    %c7_155 = arith.constant 7 : index
    %1588 = memref.load %arg1[%c7_155] : memref<8xf32, #tpu.memory_space<smem>>
    %cst_156 = arith.constant 5.000000e-01 : f32
    %1589 = arith.mulf %cst_156, %1588 : f32
    %1590 = vector.broadcast %1589 : f32 to vector<4x128xf32>
    %cst_157 = arith.constant 0.166666672 : f32
    %1591 = arith.mulf %1588, %cst_157 : f32
    %1592 = vector.broadcast %1591 : f32 to vector<4x128xf32>
    %cst_158 = arith.constant 0.333333343 : f32
    %1593 = arith.mulf %1588, %cst_158 : f32
    %1594 = vector.broadcast %1593 : f32 to vector<4x128xf32>
    %1595 = vector.broadcast %1588 : f32 to vector<4x128xf32>
    %1596 = arith.mulf %1569, %1 : vector<4x128xf32>
    %1597 = arith.mulf %1571, %3 : vector<4x128xf32>
    %1598 = arith.addf %1596, %1597 : vector<4x128xf32>
    %1599 = arith.mulf %1573, %5 : vector<4x128xf32>
    %1600 = arith.addf %1598, %1599 : vector<4x128xf32>
    %1601 = arith.mulf %1575, %7 : vector<4x128xf32>
    %1602 = arith.addf %1600, %1601 : vector<4x128xf32>
    %1603 = arith.addf %1602, %33 : vector<4x128xf32>
    %1604 = math.tanh %1603 : vector<4x128xf32>
    %1605 = arith.mulf %1569, %9 : vector<4x128xf32>
    %1606 = arith.mulf %1571, %11 : vector<4x128xf32>
    %1607 = arith.addf %1605, %1606 : vector<4x128xf32>
    %1608 = arith.mulf %1573, %13 : vector<4x128xf32>
    %1609 = arith.addf %1607, %1608 : vector<4x128xf32>
    %1610 = arith.mulf %1575, %15 : vector<4x128xf32>
    %1611 = arith.addf %1609, %1610 : vector<4x128xf32>
    %1612 = arith.addf %1611, %35 : vector<4x128xf32>
    %1613 = math.tanh %1612 : vector<4x128xf32>
    %1614 = arith.mulf %1569, %17 : vector<4x128xf32>
    %1615 = arith.mulf %1571, %19 : vector<4x128xf32>
    %1616 = arith.addf %1614, %1615 : vector<4x128xf32>
    %1617 = arith.mulf %1573, %21 : vector<4x128xf32>
    %1618 = arith.addf %1616, %1617 : vector<4x128xf32>
    %1619 = arith.mulf %1575, %23 : vector<4x128xf32>
    %1620 = arith.addf %1618, %1619 : vector<4x128xf32>
    %1621 = arith.addf %1620, %37 : vector<4x128xf32>
    %1622 = math.tanh %1621 : vector<4x128xf32>
    %1623 = arith.mulf %1569, %25 : vector<4x128xf32>
    %1624 = arith.mulf %1571, %27 : vector<4x128xf32>
    %1625 = arith.addf %1623, %1624 : vector<4x128xf32>
    %1626 = arith.mulf %1573, %29 : vector<4x128xf32>
    %1627 = arith.addf %1625, %1626 : vector<4x128xf32>
    %1628 = arith.mulf %1575, %31 : vector<4x128xf32>
    %1629 = arith.addf %1627, %1628 : vector<4x128xf32>
    %1630 = arith.addf %1629, %39 : vector<4x128xf32>
    %1631 = math.tanh %1630 : vector<4x128xf32>
    %1632 = arith.mulf %1592, %1604 : vector<4x128xf32>
    %1633 = arith.addf %1569, %1632 : vector<4x128xf32>
    %1634 = arith.mulf %1592, %1613 : vector<4x128xf32>
    %1635 = arith.addf %1571, %1634 : vector<4x128xf32>
    %1636 = arith.mulf %1592, %1622 : vector<4x128xf32>
    %1637 = arith.addf %1573, %1636 : vector<4x128xf32>
    %1638 = arith.mulf %1592, %1631 : vector<4x128xf32>
    %1639 = arith.addf %1575, %1638 : vector<4x128xf32>
    %1640 = arith.mulf %1590, %1604 : vector<4x128xf32>
    %1641 = arith.addf %1569, %1640 : vector<4x128xf32>
    %1642 = arith.mulf %1590, %1613 : vector<4x128xf32>
    %1643 = arith.addf %1571, %1642 : vector<4x128xf32>
    %1644 = arith.mulf %1590, %1622 : vector<4x128xf32>
    %1645 = arith.addf %1573, %1644 : vector<4x128xf32>
    %1646 = arith.mulf %1590, %1631 : vector<4x128xf32>
    %1647 = arith.addf %1575, %1646 : vector<4x128xf32>
    %1648 = arith.mulf %1641, %1 : vector<4x128xf32>
    %1649 = arith.mulf %1643, %3 : vector<4x128xf32>
    %1650 = arith.addf %1648, %1649 : vector<4x128xf32>
    %1651 = arith.mulf %1645, %5 : vector<4x128xf32>
    %1652 = arith.addf %1650, %1651 : vector<4x128xf32>
    %1653 = arith.mulf %1647, %7 : vector<4x128xf32>
    %1654 = arith.addf %1652, %1653 : vector<4x128xf32>
    %1655 = arith.addf %1654, %33 : vector<4x128xf32>
    %1656 = math.tanh %1655 : vector<4x128xf32>
    %1657 = arith.mulf %1641, %9 : vector<4x128xf32>
    %1658 = arith.mulf %1643, %11 : vector<4x128xf32>
    %1659 = arith.addf %1657, %1658 : vector<4x128xf32>
    %1660 = arith.mulf %1645, %13 : vector<4x128xf32>
    %1661 = arith.addf %1659, %1660 : vector<4x128xf32>
    %1662 = arith.mulf %1647, %15 : vector<4x128xf32>
    %1663 = arith.addf %1661, %1662 : vector<4x128xf32>
    %1664 = arith.addf %1663, %35 : vector<4x128xf32>
    %1665 = math.tanh %1664 : vector<4x128xf32>
    %1666 = arith.mulf %1641, %17 : vector<4x128xf32>
    %1667 = arith.mulf %1643, %19 : vector<4x128xf32>
    %1668 = arith.addf %1666, %1667 : vector<4x128xf32>
    %1669 = arith.mulf %1645, %21 : vector<4x128xf32>
    %1670 = arith.addf %1668, %1669 : vector<4x128xf32>
    %1671 = arith.mulf %1647, %23 : vector<4x128xf32>
    %1672 = arith.addf %1670, %1671 : vector<4x128xf32>
    %1673 = arith.addf %1672, %37 : vector<4x128xf32>
    %1674 = math.tanh %1673 : vector<4x128xf32>
    %1675 = arith.mulf %1641, %25 : vector<4x128xf32>
    %1676 = arith.mulf %1643, %27 : vector<4x128xf32>
    %1677 = arith.addf %1675, %1676 : vector<4x128xf32>
    %1678 = arith.mulf %1645, %29 : vector<4x128xf32>
    %1679 = arith.addf %1677, %1678 : vector<4x128xf32>
    %1680 = arith.mulf %1647, %31 : vector<4x128xf32>
    %1681 = arith.addf %1679, %1680 : vector<4x128xf32>
    %1682 = arith.addf %1681, %39 : vector<4x128xf32>
    %1683 = math.tanh %1682 : vector<4x128xf32>
    %1684 = arith.mulf %1594, %1656 : vector<4x128xf32>
    %1685 = arith.addf %1633, %1684 : vector<4x128xf32>
    %1686 = arith.mulf %1594, %1665 : vector<4x128xf32>
    %1687 = arith.addf %1635, %1686 : vector<4x128xf32>
    %1688 = arith.mulf %1594, %1674 : vector<4x128xf32>
    %1689 = arith.addf %1637, %1688 : vector<4x128xf32>
    %1690 = arith.mulf %1594, %1683 : vector<4x128xf32>
    %1691 = arith.addf %1639, %1690 : vector<4x128xf32>
    %1692 = arith.mulf %1590, %1656 : vector<4x128xf32>
    %1693 = arith.addf %1569, %1692 : vector<4x128xf32>
    %1694 = arith.mulf %1590, %1665 : vector<4x128xf32>
    %1695 = arith.addf %1571, %1694 : vector<4x128xf32>
    %1696 = arith.mulf %1590, %1674 : vector<4x128xf32>
    %1697 = arith.addf %1573, %1696 : vector<4x128xf32>
    %1698 = arith.mulf %1590, %1683 : vector<4x128xf32>
    %1699 = arith.addf %1575, %1698 : vector<4x128xf32>
    %1700 = arith.mulf %1693, %1 : vector<4x128xf32>
    %1701 = arith.mulf %1695, %3 : vector<4x128xf32>
    %1702 = arith.addf %1700, %1701 : vector<4x128xf32>
    %1703 = arith.mulf %1697, %5 : vector<4x128xf32>
    %1704 = arith.addf %1702, %1703 : vector<4x128xf32>
    %1705 = arith.mulf %1699, %7 : vector<4x128xf32>
    %1706 = arith.addf %1704, %1705 : vector<4x128xf32>
    %1707 = arith.addf %1706, %33 : vector<4x128xf32>
    %1708 = math.tanh %1707 : vector<4x128xf32>
    %1709 = arith.mulf %1693, %9 : vector<4x128xf32>
    %1710 = arith.mulf %1695, %11 : vector<4x128xf32>
    %1711 = arith.addf %1709, %1710 : vector<4x128xf32>
    %1712 = arith.mulf %1697, %13 : vector<4x128xf32>
    %1713 = arith.addf %1711, %1712 : vector<4x128xf32>
    %1714 = arith.mulf %1699, %15 : vector<4x128xf32>
    %1715 = arith.addf %1713, %1714 : vector<4x128xf32>
    %1716 = arith.addf %1715, %35 : vector<4x128xf32>
    %1717 = math.tanh %1716 : vector<4x128xf32>
    %1718 = arith.mulf %1693, %17 : vector<4x128xf32>
    %1719 = arith.mulf %1695, %19 : vector<4x128xf32>
    %1720 = arith.addf %1718, %1719 : vector<4x128xf32>
    %1721 = arith.mulf %1697, %21 : vector<4x128xf32>
    %1722 = arith.addf %1720, %1721 : vector<4x128xf32>
    %1723 = arith.mulf %1699, %23 : vector<4x128xf32>
    %1724 = arith.addf %1722, %1723 : vector<4x128xf32>
    %1725 = arith.addf %1724, %37 : vector<4x128xf32>
    %1726 = math.tanh %1725 : vector<4x128xf32>
    %1727 = arith.mulf %1693, %25 : vector<4x128xf32>
    %1728 = arith.mulf %1695, %27 : vector<4x128xf32>
    %1729 = arith.addf %1727, %1728 : vector<4x128xf32>
    %1730 = arith.mulf %1697, %29 : vector<4x128xf32>
    %1731 = arith.addf %1729, %1730 : vector<4x128xf32>
    %1732 = arith.mulf %1699, %31 : vector<4x128xf32>
    %1733 = arith.addf %1731, %1732 : vector<4x128xf32>
    %1734 = arith.addf %1733, %39 : vector<4x128xf32>
    %1735 = math.tanh %1734 : vector<4x128xf32>
    %1736 = arith.mulf %1594, %1708 : vector<4x128xf32>
    %1737 = arith.addf %1685, %1736 : vector<4x128xf32>
    %1738 = arith.mulf %1594, %1717 : vector<4x128xf32>
    %1739 = arith.addf %1687, %1738 : vector<4x128xf32>
    %1740 = arith.mulf %1594, %1726 : vector<4x128xf32>
    %1741 = arith.addf %1689, %1740 : vector<4x128xf32>
    %1742 = arith.mulf %1594, %1735 : vector<4x128xf32>
    %1743 = arith.addf %1691, %1742 : vector<4x128xf32>
    %1744 = arith.mulf %1595, %1708 : vector<4x128xf32>
    %1745 = arith.addf %1569, %1744 : vector<4x128xf32>
    %1746 = arith.mulf %1595, %1717 : vector<4x128xf32>
    %1747 = arith.addf %1571, %1746 : vector<4x128xf32>
    %1748 = arith.mulf %1595, %1726 : vector<4x128xf32>
    %1749 = arith.addf %1573, %1748 : vector<4x128xf32>
    %1750 = arith.mulf %1595, %1735 : vector<4x128xf32>
    %1751 = arith.addf %1575, %1750 : vector<4x128xf32>
    %1752 = arith.mulf %1745, %1 : vector<4x128xf32>
    %1753 = arith.mulf %1747, %3 : vector<4x128xf32>
    %1754 = arith.addf %1752, %1753 : vector<4x128xf32>
    %1755 = arith.mulf %1749, %5 : vector<4x128xf32>
    %1756 = arith.addf %1754, %1755 : vector<4x128xf32>
    %1757 = arith.mulf %1751, %7 : vector<4x128xf32>
    %1758 = arith.addf %1756, %1757 : vector<4x128xf32>
    %1759 = arith.addf %1758, %33 : vector<4x128xf32>
    %1760 = math.tanh %1759 : vector<4x128xf32>
    %1761 = arith.mulf %1745, %9 : vector<4x128xf32>
    %1762 = arith.mulf %1747, %11 : vector<4x128xf32>
    %1763 = arith.addf %1761, %1762 : vector<4x128xf32>
    %1764 = arith.mulf %1749, %13 : vector<4x128xf32>
    %1765 = arith.addf %1763, %1764 : vector<4x128xf32>
    %1766 = arith.mulf %1751, %15 : vector<4x128xf32>
    %1767 = arith.addf %1765, %1766 : vector<4x128xf32>
    %1768 = arith.addf %1767, %35 : vector<4x128xf32>
    %1769 = math.tanh %1768 : vector<4x128xf32>
    %1770 = arith.mulf %1745, %17 : vector<4x128xf32>
    %1771 = arith.mulf %1747, %19 : vector<4x128xf32>
    %1772 = arith.addf %1770, %1771 : vector<4x128xf32>
    %1773 = arith.mulf %1749, %21 : vector<4x128xf32>
    %1774 = arith.addf %1772, %1773 : vector<4x128xf32>
    %1775 = arith.mulf %1751, %23 : vector<4x128xf32>
    %1776 = arith.addf %1774, %1775 : vector<4x128xf32>
    %1777 = arith.addf %1776, %37 : vector<4x128xf32>
    %1778 = math.tanh %1777 : vector<4x128xf32>
    %1779 = arith.mulf %1745, %25 : vector<4x128xf32>
    %1780 = arith.mulf %1747, %27 : vector<4x128xf32>
    %1781 = arith.addf %1779, %1780 : vector<4x128xf32>
    %1782 = arith.mulf %1749, %29 : vector<4x128xf32>
    %1783 = arith.addf %1781, %1782 : vector<4x128xf32>
    %1784 = arith.mulf %1751, %31 : vector<4x128xf32>
    %1785 = arith.addf %1783, %1784 : vector<4x128xf32>
    %1786 = arith.addf %1785, %39 : vector<4x128xf32>
    %1787 = math.tanh %1786 : vector<4x128xf32>
    %1788 = arith.mulf %1592, %1760 : vector<4x128xf32>
    %1789 = arith.addf %1737, %1788 : vector<4x128xf32>
    %1790 = arith.mulf %1592, %1769 : vector<4x128xf32>
    %1791 = arith.addf %1739, %1790 : vector<4x128xf32>
    %1792 = arith.mulf %1592, %1778 : vector<4x128xf32>
    %1793 = arith.addf %1741, %1792 : vector<4x128xf32>
    %1794 = arith.mulf %1592, %1787 : vector<4x128xf32>
    %1795 = arith.addf %1743, %1794 : vector<4x128xf32>
    %c7_159 = arith.constant 7 : index
    %c0_160 = arith.constant 0 : index
    %c0_161 = arith.constant 0 : index
    %c0_162 = arith.constant 0 : index
    %1796 = vector.load %arg5[%c7_159, %c0_160, %c0_161, %c0_162] : memref<8x4x4x128xf32, #tpu.memory_space<vmem>>, vector<1x1x4x128xf32>
    %1797 = vector.shape_cast %1796 : vector<1x1x4x128xf32> to vector<4x128xf32>
    %1798 = vector.shape_cast %1789 : vector<4x128xf32> to vector<1x1x4x128xf32>
    tpu.vector_store %arg5[%c7_159, %c0_160, %c0_161, %c0_162], %1798 {strides = array<i32>} : memref<8x4x4x128xf32, #tpu.memory_space<vmem>>, vector<1x1x4x128xf32>,
    %c7_163 = arith.constant 7 : index
    %c1_164 = arith.constant 1 : index
    %c0_165 = arith.constant 0 : index
    %c0_166 = arith.constant 0 : index
    %1799 = vector.load %arg5[%c7_163, %c1_164, %c0_165, %c0_166] : memref<8x4x4x128xf32, #tpu.memory_space<vmem>>, vector<1x1x4x128xf32>
    %1800 = vector.shape_cast %1799 : vector<1x1x4x128xf32> to vector<4x128xf32>
    %1801 = vector.shape_cast %1791 : vector<4x128xf32> to vector<1x1x4x128xf32>
    tpu.vector_store %arg5[%c7_163, %c1_164, %c0_165, %c0_166], %1801 {strides = array<i32>} : memref<8x4x4x128xf32, #tpu.memory_space<vmem>>, vector<1x1x4x128xf32>,
    %c7_167 = arith.constant 7 : index
    %c2_168 = arith.constant 2 : index
    %c0_169 = arith.constant 0 : index
    %c0_170 = arith.constant 0 : index
    %1802 = vector.load %arg5[%c7_167, %c2_168, %c0_169, %c0_170] : memref<8x4x4x128xf32, #tpu.memory_space<vmem>>, vector<1x1x4x128xf32>
    %1803 = vector.shape_cast %1802 : vector<1x1x4x128xf32> to vector<4x128xf32>
    %1804 = vector.shape_cast %1793 : vector<4x128xf32> to vector<1x1x4x128xf32>
    tpu.vector_store %arg5[%c7_167, %c2_168, %c0_169, %c0_170], %1804 {strides = array<i32>} : memref<8x4x4x128xf32, #tpu.memory_space<vmem>>, vector<1x1x4x128xf32>,
    %c7_171 = arith.constant 7 : index
    %c3_172 = arith.constant 3 : index
    %c0_173 = arith.constant 0 : index
    %c0_174 = arith.constant 0 : index
    %1805 = vector.load %arg5[%c7_171, %c3_172, %c0_173, %c0_174] : memref<8x4x4x128xf32, #tpu.memory_space<vmem>>, vector<1x1x4x128xf32>
    %1806 = vector.shape_cast %1805 : vector<1x1x4x128xf32> to vector<4x128xf32>
    %1807 = vector.shape_cast %1795 : vector<4x128xf32> to vector<1x1x4x128xf32>
    tpu.vector_store %arg5[%c7_171, %c3_172, %c0_173, %c0_174], %1807 {strides = array<i32>} : memref<8x4x4x128xf32, #tpu.memory_space<vmem>>, vector<1x1x4x128xf32>,
    return
  }
  func.func @transform_0(%arg0: i32) -> i32 {
    %c0_i32 = arith.constant 0 : i32
    %c0_i32_0 = arith.constant 0 : i32
    return %c0_i32 : i32
  }
  func.func @transform_1(%arg0: i32) -> i32 {
    %c0_i32 = arith.constant 0 : i32
    %c0_i32_0 = arith.constant 0 : i32
    return %c0_i32 : i32
  }
  func.func @transform_2(%arg0: i32) -> i32 {
    %c0_i32 = arith.constant 0 : i32
    %c0_i32_0 = arith.constant 0 : i32
    return %c0_i32 : i32
  }
  func.func @transform_3(%arg0: i32) -> (i32, i32, i32) {
    %c0_i32 = arith.constant 0 : i32
    %c0_i32_0 = arith.constant 0 : i32
    %c0_i32_1 = arith.constant 0 : i32
    return %c0_i32, %arg0, %c0_i32_0 : i32, i32, i32
  }
  func.func @transform_4(%arg0: i32) -> (i32, i32, i32, i32) {
    %c0_i32 = arith.constant 0 : i32
    %c0_i32_0 = arith.constant 0 : i32
    %c0_i32_1 = arith.constant 0 : i32
    %c0_i32_2 = arith.constant 0 : i32
    return %c0_i32, %c0_i32_0, %arg0, %c0_i32_1 : i32, i32, i32, i32
  }
}

</mosaic_0001>

<llo_original>
// kernel: tpu_custom_call.1
$region0: #{tpu_custom_call.1}
  #allocation0 [shape = 'u32[]', space=smem, size = 0x4, offset = 0x4, fixed_abs, tag = 'smem constant byte address 0x4 - core index']
  #allocation1 [shape = 'u32[144,128]{1,0:T(1,128)}', space=vmem, size = 0x12000, scoped, tag = 'internal scratch']
  %s0 = inlined_call_operand.hbm [shape: f32[8], index: 0, kind: input, shape index: {}]
  %s1 = inlined_call_operand.vmem [shape: f32[16], index: 1, kind: input, shape index: {}]
  %s2 = inlined_call_operand.vmem [shape: f32[4], index: 2, kind: input, shape index: {}]
  %s3 = inlined_call_operand.hbm [shape: f32[4,4,128], index: 3, kind: input, shape index: {}]
  %s4 = inlined_call_operand.hbm [shape: f32[8,4,4,128], index: 4, kind: output, shape index: {}]
  %s5 = sld [smem:[#allocation0]]
  $region42: #{tpu_custom_call.1} parent=0
    _
  %s7 = ssub.s32 1, %s5
  %s8 = scalar_select 0, %s7, %s5
  $region1: #{tpu_custom_call.1} parent=0
    #allocation2 [shape = 'u8[512]{0}', space=smem, size = 0x200, scoped, tag = 'input window, operand 0, single buffered']
    #allocation3 [shape = 's32[1]{0}', space=sflag, size = 0x4, scoped, tag = 'scoped memory for tpu_custom_call.1']
    #allocation4 [shape = 's32[1]{0}', space=sflag, size = 0x4, scoped, tag = 'scoped memory for tpu_custom_call.1']
    #allocation5 [shape = 's32[1]{0}', space=sflag, size = 0x4, scoped, tag = 'scoped memory for tpu_custom_call.1']
    #allocation6 [shape = 's32[1]{0}', space=sflag, size = 0x4, scoped, tag = 'scoped memory for tpu_custom_call.1']
    #allocation7 [shape = 'u8[512]{0}', space=smem, size = 0x200, scoped, tag = 'input window, operand 1, single buffered']
    #allocation8 [shape = 'u8[512]{0}', space=smem, size = 0x200, scoped, tag = 'input window, operand 2, single buffered']
    #allocation9 [shape = 's32[1]{0}', space=sflag, size = 0x4, scoped, tag = 'scoped memory for tpu_custom_call.1']
    #allocation10 [shape = 'u8[8192]{0}', space=vmem, size = 0x2000, scoped, tag = 'input window, operand 3, single buffered']
    #allocation11 [shape = 'u8[65536]{0}', space=vmem, size = 0x10000, scoped, tag = 'output window, operand 0, single buffered']
    %9 = vsyncpa [#allocation5], 0
    %10 = vsyncpa [#allocation6], 0
    %11 = vsyncpa [#allocation9], 0
    %12 = vsyncpa [#allocation3], 0
    %13 = vsyncpa [#allocation4], 0
    // Predicated region
    $region2: #{tpu_custom_call.1} parent=1 // pred_check
      _
    $region3: #{tpu_custom_call.1} parent=1 // pred_check_branch
      %15 = sbr.rel (0) target = $region5
    $region4: #{tpu_custom_call.1} parent=1 // pred_region
      %s17 = ssub.s32 16, 16
      %18 = vsyncadd [#allocation5], %s17
      %21 = dma.hbm_to_smem %s0, 16, [#allocation2], [#allocation5]
    $region5: #{tpu_custom_call.1} parent=1 // pred_fallthru
      _
    // Predicated region
    $region6: #{tpu_custom_call.1} parent=1 // pred_check
      _
    $region7: #{tpu_custom_call.1} parent=1 // pred_check_branch
      %23 = sbr.rel (0) target = $region9
    $region8: #{tpu_custom_call.1} parent=1 // pred_region
      %s25 = ssub.s32 16, 16
      %26 = vsyncadd [#allocation6], %s25
      %s28 = sshll.u32 %s1, 4
      %s29 = int_to_ptr.vmem [resolvable:$true] %s28
      %31 = dma.vmem_to_smem %s29, 16, [#allocation7], [#allocation6]
    $region9: #{tpu_custom_call.1} parent=1 // pred_fallthru
      _
    // Predicated region
    $region10: #{tpu_custom_call.1} parent=1 // pred_check
      _
    $region11: #{tpu_custom_call.1} parent=1 // pred_check_branch
      %33 = sbr.rel (0) target = $region13
    $region12: #{tpu_custom_call.1} parent=1 // pred_region
      %s35 = ssub.s32 16, 16
      %36 = vsyncadd [#allocation9], %s35
      %s38 = sshll.u32 %s2, 4
      %s39 = int_to_ptr.vmem [resolvable:$true] %s38
      %41 = dma.vmem_to_smem %s39, 16, [#allocation8], [#allocation9]
    $region13: #{tpu_custom_call.1} parent=1 // pred_fallthru
      _
    // Predicated region
    $region14: #{tpu_custom_call.1} parent=1 // pred_check
      _
    $region15: #{tpu_custom_call.1} parent=1 // pred_check_branch
      %43 = sbr.rel (0) target = $region17
    $region16: #{tpu_custom_call.1} parent=1 // pred_region
      %s45 = ssub.s32 256, 256
      %46 = vsyncadd [#allocation3], %s45
      %s47 = sshll.u32 [#allocation10], 4
      %s48 = int_to_ptr.vmem [resolvable:$true] %s47
      %53 = dma.hbm_to_vmem [thread:$0]  %s3, 256, %s48, [#allocation3], 64, 64, 4
    $region17: #{tpu_custom_call.1} parent=1 // pred_fallthru
      _
    // Predicated region
    $region18: #{tpu_custom_call.1} parent=1 // pred_check
      _
    $region19: #{tpu_custom_call.1} parent=1 // pred_check_branch
      %55 = sbr.rel (0) target = $region21
    $region20: #{tpu_custom_call.1} parent=1 // pred_region
      %56 = dma.done [#allocation5], 16
    $region21: #{tpu_custom_call.1} parent=1 // pred_fallthru
      _
    // Predicated region
    $region22: #{tpu_custom_call.1} parent=1 // pred_check
      _
    $region23: #{tpu_custom_call.1} parent=1 // pred_check_branch
      %58 = sbr.rel (0) target = $region25
    $region24: #{tpu_custom_call.1} parent=1 // pred_region
      %59 = dma.done [#allocation6], 16
    $region25: #{tpu_custom_call.1} parent=1 // pred_fallthru
      _
    // Predicated region
    $region26: #{tpu_custom_call.1} parent=1 // pred_check
      _
    $region27: #{tpu_custom_call.1} parent=1 // pred_check_branch
      %61 = sbr.rel (0) target = $region29
    $region28: #{tpu_custom_call.1} parent=1 // pred_region
      %62 = dma.done [#allocation9], 16
    $region29: #{tpu_custom_call.1} parent=1 // pred_fallthru
      _
    // Predicated region
    $region30: #{tpu_custom_call.1} parent=1 // pred_check
      _
    $region31: #{tpu_custom_call.1} parent=1 // pred_check_branch
      %64 = sbr.rel (0) target = $region33
    $region32: #{tpu_custom_call.1} parent=1 // pred_region
      %65 = dma.done [#allocation3], 256
    $region33: #{tpu_custom_call.1} parent=1 // pred_fallthru
      _
    %66 = sfence
    %s67 = sld [smem:[#allocation7]]
    %v68 = vstv %s67
    %s69 = sld [smem:[#allocation7 + $0x1]]
    %v70 = vstv %s69
    %s71 = sld [smem:[#allocation7 + $0x2]]
    %v72 = vstv %s71
    %s73 = sld [smem:[#allocation7 + $0x3]]
    %v74 = vstv %s73
    %s75 = sld [smem:[#allocation7 + $0x4]]
    %v76 = vstv %s75
    %s77 = sld [smem:[#allocation7 + $0x5]]
    %v78 = vstv %s77
    %s79 = sld [smem:[#allocation7 + $0x6]]
    %v80 = vstv %s79
    %s81 = sld [smem:[#allocation7 + $0x7]]
    %v82 = vstv %s81
    %s83 = sld [smem:[#allocation7 + $0x8]]
    %v84 = vstv %s83
    %s85 = sld [smem:[#allocation7 + $0x9]]
    %v86 = vstv %s85
    %s87 = sld [smem:[#allocation7 + $0xa]]
    %v88 = vstv %s87
    %s89 = sld [smem:[#allocation7 + $0xb]]
    %v90 = vstv %s89
    %s91 = sld [smem:[#allocation7 + $0xc]]
    %v92 = vstv %s91
    %s93 = sld [smem:[#allocation7 + $0xd]]
    %v94 = vstv %s93
    %s95 = sld [smem:[#allocation7 + $0xe]]
    %v96 = vstv %s95
    %s97 = sld [smem:[#allocation7 + $0xf]]
    %v98 = vstv %s97
    %s99 = sld [smem:[#allocation8]]
    %v100 = vstv %s99
    %s101 = sld [smem:[#allocation8 + $0x1]]
    %v102 = vstv %s101
    %s103 = sld [smem:[#allocation8 + $0x2]]
    %v104 = vstv %s103
    %s105 = sld [smem:[#allocation8 + $0x3]]
    %v106 = vstv %s105
    %v107 = vld [vmem:[#allocation10] sm:$0xf]
    %s108 = scalar_lea.vmem [#allocation10], 4
    %v109 = vld [vmem:[%s108] sm:$0xf]
    %s110 = scalar_lea.vmem [#allocation10], 8
    %v111 = vld [vmem:[%s110] sm:$0xf]
    %s112 = scalar_lea.vmem [#allocation10], 12
    %v113 = vld [vmem:[%s112] sm:$0xf]
    %s114 = sld [smem:[#allocation2]]
    %s115 = smul.f32 %s114, 0.5
    %v116 = vstv %s115
    %s117 = smul.f32 %s114, 0.16666667
    %v118 = vstv %s117
    %s119 = smul.f32 %s114, 0.33333334
    %v120 = vstv %s119
    %v121 = vstv %s114
    %v122 = vmul.f32 %v107, %v68
    %v123 = vmul.f32 %v109, %v70
    %v124 = vadd.f32 %v122, %v123
    %v125 = vmul.f32 %v111, %v72
    %v126 = vadd.f32 %v124, %v125
    %v127 = vmul.f32 %v113, %v74
    %v128 = vadd.f32 %v126, %v127
    %v129 = vadd.f32 %v128, %v100
    %v130 = vtanh.pop %v129
    %v131 = vmul.f32 %v107, %v76
    %v132 = vmul.f32 %v109, %v78
    %v133 = vadd.f32 %v131, %v132
    %v134 = vmul.f32 %v111, %v80
    %v135 = vadd.f32 %v133, %v134
    %v136 = vmul.f32 %v113, %v82
    %v137 = vadd.f32 %v135, %v136
    %v138 = vadd.f32 %v137, %v102
    %v139 = vtanh.pop %v138
    %v140 = vmul.f32 %v107, %v84
    %v141 = vmul.f32 %v109, %v86
    %v142 = vadd.f32 %v140, %v141
    %v143 = vmul.f32 %v111, %v88
    %v144 = vadd.f32 %v142, %v143
    %v145 = vmul.f32 %v113, %v90
    %v146 = vadd.f32 %v144, %v145
    %v147 = vadd.f32 %v146, %v104
    %v148 = vtanh.pop %v147
    %v149 = vmul.f32 %v107, %v92
    %v150 = vmul.f32 %v109, %v94
    %v151 = vadd.f32 %v149, %v150
    %v152 = vmul.f32 %v111, %v96
    %v153 = vadd.f32 %v151, %v152
    %v154 = vmul.f32 %v113, %v98
    %v155 = vadd.f32 %v153, %v154
    %v156 = vadd.f32 %v155, %v106
    %v157 = vtanh.pop %v156
    %v158 = vmul.f32 %v118, %v130
    %v159 = vadd.f32 %v107, %v158
    %v160 = vmul.f32 %v118, %v139
    %v161 = vadd.f32 %v109, %v160
    %v162 = vmul.f32 %v118, %v148
    %v163 = vadd.f32 %v111, %v162
    %v164 = vmul.f32 %v118, %v157
    %v165 = vadd.f32 %v113, %v164
    %v166 = vmul.f32 %v116, %v130
    %v167 = vadd.f32 %v107, %v166
    %v168 = vmul.f32 %v116, %v139
    %v169 = vadd.f32 %v109, %v168
    %v170 = vmul.f32 %v116, %v148
    %v171 = vadd.f32 %v111, %v170
    %v172 = vmul.f32 %v116, %v157
    %v173 = vadd.f32 %v113, %v172
    %v174 = vmul.f32 %v167, %v68
    %v175 = vmul.f32 %v169, %v70
    %v176 = vadd.f32 %v174, %v175
    %v177 = vmul.f32 %v171, %v72
    %v178 = vadd.f32 %v176, %v177
    %v179 = vmul.f32 %v173, %v74
    %v180 = vadd.f32 %v178, %v179
    %v181 = vadd.f32 %v180, %v100
    %v182 = vtanh.pop %v181
    %v183 = vmul.f32 %v167, %v76
    %v184 = vmul.f32 %v169, %v78
    %v185 = vadd.f32 %v183, %v184
    %v186 = vmul.f32 %v171, %v80
    %v187 = vadd.f32 %v185, %v186
    %v188 = vmul.f32 %v173, %v82
    %v189 = vadd.f32 %v187, %v188
    %v190 = vadd.f32 %v189, %v102
    %v191 = vtanh.pop %v190
    %v192 = vmul.f32 %v167, %v84
    %v193 = vmul.f32 %v169, %v86
    %v194 = vadd.f32 %v192, %v193
    %v195 = vmul.f32 %v171, %v88
    %v196 = vadd.f32 %v194, %v195
    %v197 = vmul.f32 %v173, %v90
    %v198 = vadd.f32 %v196, %v197
    %v199 = vadd.f32 %v198, %v104
    %v200 = vtanh.pop %v199
    %v201 = vmul.f32 %v167, %v92
    %v202 = vmul.f32 %v169, %v94
    %v203 = vadd.f32 %v201, %v202
    %v204 = vmul.f32 %v171, %v96
    %v205 = vadd.f32 %v203, %v204
    %v206 = vmul.f32 %v173, %v98
    %v207 = vadd.f32 %v205, %v206
    %v208 = vadd.f32 %v207, %v106
    %v209 = vtanh.pop %v208
    %v210 = vmul.f32 %v120, %v182
    %v211 = vadd.f32 %v159, %v210
    %v212 = vmul.f32 %v120, %v191
    %v213 = vadd.f32 %v161, %v212
    %v214 = vmul.f32 %v120, %v200
    %v215 = vadd.f32 %v163, %v214
    %v216 = vmul.f32 %v120, %v209
    %v217 = vadd.f32 %v165, %v216
    %v218 = vmul.f32 %v116, %v182
    %v219 = vadd.f32 %v107, %v218
    %v220 = vmul.f32 %v116, %v191
    %v221 = vadd.f32 %v109, %v220
    %v222 = vmul.f32 %v116, %v200
    %v223 = vadd.f32 %v111, %v222
    %v224 = vmul.f32 %v116, %v209
    %v225 = vadd.f32 %v113, %v224
    %v226 = vmul.f32 %v219, %v68
    %v227 = vmul.f32 %v221, %v70
    %v228 = vadd.f32 %v226, %v227
    %v229 = vmul.f32 %v223, %v72
    %v230 = vadd.f32 %v228, %v229
    %v231 = vmul.f32 %v225, %v74
    %v232 = vadd.f32 %v230, %v231
    %v233 = vadd.f32 %v232, %v100
    %v234 = vtanh.pop %v233
    %v235 = vmul.f32 %v219, %v76
    %v236 = vmul.f32 %v221, %v78
    %v237 = vadd.f32 %v235, %v236
    %v238 = vmul.f32 %v223, %v80
    %v239 = vadd.f32 %v237, %v238
    %v240 = vmul.f32 %v225, %v82
    %v241 = vadd.f32 %v239, %v240
    %v242 = vadd.f32 %v241, %v102
    %v243 = vtanh.pop %v242
    %v244 = vmul.f32 %v219, %v84
    %v245 = vmul.f32 %v221, %v86
    %v246 = vadd.f32 %v244, %v245
    %v247 = vmul.f32 %v223, %v88
    %v248 = vadd.f32 %v246, %v247
    %v249 = vmul.f32 %v225, %v90
    %v250 = vadd.f32 %v248, %v249
    %v251 = vadd.f32 %v250, %v104
    %v252 = vtanh.pop %v251
    %v253 = vmul.f32 %v219, %v92
    %v254 = vmul.f32 %v221, %v94
    %v255 = vadd.f32 %v253, %v254
    %v256 = vmul.f32 %v223, %v96
    %v257 = vadd.f32 %v255, %v256
    %v258 = vmul.f32 %v225, %v98
    %v259 = vadd.f32 %v257, %v258
    %v260 = vadd.f32 %v259, %v106
    %v261 = vtanh.pop %v260
    %v262 = vmul.f32 %v120, %v234
    %v263 = vadd.f32 %v211, %v262
    %v264 = vmul.f32 %v120, %v243
    %v265 = vadd.f32 %v213, %v264
    %v266 = vmul.f32 %v120, %v252
    %v267 = vadd.f32 %v215, %v266
    %v268 = vmul.f32 %v120, %v261
    %v269 = vadd.f32 %v217, %v268
    %v270 = vmul.f32 %v121, %v234
    %v271 = vadd.f32 %v107, %v270
    %v272 = vmul.f32 %v121, %v243
    %v273 = vadd.f32 %v109, %v272
    %v274 = vmul.f32 %v121, %v252
    %v275 = vadd.f32 %v111, %v274
    %v276 = vmul.f32 %v121, %v261
    %v277 = vadd.f32 %v113, %v276
    %v278 = vmul.f32 %v271, %v68
    %v279 = vmul.f32 %v273, %v70
    %v280 = vadd.f32 %v278, %v279
    %v281 = vmul.f32 %v275, %v72
    %v282 = vadd.f32 %v280, %v281
    %v283 = vmul.f32 %v277, %v74
    %v284 = vadd.f32 %v282, %v283
    %v285 = vadd.f32 %v284, %v100
    %v286 = vtanh.pop %v285
    %v287 = vmul.f32 %v271, %v76
    %v288 = vmul.f32 %v273, %v78
    %v289 = vadd.f32 %v287, %v288
    %v290 = vmul.f32 %v275, %v80
    %v291 = vadd.f32 %v289, %v290
    %v292 = vmul.f32 %v277, %v82
    %v293 = vadd.f32 %v291, %v292
    %v294 = vadd.f32 %v293, %v102
    %v295 = vtanh.pop %v294
    %v296 = vmul.f32 %v271, %v84
    %v297 = vmul.f32 %v273, %v86
    %v298 = vadd.f32 %v296, %v297
    %v299 = vmul.f32 %v275, %v88
    %v300 = vadd.f32 %v298, %v299
    %v301 = vmul.f32 %v277, %v90
    %v302 = vadd.f32 %v300, %v301
    %v303 = vadd.f32 %v302, %v104
    %v304 = vtanh.pop %v303
    %v305 = vmul.f32 %v271, %v92
    %v306 = vmul.f32 %v273, %v94
    %v307 = vadd.f32 %v305, %v306
    %v308 = vmul.f32 %v275, %v96
    %v309 = vadd.f32 %v307, %v308
    %v310 = vmul.f32 %v277, %v98
    %v311 = vadd.f32 %v309, %v310
    %v312 = vadd.f32 %v311, %v106
    %v313 = vtanh.pop %v312
    %v314 = vmul.f32 %v118, %v286
    %v315 = vadd.f32 %v263, %v314
    %v316 = vmul.f32 %v118, %v295
    %v317 = vadd.f32 %v265, %v316
    %v318 = vmul.f32 %v118, %v304
    %v319 = vadd.f32 %v267, %v318
    %v320 = vmul.f32 %v118, %v313
    %v321 = vadd.f32 %v269, %v320
    %322 = vst [vmem:[#allocation11] sm:$0xf] %v315
    %s323 = scalar_lea.vmem [#allocation11], 4
    %324 = vst [vmem:[%s323] sm:$0xf] %v317
    %s325 = scalar_lea.vmem [#allocation11], 8
    %326 = vst [vmem:[%s325] sm:$0xf] %v319
    %s327 = scalar_lea.vmem [#allocation11], 12
    %328 = vst [vmem:[%s327] sm:$0xf] %v321
    %s329 = sld [smem:[#allocation2 + $0x1]]
    %s330 = smul.f32 %s329, 0.5
    %v331 = vstv %s330
    %s332 = smul.f32 %s329, 0.16666667
    %v333 = vstv %s332
    %s334 = smul.f32 %s329, 0.33333334
    %v335 = vstv %s334
    %v336 = vstv %s329
    %v337 = vmul.f32 %v315, %v68
    %v338 = vmul.f32 %v317, %v70
    %v339 = vadd.f32 %v337, %v338
    %v340 = vmul.f32 %v319, %v72
    %v341 = vadd.f32 %v339, %v340
    %v342 = vmul.f32 %v321, %v74
    %v343 = vadd.f32 %v341, %v342
    %v344 = vadd.f32 %v343, %v100
    %v345 = vtanh.pop %v344
    %v346 = vmul.f32 %v315, %v76
    %v347 = vmul.f32 %v317, %v78
    %v348 = vadd.f32 %v346, %v347
    %v349 = vmul.f32 %v319, %v80
    %v350 = vadd.f32 %v348, %v349
    %v351 = vmul.f32 %v321, %v82
    %v352 = vadd.f32 %v350, %v351
    %v353 = vadd.f32 %v352, %v102
    %v354 = vtanh.pop %v353
    %v355 = vmul.f32 %v315, %v84
    %v356 = vmul.f32 %v317, %v86
    %v357 = vadd.f32 %v355, %v356
    %v358 = vmul.f32 %v319, %v88
    %v359 = vadd.f32 %v357, %v358
    %v360 = vmul.f32 %v321, %v90
    %v361 = vadd.f32 %v359, %v360
    %v362 = vadd.f32 %v361, %v104
    %v363 = vtanh.pop %v362
    %v364 = vmul.f32 %v315, %v92
    %v365 = vmul.f32 %v317, %v94
    %v366 = vadd.f32 %v364, %v365
    %v367 = vmul.f32 %v319, %v96
    %v368 = vadd.f32 %v366, %v367
    %v369 = vmul.f32 %v321, %v98
    %v370 = vadd.f32 %v368, %v369
    %v371 = vadd.f32 %v370, %v106
    %v372 = vtanh.pop %v371
    %v373 = vmul.f32 %v333, %v345
    %v374 = vadd.f32 %v315, %v373
    %v375 = vmul.f32 %v333, %v354
    %v376 = vadd.f32 %v317, %v375
    %v377 = vmul.f32 %v333, %v363
    %v378 = vadd.f32 %v319, %v377
    %v379 = vmul.f32 %v333, %v372
    %v380 = vadd.f32 %v321, %v379
    %v381 = vmul.f32 %v331, %v345
    %v382 = vadd.f32 %v315, %v381
    %v383 = vmul.f32 %v331, %v354
    %v384 = vadd.f32 %v317, %v383
    %v385 = vmul.f32 %v331, %v363
    %v386 = vadd.f32 %v319, %v385
    %v387 = vmul.f32 %v331, %v372
    %v388 = vadd.f32 %v321, %v387
    %v389 = vmul.f32 %v382, %v68
    %v390 = vmul.f32 %v384, %v70
    %v391 = vadd.f32 %v389, %v390
    %v392 = vmul.f32 %v386, %v72
    %v393 = vadd.f32 %v391, %v392
    %v394 = vmul.f32 %v388, %v74
    %v395 = vadd.f32 %v393, %v394
    %v396 = vadd.f32 %v395, %v100
    %v397 = vtanh.pop %v396
    %v398 = vmul.f32 %v382, %v76
    %v399 = vmul.f32 %v384, %v78
    %v400 = vadd.f32 %v398, %v399
    %v401 = vmul.f32 %v386, %v80
    %v402 = vadd.f32 %v400, %v401
    %v403 = vmul.f32 %v388, %v82
    %v404 = vadd.f32 %v402, %v403
    %v405 = vadd.f32 %v404, %v102
    %v406 = vtanh.pop %v405
    %v407 = vmul.f32 %v382, %v84
    %v408 = vmul.f32 %v384, %v86
    %v409 = vadd.f32 %v407, %v408
    %v410 = vmul.f32 %v386, %v88
    %v411 = vadd.f32 %v409, %v410
    %v412 = vmul.f32 %v388, %v90
    %v413 = vadd.f32 %v411, %v412
    %v414 = vadd.f32 %v413, %v104
    %v415 = vtanh.pop %v414
    %v416 = vmul.f32 %v382, %v92
    %v417 = vmul.f32 %v384, %v94
    %v418 = vadd.f32 %v416, %v417
    %v419 = vmul.f32 %v386, %v96
    %v420 = vadd.f32 %v418, %v419
    %v421 = vmul.f32 %v388, %v98
    %v422 = vadd.f32 %v420, %v421
    %v423 = vadd.f32 %v422, %v106
    %v424 = vtanh.pop %v423
    %v425 = vmul.f32 %v335, %v397
    %v426 = vadd.f32 %v374, %v425
    %v427 = vmul.f32 %v335, %v406
    %v428 = vadd.f32 %v376, %v427
    %v429 = vmul.f32 %v335, %v415
    %v430 = vadd.f32 %v378, %v429
    %v431 = vmul.f32 %v335, %v424
    %v432 = vadd.f32 %v380, %v431
    %v433 = vmul.f32 %v331, %v397
    %v434 = vadd.f32 %v315, %v433
    %v435 = vmul.f32 %v331, %v406
    %v436 = vadd.f32 %v317, %v435
    %v437 = vmul.f32 %v331, %v415
    %v438 = vadd.f32 %v319, %v437
    %v439 = vmul.f32 %v331, %v424
    %v440 = vadd.f32 %v321, %v439
    %v441 = vmul.f32 %v434, %v68
    %v442 = vmul.f32 %v436, %v70
    %v443 = vadd.f32 %v441, %v442
    %v444 = vmul.f32 %v438, %v72
    %v445 = vadd.f32 %v443, %v444
    %v446 = vmul.f32 %v440, %v74
    %v447 = vadd.f32 %v445, %v446
    %v448 = vadd.f32 %v447, %v100
    %v449 = vtanh.pop %v448
    %v450 = vmul.f32 %v434, %v76
    %v451 = vmul.f32 %v436, %v78
    %v452 = vadd.f32 %v450, %v451
    %v453 = vmul.f32 %v438, %v80
    %v454 = vadd.f32 %v452, %v453
    %v455 = vmul.f32 %v440, %v82
    %v456 = vadd.f32 %v454, %v455
    %v457 = vadd.f32 %v456, %v102
    %v458 = vtanh.pop %v457
    %v459 = vmul.f32 %v434, %v84
    %v460 = vmul.f32 %v436, %v86
    %v461 = vadd.f32 %v459, %v460
    %v462 = vmul.f32 %v438, %v88
    %v463 = vadd.f32 %v461, %v462
    %v464 = vmul.f32 %v440, %v90
    %v465 = vadd.f32 %v463, %v464
    %v466 = vadd.f32 %v465, %v104
    %v467 = vtanh.pop %v466
    %v468 = vmul.f32 %v434, %v92
    %v469 = vmul.f32 %v436, %v94
    %v470 = vadd.f32 %v468, %v469
    %v471 = vmul.f32 %v438, %v96
    %v472 = vadd.f32 %v470, %v471
    %v473 = vmul.f32 %v440, %v98
    %v474 = vadd.f32 %v472, %v473
    %v475 = vadd.f32 %v474, %v106
    %v476 = vtanh.pop %v475
    %v477 = vmul.f32 %v335, %v449
    %v478 = vadd.f32 %v426, %v477
    %v479 = vmul.f32 %v335, %v458
    %v480 = vadd.f32 %v428, %v479
    %v481 = vmul.f32 %v335, %v467
    %v482 = vadd.f32 %v430, %v481
    %v483 = vmul.f32 %v335, %v476
    %v484 = vadd.f32 %v432, %v483
    %v485 = vmul.f32 %v336, %v449
    %v486 = vadd.f32 %v315, %v485
    %v487 = vmul.f32 %v336, %v458
    %v488 = vadd.f32 %v317, %v487
    %v489 = vmul.f32 %v336, %v467
    %v490 = vadd.f32 %v319, %v489
    %v491 = vmul.f32 %v336, %v476
    %v492 = vadd.f32 %v321, %v491
    %v493 = vmul.f32 %v486, %v68
    %v494 = vmul.f32 %v488, %v70
    %v495 = vadd.f32 %v493, %v494
    %v496 = vmul.f32 %v490, %v72
    %v497 = vadd.f32 %v495, %v496
    %v498 = vmul.f32 %v492, %v74
    %v499 = vadd.f32 %v497, %v498
    %v500 = vadd.f32 %v499, %v100
    %v501 = vtanh.pop %v500
    %v502 = vmul.f32 %v486, %v76
    %v503 = vmul.f32 %v488, %v78
    %v504 = vadd.f32 %v502, %v503
    %v505 = vmul.f32 %v490, %v80
    %v506 = vadd.f32 %v504, %v505
    %v507 = vmul.f32 %v492, %v82
    %v508 = vadd.f32 %v506, %v507
    %v509 = vadd.f32 %v508, %v102
    %v510 = vtanh.pop %v509
    %v511 = vmul.f32 %v486, %v84
    %v512 = vmul.f32 %v488, %v86
    %v513 = vadd.f32 %v511, %v512
    %v514 = vmul.f32 %v490, %v88
    %v515 = vadd.f32 %v513, %v514
    %v516 = vmul.f32 %v492, %v90
    %v517 = vadd.f32 %v515, %v516
    %v518 = vadd.f32 %v517, %v104
    %v519 = vtanh.pop %v518
    %v520 = vmul.f32 %v486, %v92
    %v521 = vmul.f32 %v488, %v94
    %v522 = vadd.f32 %v520, %v521
    %v523 = vmul.f32 %v490, %v96
    %v524 = vadd.f32 %v522, %v523
    %v525 = vmul.f32 %v492, %v98
    %v526 = vadd.f32 %v524, %v525
    %v527 = vadd.f32 %v526, %v106
    %v528 = vtanh.pop %v527
    %v529 = vmul.f32 %v333, %v501
    %v530 = vadd.f32 %v478, %v529
    %v531 = vmul.f32 %v333, %v510
    %v532 = vadd.f32 %v480, %v531
    %v533 = vmul.f32 %v333, %v519
    %v534 = vadd.f32 %v482, %v533
    %v535 = vmul.f32 %v333, %v528
    %v536 = vadd.f32 %v484, %v535
    %s537 = scalar_lea.vmem [#allocation11], 16
    %538 = vst [vmem:[%s537] sm:$0xf] %v530
    %s539 = scalar_lea.vmem [#allocation11], 20
    %540 = vst [vmem:[%s539] sm:$0xf] %v532
    %s541 = scalar_lea.vmem [#allocation11], 24
    %542 = vst [vmem:[%s541] sm:$0xf] %v534
    %s543 = scalar_lea.vmem [#allocation11], 28
    %544 = vst [vmem:[%s543] sm:$0xf] %v536
    %s545 = sld [smem:[#allocation2 + $0x2]]
    %s546 = smul.f32 %s545, 0.5
    %v547 = vstv %s546
    %s548 = smul.f32 %s545, 0.16666667
    %v549 = vstv %s548
    %s550 = smul.f32 %s545, 0.33333334
    %v551 = vstv %s550
    %v552 = vstv %s545
    %v553 = vmul.f32 %v530, %v68
    %v554 = vmul.f32 %v532, %v70
    %v555 = vadd.f32 %v553, %v554
    %v556 = vmul.f32 %v534, %v72
    %v557 = vadd.f32 %v555, %v556
    %v558 = vmul.f32 %v536, %v74
    %v559 = vadd.f32 %v557, %v558
    %v560 = vadd.f32 %v559, %v100
    %v561 = vtanh.pop %v560
    %v562 = vmul.f32 %v530, %v76
    %v563 = vmul.f32 %v532, %v78
    %v564 = vadd.f32 %v562, %v563
    %v565 = vmul.f32 %v534, %v80
    %v566 = vadd.f32 %v564, %v565
    %v567 = vmul.f32 %v536, %v82
    %v568 = vadd.f32 %v566, %v567
    %v569 = vadd.f32 %v568, %v102
    %v570 = vtanh.pop %v569
    %v571 = vmul.f32 %v530, %v84
    %v572 = vmul.f32 %v532, %v86
    %v573 = vadd.f32 %v571, %v572
    %v574 = vmul.f32 %v534, %v88
    %v575 = vadd.f32 %v573, %v574
    %v576 = vmul.f32 %v536, %v90
    %v577 = vadd.f32 %v575, %v576
    %v578 = vadd.f32 %v577, %v104
    %v579 = vtanh.pop %v578
    %v580 = vmul.f32 %v530, %v92
    %v581 = vmul.f32 %v532, %v94
    %v582 = vadd.f32 %v580, %v581
    %v583 = vmul.f32 %v534, %v96
    %v584 = vadd.f32 %v582, %v583
    %v585 = vmul.f32 %v536, %v98
    %v586 = vadd.f32 %v584, %v585
    %v587 = vadd.f32 %v586, %v106
    %v588 = vtanh.pop %v587
    %v589 = vmul.f32 %v549, %v561
    %v590 = vadd.f32 %v530, %v589
    %v591 = vmul.f32 %v549, %v570
    %v592 = vadd.f32 %v532, %v591
    %v593 = vmul.f32 %v549, %v579
    %v594 = vadd.f32 %v534, %v593
    %v595 = vmul.f32 %v549, %v588
    %v596 = vadd.f32 %v536, %v595
    %v597 = vmul.f32 %v547, %v561
    %v598 = vadd.f32 %v530, %v597
    %v599 = vmul.f32 %v547, %v570
    %v600 = vadd.f32 %v532, %v599
    %v601 = vmul.f32 %v547, %v579
    %v602 = vadd.f32 %v534, %v601
    %v603 = vmul.f32 %v547, %v588
    %v604 = vadd.f32 %v536, %v603
    %v605 = vmul.f32 %v598, %v68
    %v606 = vmul.f32 %v600, %v70
    %v607 = vadd.f32 %v605, %v606
    %v608 = vmul.f32 %v602, %v72
    %v609 = vadd.f32 %v607, %v608
    %v610 = vmul.f32 %v604, %v74
    %v611 = vadd.f32 %v609, %v610
    %v612 = vadd.f32 %v611, %v100
    %v613 = vtanh.pop %v612
    %v614 = vmul.f32 %v598, %v76
    %v615 = vmul.f32 %v600, %v78
    %v616 = vadd.f32 %v614, %v615
    %v617 = vmul.f32 %v602, %v80
    %v618 = vadd.f32 %v616, %v617
    %v619 = vmul.f32 %v604, %v82
    %v620 = vadd.f32 %v618, %v619
    %v621 = vadd.f32 %v620, %v102
    %v622 = vtanh.pop %v621
    %v623 = vmul.f32 %v598, %v84
    %v624 = vmul.f32 %v600, %v86
    %v625 = vadd.f32 %v623, %v624
    %v626 = vmul.f32 %v602, %v88
    %v627 = vadd.f32 %v625, %v626
    %v628 = vmul.f32 %v604, %v90
    %v629 = vadd.f32 %v627, %v628
    %v630 = vadd.f32 %v629, %v104
    %v631 = vtanh.pop %v630
    %v632 = vmul.f32 %v598, %v92
    %v633 = vmul.f32 %v600, %v94
    %v634 = vadd.f32 %v632, %v633
    %v635 = vmul.f32 %v602, %v96
    %v636 = vadd.f32 %v634, %v635
    %v637 = vmul.f32 %v604, %v98
    %v638 = vadd.f32 %v636, %v637
    %v639 = vadd.f32 %v638, %v106
    %v640 = vtanh.pop %v639
    %v641 = vmul.f32 %v551, %v613
    %v642 = vadd.f32 %v590, %v641
    %v643 = vmul.f32 %v551, %v622
    %v644 = vadd.f32 %v592, %v643
    %v645 = vmul.f32 %v551, %v631
    %v646 = vadd.f32 %v594, %v645
    %v647 = vmul.f32 %v551, %v640
    %v648 = vadd.f32 %v596, %v647
    %v649 = vmul.f32 %v547, %v613
    %v650 = vadd.f32 %v530, %v649
    %v651 = vmul.f32 %v547, %v622
    %v652 = vadd.f32 %v532, %v651
    %v653 = vmul.f32 %v547, %v631
    %v654 = vadd.f32 %v534, %v653
    %v655 = vmul.f32 %v547, %v640
    %v656 = vadd.f32 %v536, %v655
    %v657 = vmul.f32 %v650, %v68
    %v658 = vmul.f32 %v652, %v70
    %v659 = vadd.f32 %v657, %v658
    %v660 = vmul.f32 %v654, %v72
    %v661 = vadd.f32 %v659, %v660
    %v662 = vmul.f32 %v656, %v74
    %v663 = vadd.f32 %v661, %v662
    %v664 = vadd.f32 %v663, %v100
    %v665 = vtanh.pop %v664
    %v666 = vmul.f32 %v650, %v76
    %v667 = vmul.f32 %v652, %v78
    %v668 = vadd.f32 %v666, %v667
    %v669 = vmul.f32 %v654, %v80
    %v670 = vadd.f32 %v668, %v669
    %v671 = vmul.f32 %v656, %v82
    %v672 = vadd.f32 %v670, %v671
    %v673 = vadd.f32 %v672, %v102
    %v674 = vtanh.pop %v673
    %v675 = vmul.f32 %v650, %v84
    %v676 = vmul.f32 %v652, %v86
    %v677 = vadd.f32 %v675, %v676
    %v678 = vmul.f32 %v654, %v88
    %v679 = vadd.f32 %v677, %v678
    %v680 = vmul.f32 %v656, %v90
    %v681 = vadd.f32 %v679, %v680
    %v682 = vadd.f32 %v681, %v104
    %v683 = vtanh.pop %v682
    %v684 = vmul.f32 %v650, %v92
    %v685 = vmul.f32 %v652, %v94
    %v686 = vadd.f32 %v684, %v685
    %v687 = vmul.f32 %v654, %v96
    %v688 = vadd.f32 %v686, %v687
    %v689 = vmul.f32 %v656, %v98
    %v690 = vadd.f32 %v688, %v689
    %v691 = vadd.f32 %v690, %v106
    %v692 = vtanh.pop %v691
    %v693 = vmul.f32 %v551, %v665
    %v694 = vadd.f32 %v642, %v693
    %v695 = vmul.f32 %v551, %v674
    %v696 = vadd.f32 %v644, %v695
    %v697 = vmul.f32 %v551, %v683
    %v698 = vadd.f32 %v646, %v697
    %v699 = vmul.f32 %v551, %v692
    %v700 = vadd.f32 %v648, %v699
    %v701 = vmul.f32 %v552, %v665
    %v702 = vadd.f32 %v530, %v701
    %v703 = vmul.f32 %v552, %v674
    %v704 = vadd.f32 %v532, %v703
    %v705 = vmul.f32 %v552, %v683
    %v706 = vadd.f32 %v534, %v705
    %v707 = vmul.f32 %v552, %v692
    %v708 = vadd.f32 %v536, %v707
    %v709 = vmul.f32 %v702, %v68
    %v710 = vmul.f32 %v704, %v70
    %v711 = vadd.f32 %v709, %v710
    %v712 = vmul.f32 %v706, %v72
    %v713 = vadd.f32 %v711, %v712
    %v714 = vmul.f32 %v708, %v74
    %v715 = vadd.f32 %v713, %v714
    %v716 = vadd.f32 %v715, %v100
    %v717 = vtanh.pop %v716
    %v718 = vmul.f32 %v702, %v76
    %v719 = vmul.f32 %v704, %v78
    %v720 = vadd.f32 %v718, %v719
    %v721 = vmul.f32 %v706, %v80
    %v722 = vadd.f32 %v720, %v721
    %v723 = vmul.f32 %v708, %v82
    %v724 = vadd.f32 %v722, %v723
    %v725 = vadd.f32 %v724, %v102
    %v726 = vtanh.pop %v725
    %v727 = vmul.f32 %v702, %v84
    %v728 = vmul.f32 %v704, %v86
    %v729 = vadd.f32 %v727, %v728
    %v730 = vmul.f32 %v706, %v88
    %v731 = vadd.f32 %v729, %v730
    %v732 = vmul.f32 %v708, %v90
    %v733 = vadd.f32 %v731, %v732
    %v734 = vadd.f32 %v733, %v104
    %v735 = vtanh.pop %v734
    %v736 = vmul.f32 %v702, %v92
    %v737 = vmul.f32 %v704, %v94
    %v738 = vadd.f32 %v736, %v737
    %v739 = vmul.f32 %v706, %v96
    %v740 = vadd.f32 %v738, %v739
    %v741 = vmul.f32 %v708, %v98
    %v742 = vadd.f32 %v740, %v741
    %v743 = vadd.f32 %v742, %v106
    %v744 = vtanh.pop %v743
    %v745 = vmul.f32 %v549, %v717
    %v746 = vadd.f32 %v694, %v745
    %v747 = vmul.f32 %v549, %v726
    %v748 = vadd.f32 %v696, %v747
    %v749 = vmul.f32 %v549, %v735
    %v750 = vadd.f32 %v698, %v749
    %v751 = vmul.f32 %v549, %v744
    %v752 = vadd.f32 %v700, %v751
    %s753 = scalar_lea.vmem [#allocation11], 32
    %754 = vst [vmem:[%s753] sm:$0xf] %v746
    %s755 = scalar_lea.vmem [#allocation11], 36
    %756 = vst [vmem:[%s755] sm:$0xf] %v748
    %s757 = scalar_lea.vmem [#allocation11], 40
    %758 = vst [vmem:[%s757] sm:$0xf] %v750
    %s759 = scalar_lea.vmem [#allocation11], 44
    %760 = vst [vmem:[%s759] sm:$0xf] %v752
    %s761 = sld [smem:[#allocation2 + $0x3]]
    %s762 = smul.f32 %s761, 0.5
    %v763 = vstv %s762
    %s764 = smul.f32 %s761, 0.16666667
    %v765 = vstv %s764
    %s766 = smul.f32 %s761, 0.33333334
    %v767 = vstv %s766
    %v768 = vstv %s761
    %v769 = vmul.f32 %v746, %v68
    %v770 = vmul.f32 %v748, %v70
    %v771 = vadd.f32 %v769, %v770
    %v772 = vmul.f32 %v750, %v72
    %v773 = vadd.f32 %v771, %v772
    %v774 = vmul.f32 %v752, %v74
    %v775 = vadd.f32 %v773, %v774
    %v776 = vadd.f32 %v775, %v100
    %v777 = vtanh.pop %v776
    %v778 = vmul.f32 %v746, %v76
    %v779 = vmul.f32 %v748, %v78
    %v780 = vadd.f32 %v778, %v779
    %v781 = vmul.f32 %v750, %v80
    %v782 = vadd.f32 %v780, %v781
    %v783 = vmul.f32 %v752, %v82
    %v784 = vadd.f32 %v782, %v783
    %v785 = vadd.f32 %v784, %v102
    %v786 = vtanh.pop %v785
    %v787 = vmul.f32 %v746, %v84
    %v788 = vmul.f32 %v748, %v86
    %v789 = vadd.f32 %v787, %v788
    %v790 = vmul.f32 %v750, %v88
    %v791 = vadd.f32 %v789, %v790
    %v792 = vmul.f32 %v752, %v90
    %v793 = vadd.f32 %v791, %v792
    %v794 = vadd.f32 %v793, %v104
    %v795 = vtanh.pop %v794
    %v796 = vmul.f32 %v746, %v92
    %v797 = vmul.f32 %v748, %v94
    %v798 = vadd.f32 %v796, %v797
    %v799 = vmul.f32 %v750, %v96
    %v800 = vadd.f32 %v798, %v799
    %v801 = vmul.f32 %v752, %v98
    %v802 = vadd.f32 %v800, %v801
    %v803 = vadd.f32 %v802, %v106
    %v804 = vtanh.pop %v803
    %v805 = vmul.f32 %v765, %v777
    %v806 = vadd.f32 %v746, %v805
    %v807 = vmul.f32 %v765, %v786
    %v808 = vadd.f32 %v748, %v807
    %v809 = vmul.f32 %v765, %v795
    %v810 = vadd.f32 %v750, %v809
    %v811 = vmul.f32 %v765, %v804
    %v812 = vadd.f32 %v752, %v811
    %v813 = vmul.f32 %v763, %v777
    %v814 = vadd.f32 %v746, %v813
    %v815 = vmul.f32 %v763, %v786
    %v816 = vadd.f32 %v748, %v815
    %v817 = vmul.f32 %v763, %v795
    %v818 = vadd.f32 %v750, %v817
    %v819 = vmul.f32 %v763, %v804
    %v820 = vadd.f32 %v752, %v819
    %v821 = vmul.f32 %v814, %v68
    %v822 = vmul.f32 %v816, %v70
    %v823 = vadd.f32 %v821, %v822
    %v824 = vmul.f32 %v818, %v72
    %v825 = vadd.f32 %v823, %v824
    %v826 = vmul.f32 %v820, %v74
    %v827 = vadd.f32 %v825, %v826
    %v828 = vadd.f32 %v827, %v100
    %v829 = vtanh.pop %v828
    %v830 = vmul.f32 %v814, %v76
    %v831 = vmul.f32 %v816, %v78
    %v832 = vadd.f32 %v830, %v831
    %v833 = vmul.f32 %v818, %v80
    %v834 = vadd.f32 %v832, %v833
    %v835 = vmul.f32 %v820, %v82
    %v836 = vadd.f32 %v834, %v835
    %v837 = vadd.f32 %v836, %v102
    %v838 = vtanh.pop %v837
    %v839 = vmul.f32 %v814, %v84
    %v840 = vmul.f32 %v816, %v86
    %v841 = vadd.f32 %v839, %v840
    %v842 = vmul.f32 %v818, %v88
    %v843 = vadd.f32 %v841, %v842
    %v844 = vmul.f32 %v820, %v90
    %v845 = vadd.f32 %v843, %v844
    %v846 = vadd.f32 %v845, %v104
    %v847 = vtanh.pop %v846
    %v848 = vmul.f32 %v814, %v92
    %v849 = vmul.f32 %v816, %v94
    %v850 = vadd.f32 %v848, %v849
    %v851 = vmul.f32 %v818, %v96
    %v852 = vadd.f32 %v850, %v851
    %v853 = vmul.f32 %v820, %v98
    %v854 = vadd.f32 %v852, %v853
    %v855 = vadd.f32 %v854, %v106
    %v856 = vtanh.pop %v855
    %v857 = vmul.f32 %v767, %v829
    %v858 = vadd.f32 %v806, %v857
    %v859 = vmul.f32 %v767, %v838
    %v860 = vadd.f32 %v808, %v859
    %v861 = vmul.f32 %v767, %v847
    %v862 = vadd.f32 %v810, %v861
    %v863 = vmul.f32 %v767, %v856
    %v864 = vadd.f32 %v812, %v863
    %v865 = vmul.f32 %v763, %v829
    %v866 = vadd.f32 %v746, %v865
    %v867 = vmul.f32 %v763, %v838
    %v868 = vadd.f32 %v748, %v867
    %v869 = vmul.f32 %v763, %v847
    %v870 = vadd.f32 %v750, %v869
    %v871 = vmul.f32 %v763, %v856
    %v872 = vadd.f32 %v752, %v871
    %v873 = vmul.f32 %v866, %v68
    %v874 = vmul.f32 %v868, %v70
    %v875 = vadd.f32 %v873, %v874
    %v876 = vmul.f32 %v870, %v72
    %v877 = vadd.f32 %v875, %v876
    %v878 = vmul.f32 %v872, %v74
    %v879 = vadd.f32 %v877, %v878
    %v880 = vadd.f32 %v879, %v100
    %v881 = vtanh.pop %v880
    %v882 = vmul.f32 %v866, %v76
    %v883 = vmul.f32 %v868, %v78
    %v884 = vadd.f32 %v882, %v883
    %v885 = vmul.f32 %v870, %v80
    %v886 = vadd.f32 %v884, %v885
    %v887 = vmul.f32 %v872, %v82
    %v888 = vadd.f32 %v886, %v887
    %v889 = vadd.f32 %v888, %v102
    %v890 = vtanh.pop %v889
    %v891 = vmul.f32 %v866, %v84
    %v892 = vmul.f32 %v868, %v86
    %v893 = vadd.f32 %v891, %v892
    %v894 = vmul.f32 %v870, %v88
    %v895 = vadd.f32 %v893, %v894
    %v896 = vmul.f32 %v872, %v90
    %v897 = vadd.f32 %v895, %v896
    %v898 = vadd.f32 %v897, %v104
    %v899 = vtanh.pop %v898
    %v900 = vmul.f32 %v866, %v92
    %v901 = vmul.f32 %v868, %v94
    %v902 = vadd.f32 %v900, %v901
    %v903 = vmul.f32 %v870, %v96
    %v904 = vadd.f32 %v902, %v903
    %v905 = vmul.f32 %v872, %v98
    %v906 = vadd.f32 %v904, %v905
    %v907 = vadd.f32 %v906, %v106
    %v908 = vtanh.pop %v907
    %v909 = vmul.f32 %v767, %v881
    %v910 = vadd.f32 %v858, %v909
    %v911 = vmul.f32 %v767, %v890
    %v912 = vadd.f32 %v860, %v911
    %v913 = vmul.f32 %v767, %v899
    %v914 = vadd.f32 %v862, %v913
    %v915 = vmul.f32 %v767, %v908
    %v916 = vadd.f32 %v864, %v915
    %v917 = vmul.f32 %v768, %v881
    %v918 = vadd.f32 %v746, %v917
    %v919 = vmul.f32 %v768, %v890
    %v920 = vadd.f32 %v748, %v919
    %v921 = vmul.f32 %v768, %v899
    %v922 = vadd.f32 %v750, %v921
    %v923 = vmul.f32 %v768, %v908
    %v924 = vadd.f32 %v752, %v923
    %v925 = vmul.f32 %v918, %v68
    %v926 = vmul.f32 %v920, %v70
    %v927 = vadd.f32 %v925, %v926
    %v928 = vmul.f32 %v922, %v72
    %v929 = vadd.f32 %v927, %v928
    %v930 = vmul.f32 %v924, %v74
    %v931 = vadd.f32 %v929, %v930
    %v932 = vadd.f32 %v931, %v100
    %v933 = vtanh.pop %v932
    %v934 = vmul.f32 %v918, %v76
    %v935 = vmul.f32 %v920, %v78
    %v936 = vadd.f32 %v934, %v935
    %v937 = vmul.f32 %v922, %v80
    %v938 = vadd.f32 %v936, %v937
    %v939 = vmul.f32 %v924, %v82
    %v940 = vadd.f32 %v938, %v939
    %v941 = vadd.f32 %v940, %v102
    %v942 = vtanh.pop %v941
    %v943 = vmul.f32 %v918, %v84
    %v944 = vmul.f32 %v920, %v86
    %v945 = vadd.f32 %v943, %v944
    %v946 = vmul.f32 %v922, %v88
    %v947 = vadd.f32 %v945, %v946
    %v948 = vmul.f32 %v924, %v90
    %v949 = vadd.f32 %v947, %v948
    %v950 = vadd.f32 %v949, %v104
    %v951 = vtanh.pop %v950
    %v952 = vmul.f32 %v918, %v92
    %v953 = vmul.f32 %v920, %v94
    %v954 = vadd.f32 %v952, %v953
    %v955 = vmul.f32 %v922, %v96
    %v956 = vadd.f32 %v954, %v955
    %v957 = vmul.f32 %v924, %v98
    %v958 = vadd.f32 %v956, %v957
    %v959 = vadd.f32 %v958, %v106
    %v960 = vtanh.pop %v959
    %v961 = vmul.f32 %v765, %v933
    %v962 = vadd.f32 %v910, %v961
    %v963 = vmul.f32 %v765, %v942
    %v964 = vadd.f32 %v912, %v963
    %v965 = vmul.f32 %v765, %v951
    %v966 = vadd.f32 %v914, %v965
    %v967 = vmul.f32 %v765, %v960
    %v968 = vadd.f32 %v916, %v967
    %s969 = scalar_lea.vmem [#allocation11], 48
    %970 = vst [vmem:[%s969] sm:$0xf] %v962
    %s971 = scalar_lea.vmem [#allocation11], 52
    %972 = vst [vmem:[%s971] sm:$0xf] %v964
    %s973 = scalar_lea.vmem [#allocation11], 56
    %974 = vst [vmem:[%s973] sm:$0xf] %v966
    %s975 = scalar_lea.vmem [#allocation11], 60
    %976 = vst [vmem:[%s975] sm:$0xf] %v968
    %s977 = sld [smem:[#allocation2 + $0x4]]
    %s978 = smul.f32 %s977, 0.5
    %v979 = vstv %s978
    %s980 = smul.f32 %s977, 0.16666667
    %v981 = vstv %s980
    %s982 = smul.f32 %s977, 0.33333334
    %v983 = vstv %s982
    %v984 = vstv %s977
    %v985 = vmul.f32 %v962, %v68
    %v986 = vmul.f32 %v964, %v70
    %v987 = vadd.f32 %v985, %v986
    %v988 = vmul.f32 %v966, %v72
    %v989 = vadd.f32 %v987, %v988
    %v990 = vmul.f32 %v968, %v74
    %v991 = vadd.f32 %v989, %v990
    %v992 = vadd.f32 %v991, %v100
    %v993 = vtanh.pop %v992
    %v994 = vmul.f32 %v962, %v76
    %v995 = vmul.f32 %v964, %v78
    %v996 = vadd.f32 %v994, %v995
    %v997 = vmul.f32 %v966, %v80
    %v998 = vadd.f32 %v996, %v997
    %v999 = vmul.f32 %v968, %v82
    %v1000 = vadd.f32 %v998, %v999
    %v1001 = vadd.f32 %v1000, %v102
    %v1002 = vtanh.pop %v1001
    %v1003 = vmul.f32 %v962, %v84
    %v1004 = vmul.f32 %v964, %v86
    %v1005 = vadd.f32 %v1003, %v1004
    %v1006 = vmul.f32 %v966, %v88
    %v1007 = vadd.f32 %v1005, %v1006
    %v1008 = vmul.f32 %v968, %v90
    %v1009 = vadd.f32 %v1007, %v1008
    %v1010 = vadd.f32 %v1009, %v104
    %v1011 = vtanh.pop %v1010
    %v1012 = vmul.f32 %v962, %v92
    %v1013 = vmul.f32 %v964, %v94
    %v1014 = vadd.f32 %v1012, %v1013
    %v1015 = vmul.f32 %v966, %v96
    %v1016 = vadd.f32 %v1014, %v1015
    %v1017 = vmul.f32 %v968, %v98
    %v1018 = vadd.f32 %v1016, %v1017
    %v1019 = vadd.f32 %v1018, %v106
    %v1020 = vtanh.pop %v1019
    %v1021 = vmul.f32 %v981, %v993
    %v1022 = vadd.f32 %v962, %v1021
    %v1023 = vmul.f32 %v981, %v1002
    %v1024 = vadd.f32 %v964, %v1023
    %v1025 = vmul.f32 %v981, %v1011
    %v1026 = vadd.f32 %v966, %v1025
    %v1027 = vmul.f32 %v981, %v1020
    %v1028 = vadd.f32 %v968, %v1027
    %v1029 = vmul.f32 %v979, %v993
    %v1030 = vadd.f32 %v962, %v1029
    %v1031 = vmul.f32 %v979, %v1002
    %v1032 = vadd.f32 %v964, %v1031
    %v1033 = vmul.f32 %v979, %v1011
    %v1034 = vadd.f32 %v966, %v1033
    %v1035 = vmul.f32 %v979, %v1020
    %v1036 = vadd.f32 %v968, %v1035
    %v1037 = vmul.f32 %v1030, %v68
    %v1038 = vmul.f32 %v1032, %v70
    %v1039 = vadd.f32 %v1037, %v1038
    %v1040 = vmul.f32 %v1034, %v72
    %v1041 = vadd.f32 %v1039, %v1040
    %v1042 = vmul.f32 %v1036, %v74
    %v1043 = vadd.f32 %v1041, %v1042
    %v1044 = vadd.f32 %v1043, %v100
    %v1045 = vtanh.pop %v1044
    %v1046 = vmul.f32 %v1030, %v76
    %v1047 = vmul.f32 %v1032, %v78
    %v1048 = vadd.f32 %v1046, %v1047
    %v1049 = vmul.f32 %v1034, %v80
    %v1050 = vadd.f32 %v1048, %v1049
    %v1051 = vmul.f32 %v1036, %v82
    %v1052 = vadd.f32 %v1050, %v1051
    %v1053 = vadd.f32 %v1052, %v102
    %v1054 = vtanh.pop %v1053
    %v1055 = vmul.f32 %v1030, %v84
    %v1056 = vmul.f32 %v1032, %v86
    %v1057 = vadd.f32 %v1055, %v1056
    %v1058 = vmul.f32 %v1034, %v88
    %v1059 = vadd.f32 %v1057, %v1058
    %v1060 = vmul.f32 %v1036, %v90
    %v1061 = vadd.f32 %v1059, %v1060
    %v1062 = vadd.f32 %v1061, %v104
    %v1063 = vtanh.pop %v1062
    %v1064 = vmul.f32 %v1030, %v92
    %v1065 = vmul.f32 %v1032, %v94
    %v1066 = vadd.f32 %v1064, %v1065
    %v1067 = vmul.f32 %v1034, %v96
    %v1068 = vadd.f32 %v1066, %v1067
    %v1069 = vmul.f32 %v1036, %v98
    %v1070 = vadd.f32 %v1068, %v1069
    %v1071 = vadd.f32 %v1070, %v106
    %v1072 = vtanh.pop %v1071
    %v1073 = vmul.f32 %v983, %v1045
    %v1074 = vadd.f32 %v1022, %v1073
    %v1075 = vmul.f32 %v983, %v1054
    %v1076 = vadd.f32 %v1024, %v1075
    %v1077 = vmul.f32 %v983, %v1063
    %v1078 = vadd.f32 %v1026, %v1077
    %v1079 = vmul.f32 %v983, %v1072
    %v1080 = vadd.f32 %v1028, %v1079
    %v1081 = vmul.f32 %v979, %v1045
    %v1082 = vadd.f32 %v962, %v1081
    %v1083 = vmul.f32 %v979, %v1054
    %v1084 = vadd.f32 %v964, %v1083
    %v1085 = vmul.f32 %v979, %v1063
    %v1086 = vadd.f32 %v966, %v1085
    %v1087 = vmul.f32 %v979, %v1072
    %v1088 = vadd.f32 %v968, %v1087
    %v1089 = vmul.f32 %v1082, %v68
    %v1090 = vmul.f32 %v1084, %v70
    %v1091 = vadd.f32 %v1089, %v1090
    %v1092 = vmul.f32 %v1086, %v72
    %v1093 = vadd.f32 %v1091, %v1092
    %v1094 = vmul.f32 %v1088, %v74
    %v1095 = vadd.f32 %v1093, %v1094
    %v1096 = vadd.f32 %v1095, %v100
    %v1097 = vtanh.pop %v1096
    %v1098 = vmul.f32 %v1082, %v76
    %v1099 = vmul.f32 %v1084, %v78
    %v1100 = vadd.f32 %v1098, %v1099
    %v1101 = vmul.f32 %v1086, %v80
    %v1102 = vadd.f32 %v1100, %v1101
    %v1103 = vmul.f32 %v1088, %v82
    %v1104 = vadd.f32 %v1102, %v1103
    %v1105 = vadd.f32 %v1104, %v102
    %v1106 = vtanh.pop %v1105
    %v1107 = vmul.f32 %v1082, %v84
    %v1108 = vmul.f32 %v1084, %v86
    %v1109 = vadd.f32 %v1107, %v1108
    %v1110 = vmul.f32 %v1086, %v88
    %v1111 = vadd.f32 %v1109, %v1110
    %v1112 = vmul.f32 %v1088, %v90
    %v1113 = vadd.f32 %v1111, %v1112
    %v1114 = vadd.f32 %v1113, %v104
    %v1115 = vtanh.pop %v1114
    %v1116 = vmul.f32 %v1082, %v92
    %v1117 = vmul.f32 %v1084, %v94
    %v1118 = vadd.f32 %v1116, %v1117
    %v1119 = vmul.f32 %v1086, %v96
    %v1120 = vadd.f32 %v1118, %v1119
    %v1121 = vmul.f32 %v1088, %v98
    %v1122 = vadd.f32 %v1120, %v1121
    %v1123 = vadd.f32 %v1122, %v106
    %v1124 = vtanh.pop %v1123
    %v1125 = vmul.f32 %v983, %v1097
    %v1126 = vadd.f32 %v1074, %v1125
    %v1127 = vmul.f32 %v983, %v1106
    %v1128 = vadd.f32 %v1076, %v1127
    %v1129 = vmul.f32 %v983, %v1115
    %v1130 = vadd.f32 %v1078, %v1129
    %v1131 = vmul.f32 %v983, %v1124
    %v1132 = vadd.f32 %v1080, %v1131
    %v1133 = vmul.f32 %v984, %v1097
    %v1134 = vadd.f32 %v962, %v1133
    %v1135 = vmul.f32 %v984, %v1106
    %v1136 = vadd.f32 %v964, %v1135
    %v1137 = vmul.f32 %v984, %v1115
    %v1138 = vadd.f32 %v966, %v1137
    %v1139 = vmul.f32 %v984, %v1124
    %v1140 = vadd.f32 %v968, %v1139
    %v1141 = vmul.f32 %v1134, %v68
    %v1142 = vmul.f32 %v1136, %v70
    %v1143 = vadd.f32 %v1141, %v1142
    %v1144 = vmul.f32 %v1138, %v72
    %v1145 = vadd.f32 %v1143, %v1144
    %v1146 = vmul.f32 %v1140, %v74
    %v1147 = vadd.f32 %v1145, %v1146
    %v1148 = vadd.f32 %v1147, %v100
    %v1149 = vtanh.pop %v1148
    %v1150 = vmul.f32 %v1134, %v76
    %v1151 = vmul.f32 %v1136, %v78
    %v1152 = vadd.f32 %v1150, %v1151
    %v1153 = vmul.f32 %v1138, %v80
    %v1154 = vadd.f32 %v1152, %v1153
    %v1155 = vmul.f32 %v1140, %v82
    %v1156 = vadd.f32 %v1154, %v1155
    %v1157 = vadd.f32 %v1156, %v102
    %v1158 = vtanh.pop %v1157
    %v1159 = vmul.f32 %v1134, %v84
    %v1160 = vmul.f32 %v1136, %v86
    %v1161 = vadd.f32 %v1159, %v1160
    %v1162 = vmul.f32 %v1138, %v88
    %v1163 = vadd.f32 %v1161, %v1162
    %v1164 = vmul.f32 %v1140, %v90
    %v1165 = vadd.f32 %v1163, %v1164
    %v1166 = vadd.f32 %v1165, %v104
    %v1167 = vtanh.pop %v1166
    %v1168 = vmul.f32 %v1134, %v92
    %v1169 = vmul.f32 %v1136, %v94
    %v1170 = vadd.f32 %v1168, %v1169
    %v1171 = vmul.f32 %v1138, %v96
    %v1172 = vadd.f32 %v1170, %v1171
    %v1173 = vmul.f32 %v1140, %v98
    %v1174 = vadd.f32 %v1172, %v1173
    %v1175 = vadd.f32 %v1174, %v106
    %v1176 = vtanh.pop %v1175
    %v1177 = vmul.f32 %v981, %v1149
    %v1178 = vadd.f32 %v1126, %v1177
    %v1179 = vmul.f32 %v981, %v1158
    %v1180 = vadd.f32 %v1128, %v1179
    %v1181 = vmul.f32 %v981, %v1167
    %v1182 = vadd.f32 %v1130, %v1181
    %v1183 = vmul.f32 %v981, %v1176
    %v1184 = vadd.f32 %v1132, %v1183
    %s1185 = scalar_lea.vmem [#allocation11], 64
    %1186 = vst [vmem:[%s1185] sm:$0xf] %v1178
    %s1187 = scalar_lea.vmem [#allocation11], 68
    %1188 = vst [vmem:[%s1187] sm:$0xf] %v1180
    %s1189 = scalar_lea.vmem [#allocation11], 72
    %1190 = vst [vmem:[%s1189] sm:$0xf] %v1182
    %s1191 = scalar_lea.vmem [#allocation11], 76
    %1192 = vst [vmem:[%s1191] sm:$0xf] %v1184
    %s1193 = sld [smem:[#allocation2 + $0x5]]
    %s1194 = smul.f32 %s1193, 0.5
    %v1195 = vstv %s1194
    %s1196 = smul.f32 %s1193, 0.16666667
    %v1197 = vstv %s1196
    %s1198 = smul.f32 %s1193, 0.33333334
    %v1199 = vstv %s1198
    %v1200 = vstv %s1193
    %v1201 = vmul.f32 %v1178, %v68
    %v1202 = vmul.f32 %v1180, %v70
    %v1203 = vadd.f32 %v1201, %v1202
    %v1204 = vmul.f32 %v1182, %v72
    %v1205 = vadd.f32 %v1203, %v1204
    %v1206 = vmul.f32 %v1184, %v74
    %v1207 = vadd.f32 %v1205, %v1206
    %v1208 = vadd.f32 %v1207, %v100
    %v1209 = vtanh.pop %v1208
    %v1210 = vmul.f32 %v1178, %v76
    %v1211 = vmul.f32 %v1180, %v78
    %v1212 = vadd.f32 %v1210, %v1211
    %v1213 = vmul.f32 %v1182, %v80
    %v1214 = vadd.f32 %v1212, %v1213
    %v1215 = vmul.f32 %v1184, %v82
    %v1216 = vadd.f32 %v1214, %v1215
    %v1217 = vadd.f32 %v1216, %v102
    %v1218 = vtanh.pop %v1217
    %v1219 = vmul.f32 %v1178, %v84
    %v1220 = vmul.f32 %v1180, %v86
    %v1221 = vadd.f32 %v1219, %v1220
    %v1222 = vmul.f32 %v1182, %v88
    %v1223 = vadd.f32 %v1221, %v1222
    %v1224 = vmul.f32 %v1184, %v90
    %v1225 = vadd.f32 %v1223, %v1224
    %v1226 = vadd.f32 %v1225, %v104
    %v1227 = vtanh.pop %v1226
    %v1228 = vmul.f32 %v1178, %v92
    %v1229 = vmul.f32 %v1180, %v94
    %v1230 = vadd.f32 %v1228, %v1229
    %v1231 = vmul.f32 %v1182, %v96
    %v1232 = vadd.f32 %v1230, %v1231
    %v1233 = vmul.f32 %v1184, %v98
    %v1234 = vadd.f32 %v1232, %v1233
    %v1235 = vadd.f32 %v1234, %v106
    %v1236 = vtanh.pop %v1235
    %v1237 = vmul.f32 %v1197, %v1209
    %v1238 = vadd.f32 %v1178, %v1237
    %v1239 = vmul.f32 %v1197, %v1218
    %v1240 = vadd.f32 %v1180, %v1239
    %v1241 = vmul.f32 %v1197, %v1227
    %v1242 = vadd.f32 %v1182, %v1241
    %v1243 = vmul.f32 %v1197, %v1236
    %v1244 = vadd.f32 %v1184, %v1243
    %v1245 = vmul.f32 %v1195, %v1209
    %v1246 = vadd.f32 %v1178, %v1245
    %v1247 = vmul.f32 %v1195, %v1218
    %v1248 = vadd.f32 %v1180, %v1247
    %v1249 = vmul.f32 %v1195, %v1227
    %v1250 = vadd.f32 %v1182, %v1249
    %v1251 = vmul.f32 %v1195, %v1236
    %v1252 = vadd.f32 %v1184, %v1251
    %v1253 = vmul.f32 %v1246, %v68
    %v1254 = vmul.f32 %v1248, %v70
    %v1255 = vadd.f32 %v1253, %v1254
    %v1256 = vmul.f32 %v1250, %v72
    %v1257 = vadd.f32 %v1255, %v1256
    %v1258 = vmul.f32 %v1252, %v74
    %v1259 = vadd.f32 %v1257, %v1258
    %v1260 = vadd.f32 %v1259, %v100
    %v1261 = vtanh.pop %v1260
    %v1262 = vmul.f32 %v1246, %v76
    %v1263 = vmul.f32 %v1248, %v78
    %v1264 = vadd.f32 %v1262, %v1263
    %v1265 = vmul.f32 %v1250, %v80
    %v1266 = vadd.f32 %v1264, %v1265
    %v1267 = vmul.f32 %v1252, %v82
    %v1268 = vadd.f32 %v1266, %v1267
    %v1269 = vadd.f32 %v1268, %v102
    %v1270 = vtanh.pop %v1269
    %v1271 = vmul.f32 %v1246, %v84
    %v1272 = vmul.f32 %v1248, %v86
    %v1273 = vadd.f32 %v1271, %v1272
    %v1274 = vmul.f32 %v1250, %v88
    %v1275 = vadd.f32 %v1273, %v1274
    %v1276 = vmul.f32 %v1252, %v90
    %v1277 = vadd.f32 %v1275, %v1276
    %v1278 = vadd.f32 %v1277, %v104
    %v1279 = vtanh.pop %v1278
    %v1280 = vmul.f32 %v1246, %v92
    %v1281 = vmul.f32 %v1248, %v94
    %v1282 = vadd.f32 %v1280, %v1281
    %v1283 = vmul.f32 %v1250, %v96
    %v1284 = vadd.f32 %v1282, %v1283
    %v1285 = vmul.f32 %v1252, %v98
    %v1286 = vadd.f32 %v1284, %v1285
    %v1287 = vadd.f32 %v1286, %v106
    %v1288 = vtanh.pop %v1287
    %v1289 = vmul.f32 %v1199, %v1261
    %v1290 = vadd.f32 %v1238, %v1289
    %v1291 = vmul.f32 %v1199, %v1270
    %v1292 = vadd.f32 %v1240, %v1291
    %v1293 = vmul.f32 %v1199, %v1279
    %v1294 = vadd.f32 %v1242, %v1293
    %v1295 = vmul.f32 %v1199, %v1288
    %v1296 = vadd.f32 %v1244, %v1295
    %v1297 = vmul.f32 %v1195, %v1261
    %v1298 = vadd.f32 %v1178, %v1297
    %v1299 = vmul.f32 %v1195, %v1270
    %v1300 = vadd.f32 %v1180, %v1299
    %v1301 = vmul.f32 %v1195, %v1279
    %v1302 = vadd.f32 %v1182, %v1301
    %v1303 = vmul.f32 %v1195, %v1288
    %v1304 = vadd.f32 %v1184, %v1303
    %v1305 = vmul.f32 %v1298, %v68
    %v1306 = vmul.f32 %v1300, %v70
    %v1307 = vadd.f32 %v1305, %v1306
    %v1308 = vmul.f32 %v1302, %v72
    %v1309 = vadd.f32 %v1307, %v1308
    %v1310 = vmul.f32 %v1304, %v74
    %v1311 = vadd.f32 %v1309, %v1310
    %v1312 = vadd.f32 %v1311, %v100
    %v1313 = vtanh.pop %v1312
    %v1314 = vmul.f32 %v1298, %v76
    %v1315 = vmul.f32 %v1300, %v78
    %v1316 = vadd.f32 %v1314, %v1315
    %v1317 = vmul.f32 %v1302, %v80
    %v1318 = vadd.f32 %v1316, %v1317
    %v1319 = vmul.f32 %v1304, %v82
    %v1320 = vadd.f32 %v1318, %v1319
    %v1321 = vadd.f32 %v1320, %v102
    %v1322 = vtanh.pop %v1321
    %v1323 = vmul.f32 %v1298, %v84
    %v1324 = vmul.f32 %v1300, %v86
    %v1325 = vadd.f32 %v1323, %v1324
    %v1326 = vmul.f32 %v1302, %v88
    %v1327 = vadd.f32 %v1325, %v1326
    %v1328 = vmul.f32 %v1304, %v90
    %v1329 = vadd.f32 %v1327, %v1328
    %v1330 = vadd.f32 %v1329, %v104
    %v1331 = vtanh.pop %v1330
    %v1332 = vmul.f32 %v1298, %v92
    %v1333 = vmul.f32 %v1300, %v94
    %v1334 = vadd.f32 %v1332, %v1333
    %v1335 = vmul.f32 %v1302, %v96
    %v1336 = vadd.f32 %v1334, %v1335
    %v1337 = vmul.f32 %v1304, %v98
    %v1338 = vadd.f32 %v1336, %v1337
    %v1339 = vadd.f32 %v1338, %v106
    %v1340 = vtanh.pop %v1339
    %v1341 = vmul.f32 %v1199, %v1313
    %v1342 = vadd.f32 %v1290, %v1341
    %v1343 = vmul.f32 %v1199, %v1322
    %v1344 = vadd.f32 %v1292, %v1343
    %v1345 = vmul.f32 %v1199, %v1331
    %v1346 = vadd.f32 %v1294, %v1345
    %v1347 = vmul.f32 %v1199, %v1340
    %v1348 = vadd.f32 %v1296, %v1347
    %v1349 = vmul.f32 %v1200, %v1313
    %v1350 = vadd.f32 %v1178, %v1349
    %v1351 = vmul.f32 %v1200, %v1322
    %v1352 = vadd.f32 %v1180, %v1351
    %v1353 = vmul.f32 %v1200, %v1331
    %v1354 = vadd.f32 %v1182, %v1353
    %v1355 = vmul.f32 %v1200, %v1340
    %v1356 = vadd.f32 %v1184, %v1355
    %v1357 = vmul.f32 %v1350, %v68
    %v1358 = vmul.f32 %v1352, %v70
    %v1359 = vadd.f32 %v1357, %v1358
    %v1360 = vmul.f32 %v1354, %v72
    %v1361 = vadd.f32 %v1359, %v1360
    %v1362 = vmul.f32 %v1356, %v74
    %v1363 = vadd.f32 %v1361, %v1362
    %v1364 = vadd.f32 %v1363, %v100
    %v1365 = vtanh.pop %v1364
    %v1366 = vmul.f32 %v1350, %v76
    %v1367 = vmul.f32 %v1352, %v78
    %v1368 = vadd.f32 %v1366, %v1367
    %v1369 = vmul.f32 %v1354, %v80
    %v1370 = vadd.f32 %v1368, %v1369
    %v1371 = vmul.f32 %v1356, %v82
    %v1372 = vadd.f32 %v1370, %v1371
    %v1373 = vadd.f32 %v1372, %v102
    %v1374 = vtanh.pop %v1373
    %v1375 = vmul.f32 %v1350, %v84
    %v1376 = vmul.f32 %v1352, %v86
    %v1377 = vadd.f32 %v1375, %v1376
    %v1378 = vmul.f32 %v1354, %v88
    %v1379 = vadd.f32 %v1377, %v1378
    %v1380 = vmul.f32 %v1356, %v90
    %v1381 = vadd.f32 %v1379, %v1380
    %v1382 = vadd.f32 %v1381, %v104
    %v1383 = vtanh.pop %v1382
    %v1384 = vmul.f32 %v1350, %v92
    %v1385 = vmul.f32 %v1352, %v94
    %v1386 = vadd.f32 %v1384, %v1385
    %v1387 = vmul.f32 %v1354, %v96
    %v1388 = vadd.f32 %v1386, %v1387
    %v1389 = vmul.f32 %v1356, %v98
    %v1390 = vadd.f32 %v1388, %v1389
    %v1391 = vadd.f32 %v1390, %v106
    %v1392 = vtanh.pop %v1391
    %v1393 = vmul.f32 %v1197, %v1365
    %v1394 = vadd.f32 %v1342, %v1393
    %v1395 = vmul.f32 %v1197, %v1374
    %v1396 = vadd.f32 %v1344, %v1395
    %v1397 = vmul.f32 %v1197, %v1383
    %v1398 = vadd.f32 %v1346, %v1397
    %v1399 = vmul.f32 %v1197, %v1392
    %v1400 = vadd.f32 %v1348, %v1399
    %s1401 = scalar_lea.vmem [#allocation11], 80
    %1402 = vst [vmem:[%s1401] sm:$0xf] %v1394
    %s1403 = scalar_lea.vmem [#allocation11], 84
    %1404 = vst [vmem:[%s1403] sm:$0xf] %v1396
    %s1405 = scalar_lea.vmem [#allocation11], 88
    %1406 = vst [vmem:[%s1405] sm:$0xf] %v1398
    %s1407 = scalar_lea.vmem [#allocation11], 92
    %1408 = vst [vmem:[%s1407] sm:$0xf] %v1400
    %s1409 = sld [smem:[#allocation2 + $0x6]]
    %s1410 = smul.f32 %s1409, 0.5
    %v1411 = vstv %s1410
    %s1412 = smul.f32 %s1409, 0.16666667
    %v1413 = vstv %s1412
    %s1414 = smul.f32 %s1409, 0.33333334
    %v1415 = vstv %s1414
    %v1416 = vstv %s1409
    %v1417 = vmul.f32 %v1394, %v68
    %v1418 = vmul.f32 %v1396, %v70
    %v1419 = vadd.f32 %v1417, %v1418
    %v1420 = vmul.f32 %v1398, %v72
    %v1421 = vadd.f32 %v1419, %v1420
    %v1422 = vmul.f32 %v1400, %v74
    %v1423 = vadd.f32 %v1421, %v1422
    %v1424 = vadd.f32 %v1423, %v100
    %v1425 = vtanh.pop %v1424
    %v1426 = vmul.f32 %v1394, %v76
    %v1427 = vmul.f32 %v1396, %v78
    %v1428 = vadd.f32 %v1426, %v1427
    %v1429 = vmul.f32 %v1398, %v80
    %v1430 = vadd.f32 %v1428, %v1429
    %v1431 = vmul.f32 %v1400, %v82
    %v1432 = vadd.f32 %v1430, %v1431
    %v1433 = vadd.f32 %v1432, %v102
    %v1434 = vtanh.pop %v1433
    %v1435 = vmul.f32 %v1394, %v84
    %v1436 = vmul.f32 %v1396, %v86
    %v1437 = vadd.f32 %v1435, %v1436
    %v1438 = vmul.f32 %v1398, %v88
    %v1439 = vadd.f32 %v1437, %v1438
    %v1440 = vmul.f32 %v1400, %v90
    %v1441 = vadd.f32 %v1439, %v1440
    %v1442 = vadd.f32 %v1441, %v104
    %v1443 = vtanh.pop %v1442
    %v1444 = vmul.f32 %v1394, %v92
    %v1445 = vmul.f32 %v1396, %v94
    %v1446 = vadd.f32 %v1444, %v1445
    %v1447 = vmul.f32 %v1398, %v96
    %v1448 = vadd.f32 %v1446, %v1447
    %v1449 = vmul.f32 %v1400, %v98
    %v1450 = vadd.f32 %v1448, %v1449
    %v1451 = vadd.f32 %v1450, %v106
    %v1452 = vtanh.pop %v1451
    %v1453 = vmul.f32 %v1413, %v1425
    %v1454 = vadd.f32 %v1394, %v1453
    %v1455 = vmul.f32 %v1413, %v1434
    %v1456 = vadd.f32 %v1396, %v1455
    %v1457 = vmul.f32 %v1413, %v1443
    %v1458 = vadd.f32 %v1398, %v1457
    %v1459 = vmul.f32 %v1413, %v1452
    %v1460 = vadd.f32 %v1400, %v1459
    %v1461 = vmul.f32 %v1411, %v1425
    %v1462 = vadd.f32 %v1394, %v1461
    %v1463 = vmul.f32 %v1411, %v1434
    %v1464 = vadd.f32 %v1396, %v1463
    %v1465 = vmul.f32 %v1411, %v1443
    %v1466 = vadd.f32 %v1398, %v1465
    %v1467 = vmul.f32 %v1411, %v1452
    %v1468 = vadd.f32 %v1400, %v1467
    %v1469 = vmul.f32 %v1462, %v68
    %v1470 = vmul.f32 %v1464, %v70
    %v1471 = vadd.f32 %v1469, %v1470
    %v1472 = vmul.f32 %v1466, %v72
    %v1473 = vadd.f32 %v1471, %v1472
    %v1474 = vmul.f32 %v1468, %v74
    %v1475 = vadd.f32 %v1473, %v1474
    %v1476 = vadd.f32 %v1475, %v100
    %v1477 = vtanh.pop %v1476
    %v1478 = vmul.f32 %v1462, %v76
    %v1479 = vmul.f32 %v1464, %v78
    %v1480 = vadd.f32 %v1478, %v1479
    %v1481 = vmul.f32 %v1466, %v80
    %v1482 = vadd.f32 %v1480, %v1481
    %v1483 = vmul.f32 %v1468, %v82
    %v1484 = vadd.f32 %v1482, %v1483
    %v1485 = vadd.f32 %v1484, %v102
    %v1486 = vtanh.pop %v1485
    %v1487 = vmul.f32 %v1462, %v84
    %v1488 = vmul.f32 %v1464, %v86
    %v1489 = vadd.f32 %v1487, %v1488
    %v1490 = vmul.f32 %v1466, %v88
    %v1491 = vadd.f32 %v1489, %v1490
    %v1492 = vmul.f32 %v1468, %v90
    %v1493 = vadd.f32 %v1491, %v1492
    %v1494 = vadd.f32 %v1493, %v104
    %v1495 = vtanh.pop %v1494
    %v1496 = vmul.f32 %v1462, %v92
    %v1497 = vmul.f32 %v1464, %v94
    %v1498 = vadd.f32 %v1496, %v1497
    %v1499 = vmul.f32 %v1466, %v96
    %v1500 = vadd.f32 %v1498, %v1499
    %v1501 = vmul.f32 %v1468, %v98
    %v1502 = vadd.f32 %v1500, %v1501
    %v1503 = vadd.f32 %v1502, %v106
    %v1504 = vtanh.pop %v1503
    %v1505 = vmul.f32 %v1415, %v1477
    %v1506 = vadd.f32 %v1454, %v1505
    %v1507 = vmul.f32 %v1415, %v1486
    %v1508 = vadd.f32 %v1456, %v1507
    %v1509 = vmul.f32 %v1415, %v1495
    %v1510 = vadd.f32 %v1458, %v1509
    %v1511 = vmul.f32 %v1415, %v1504
    %v1512 = vadd.f32 %v1460, %v1511
    %v1513 = vmul.f32 %v1411, %v1477
    %v1514 = vadd.f32 %v1394, %v1513
    %v1515 = vmul.f32 %v1411, %v1486
    %v1516 = vadd.f32 %v1396, %v1515
    %v1517 = vmul.f32 %v1411, %v1495
    %v1518 = vadd.f32 %v1398, %v1517
    %v1519 = vmul.f32 %v1411, %v1504
    %v1520 = vadd.f32 %v1400, %v1519
    %v1521 = vmul.f32 %v1514, %v68
    %v1522 = vmul.f32 %v1516, %v70
    %v1523 = vadd.f32 %v1521, %v1522
    %v1524 = vmul.f32 %v1518, %v72
    %v1525 = vadd.f32 %v1523, %v1524
    %v1526 = vmul.f32 %v1520, %v74
    %v1527 = vadd.f32 %v1525, %v1526
    %v1528 = vadd.f32 %v1527, %v100
    %v1529 = vtanh.pop %v1528
    %v1530 = vmul.f32 %v1514, %v76
    %v1531 = vmul.f32 %v1516, %v78
    %v1532 = vadd.f32 %v1530, %v1531
    %v1533 = vmul.f32 %v1518, %v80
    %v1534 = vadd.f32 %v1532, %v1533
    %v1535 = vmul.f32 %v1520, %v82
    %v1536 = vadd.f32 %v1534, %v1535
    %v1537 = vadd.f32 %v1536, %v102
    %v1538 = vtanh.pop %v1537
    %v1539 = vmul.f32 %v1514, %v84
    %v1540 = vmul.f32 %v1516, %v86
    %v1541 = vadd.f32 %v1539, %v1540
    %v1542 = vmul.f32 %v1518, %v88
    %v1543 = vadd.f32 %v1541, %v1542
    %v1544 = vmul.f32 %v1520, %v90
    %v1545 = vadd.f32 %v1543, %v1544
    %v1546 = vadd.f32 %v1545, %v104
    %v1547 = vtanh.pop %v1546
    %v1548 = vmul.f32 %v1514, %v92
    %v1549 = vmul.f32 %v1516, %v94
    %v1550 = vadd.f32 %v1548, %v1549
    %v1551 = vmul.f32 %v1518, %v96
    %v1552 = vadd.f32 %v1550, %v1551
    %v1553 = vmul.f32 %v1520, %v98
    %v1554 = vadd.f32 %v1552, %v1553
    %v1555 = vadd.f32 %v1554, %v106
    %v1556 = vtanh.pop %v1555
    %v1557 = vmul.f32 %v1415, %v1529
    %v1558 = vadd.f32 %v1506, %v1557
    %v1559 = vmul.f32 %v1415, %v1538
    %v1560 = vadd.f32 %v1508, %v1559
    %v1561 = vmul.f32 %v1415, %v1547
    %v1562 = vadd.f32 %v1510, %v1561
    %v1563 = vmul.f32 %v1415, %v1556
    %v1564 = vadd.f32 %v1512, %v1563
    %v1565 = vmul.f32 %v1416, %v1529
    %v1566 = vadd.f32 %v1394, %v1565
    %v1567 = vmul.f32 %v1416, %v1538
    %v1568 = vadd.f32 %v1396, %v1567
    %v1569 = vmul.f32 %v1416, %v1547
    %v1570 = vadd.f32 %v1398, %v1569
    %v1571 = vmul.f32 %v1416, %v1556
    %v1572 = vadd.f32 %v1400, %v1571
    %v1573 = vmul.f32 %v1566, %v68
    %v1574 = vmul.f32 %v1568, %v70
    %v1575 = vadd.f32 %v1573, %v1574
    %v1576 = vmul.f32 %v1570, %v72
    %v1577 = vadd.f32 %v1575, %v1576
    %v1578 = vmul.f32 %v1572, %v74
    %v1579 = vadd.f32 %v1577, %v1578
    %v1580 = vadd.f32 %v1579, %v100
    %v1581 = vtanh.pop %v1580
    %v1582 = vmul.f32 %v1566, %v76
    %v1583 = vmul.f32 %v1568, %v78
    %v1584 = vadd.f32 %v1582, %v1583
    %v1585 = vmul.f32 %v1570, %v80
    %v1586 = vadd.f32 %v1584, %v1585
    %v1587 = vmul.f32 %v1572, %v82
    %v1588 = vadd.f32 %v1586, %v1587
    %v1589 = vadd.f32 %v1588, %v102
    %v1590 = vtanh.pop %v1589
    %v1591 = vmul.f32 %v1566, %v84
    %v1592 = vmul.f32 %v1568, %v86
    %v1593 = vadd.f32 %v1591, %v1592
    %v1594 = vmul.f32 %v1570, %v88
    %v1595 = vadd.f32 %v1593, %v1594
    %v1596 = vmul.f32 %v1572, %v90
    %v1597 = vadd.f32 %v1595, %v1596
    %v1598 = vadd.f32 %v1597, %v104
    %v1599 = vtanh.pop %v1598
    %v1600 = vmul.f32 %v1566, %v92
    %v1601 = vmul.f32 %v1568, %v94
    %v1602 = vadd.f32 %v1600, %v1601
    %v1603 = vmul.f32 %v1570, %v96
    %v1604 = vadd.f32 %v1602, %v1603
    %v1605 = vmul.f32 %v1572, %v98
    %v1606 = vadd.f32 %v1604, %v1605
    %v1607 = vadd.f32 %v1606, %v106
    %v1608 = vtanh.pop %v1607
    %v1609 = vmul.f32 %v1413, %v1581
    %v1610 = vadd.f32 %v1558, %v1609
    %v1611 = vmul.f32 %v1413, %v1590
    %v1612 = vadd.f32 %v1560, %v1611
    %v1613 = vmul.f32 %v1413, %v1599
    %v1614 = vadd.f32 %v1562, %v1613
    %v1615 = vmul.f32 %v1413, %v1608
    %v1616 = vadd.f32 %v1564, %v1615
    %s1617 = scalar_lea.vmem [#allocation11], 96
    %1618 = vst [vmem:[%s1617] sm:$0xf] %v1610
    %s1619 = scalar_lea.vmem [#allocation11], 100
    %1620 = vst [vmem:[%s1619] sm:$0xf] %v1612
    %s1621 = scalar_lea.vmem [#allocation11], 104
    %1622 = vst [vmem:[%s1621] sm:$0xf] %v1614
    %s1623 = scalar_lea.vmem [#allocation11], 108
    %1624 = vst [vmem:[%s1623] sm:$0xf] %v1616
    %s1625 = sld [smem:[#allocation2 + $0x7]]
    %s1626 = smul.f32 %s1625, 0.5
    %v1627 = vstv %s1626
    %s1628 = smul.f32 %s1625, 0.16666667
    %v1629 = vstv %s1628
    %s1630 = smul.f32 %s1625, 0.33333334
    %v1631 = vstv %s1630
    %v1632 = vstv %s1625
    %v1633 = vmul.f32 %v1610, %v68
    %v1634 = vmul.f32 %v1612, %v70
    %v1635 = vadd.f32 %v1633, %v1634
    %v1636 = vmul.f32 %v1614, %v72
    %v1637 = vadd.f32 %v1635, %v1636
    %v1638 = vmul.f32 %v1616, %v74
    %v1639 = vadd.f32 %v1637, %v1638
    %v1640 = vadd.f32 %v1639, %v100
    %v1641 = vtanh.pop %v1640
    %v1642 = vmul.f32 %v1610, %v76
    %v1643 = vmul.f32 %v1612, %v78
    %v1644 = vadd.f32 %v1642, %v1643
    %v1645 = vmul.f32 %v1614, %v80
    %v1646 = vadd.f32 %v1644, %v1645
    %v1647 = vmul.f32 %v1616, %v82
    %v1648 = vadd.f32 %v1646, %v1647
    %v1649 = vadd.f32 %v1648, %v102
    %v1650 = vtanh.pop %v1649
    %v1651 = vmul.f32 %v1610, %v84
    %v1652 = vmul.f32 %v1612, %v86
    %v1653 = vadd.f32 %v1651, %v1652
    %v1654 = vmul.f32 %v1614, %v88
    %v1655 = vadd.f32 %v1653, %v1654
    %v1656 = vmul.f32 %v1616, %v90
    %v1657 = vadd.f32 %v1655, %v1656
    %v1658 = vadd.f32 %v1657, %v104
    %v1659 = vtanh.pop %v1658
    %v1660 = vmul.f32 %v1610, %v92
    %v1661 = vmul.f32 %v1612, %v94
    %v1662 = vadd.f32 %v1660, %v1661
    %v1663 = vmul.f32 %v1614, %v96
    %v1664 = vadd.f32 %v1662, %v1663
    %v1665 = vmul.f32 %v1616, %v98
    %v1666 = vadd.f32 %v1664, %v1665
    %v1667 = vadd.f32 %v1666, %v106
    %v1668 = vtanh.pop %v1667
    %v1669 = vmul.f32 %v1629, %v1641
    %v1670 = vadd.f32 %v1610, %v1669
    %v1671 = vmul.f32 %v1629, %v1650
    %v1672 = vadd.f32 %v1612, %v1671
    %v1673 = vmul.f32 %v1629, %v1659
    %v1674 = vadd.f32 %v1614, %v1673
    %v1675 = vmul.f32 %v1629, %v1668
    %v1676 = vadd.f32 %v1616, %v1675
    %v1677 = vmul.f32 %v1627, %v1641
    %v1678 = vadd.f32 %v1610, %v1677
    %v1679 = vmul.f32 %v1627, %v1650
    %v1680 = vadd.f32 %v1612, %v1679
    %v1681 = vmul.f32 %v1627, %v1659
    %v1682 = vadd.f32 %v1614, %v1681
    %v1683 = vmul.f32 %v1627, %v1668
    %v1684 = vadd.f32 %v1616, %v1683
    %v1685 = vmul.f32 %v1678, %v68
    %v1686 = vmul.f32 %v1680, %v70
    %v1687 = vadd.f32 %v1685, %v1686
    %v1688 = vmul.f32 %v1682, %v72
    %v1689 = vadd.f32 %v1687, %v1688
    %v1690 = vmul.f32 %v1684, %v74
    %v1691 = vadd.f32 %v1689, %v1690
    %v1692 = vadd.f32 %v1691, %v100
    %v1693 = vtanh.pop %v1692
    %v1694 = vmul.f32 %v1678, %v76
    %v1695 = vmul.f32 %v1680, %v78
    %v1696 = vadd.f32 %v1694, %v1695
    %v1697 = vmul.f32 %v1682, %v80
    %v1698 = vadd.f32 %v1696, %v1697
    %v1699 = vmul.f32 %v1684, %v82
    %v1700 = vadd.f32 %v1698, %v1699
    %v1701 = vadd.f32 %v1700, %v102
    %v1702 = vtanh.pop %v1701
    %v1703 = vmul.f32 %v1678, %v84
    %v1704 = vmul.f32 %v1680, %v86
    %v1705 = vadd.f32 %v1703, %v1704
    %v1706 = vmul.f32 %v1682, %v88
    %v1707 = vadd.f32 %v1705, %v1706
    %v1708 = vmul.f32 %v1684, %v90
    %v1709 = vadd.f32 %v1707, %v1708
    %v1710 = vadd.f32 %v1709, %v104
    %v1711 = vtanh.pop %v1710
    %v1712 = vmul.f32 %v1678, %v92
    %v1713 = vmul.f32 %v1680, %v94
    %v1714 = vadd.f32 %v1712, %v1713
    %v1715 = vmul.f32 %v1682, %v96
    %v1716 = vadd.f32 %v1714, %v1715
    %v1717 = vmul.f32 %v1684, %v98
    %v1718 = vadd.f32 %v1716, %v1717
    %v1719 = vadd.f32 %v1718, %v106
    %v1720 = vtanh.pop %v1719
    %v1721 = vmul.f32 %v1631, %v1693
    %v1722 = vadd.f32 %v1670, %v1721
    %v1723 = vmul.f32 %v1631, %v1702
    %v1724 = vadd.f32 %v1672, %v1723
    %v1725 = vmul.f32 %v1631, %v1711
    %v1726 = vadd.f32 %v1674, %v1725
    %v1727 = vmul.f32 %v1631, %v1720
    %v1728 = vadd.f32 %v1676, %v1727
    %v1729 = vmul.f32 %v1627, %v1693
    %v1730 = vadd.f32 %v1610, %v1729
    %v1731 = vmul.f32 %v1627, %v1702
    %v1732 = vadd.f32 %v1612, %v1731
    %v1733 = vmul.f32 %v1627, %v1711
    %v1734 = vadd.f32 %v1614, %v1733
    %v1735 = vmul.f32 %v1627, %v1720
    %v1736 = vadd.f32 %v1616, %v1735
    %v1737 = vmul.f32 %v1730, %v68
    %v1738 = vmul.f32 %v1732, %v70
    %v1739 = vadd.f32 %v1737, %v1738
    %v1740 = vmul.f32 %v1734, %v72
    %v1741 = vadd.f32 %v1739, %v1740
    %v1742 = vmul.f32 %v1736, %v74
    %v1743 = vadd.f32 %v1741, %v1742
    %v1744 = vadd.f32 %v1743, %v100
    %v1745 = vtanh.pop %v1744
    %v1746 = vmul.f32 %v1730, %v76
    %v1747 = vmul.f32 %v1732, %v78
    %v1748 = vadd.f32 %v1746, %v1747
    %v1749 = vmul.f32 %v1734, %v80
    %v1750 = vadd.f32 %v1748, %v1749
    %v1751 = vmul.f32 %v1736, %v82
    %v1752 = vadd.f32 %v1750, %v1751
    %v1753 = vadd.f32 %v1752, %v102
    %v1754 = vtanh.pop %v1753
    %v1755 = vmul.f32 %v1730, %v84
    %v1756 = vmul.f32 %v1732, %v86
    %v1757 = vadd.f32 %v1755, %v1756
    %v1758 = vmul.f32 %v1734, %v88
    %v1759 = vadd.f32 %v1757, %v1758
    %v1760 = vmul.f32 %v1736, %v90
    %v1761 = vadd.f32 %v1759, %v1760
    %v1762 = vadd.f32 %v1761, %v104
    %v1763 = vtanh.pop %v1762
    %v1764 = vmul.f32 %v1730, %v92
    %v1765 = vmul.f32 %v1732, %v94
    %v1766 = vadd.f32 %v1764, %v1765
    %v1767 = vmul.f32 %v1734, %v96
    %v1768 = vadd.f32 %v1766, %v1767
    %v1769 = vmul.f32 %v1736, %v98
    %v1770 = vadd.f32 %v1768, %v1769
    %v1771 = vadd.f32 %v1770, %v106
    %v1772 = vtanh.pop %v1771
    %v1773 = vmul.f32 %v1631, %v1745
    %v1774 = vadd.f32 %v1722, %v1773
    %v1775 = vmul.f32 %v1631, %v1754
    %v1776 = vadd.f32 %v1724, %v1775
    %v1777 = vmul.f32 %v1631, %v1763
    %v1778 = vadd.f32 %v1726, %v1777
    %v1779 = vmul.f32 %v1631, %v1772
    %v1780 = vadd.f32 %v1728, %v1779
    %v1781 = vmul.f32 %v1632, %v1745
    %v1782 = vadd.f32 %v1610, %v1781
    %v1783 = vmul.f32 %v1632, %v1754
    %v1784 = vadd.f32 %v1612, %v1783
    %v1785 = vmul.f32 %v1632, %v1763
    %v1786 = vadd.f32 %v1614, %v1785
    %v1787 = vmul.f32 %v1632, %v1772
    %v1788 = vadd.f32 %v1616, %v1787
    %v1789 = vmul.f32 %v1782, %v68
    %v1790 = vmul.f32 %v1784, %v70
    %v1791 = vadd.f32 %v1789, %v1790
    %v1792 = vmul.f32 %v1786, %v72
    %v1793 = vadd.f32 %v1791, %v1792
    %v1794 = vmul.f32 %v1788, %v74
    %v1795 = vadd.f32 %v1793, %v1794
    %v1796 = vadd.f32 %v1795, %v100
    %v1797 = vtanh.pop %v1796
    %v1798 = vmul.f32 %v1782, %v76
    %v1799 = vmul.f32 %v1784, %v78
    %v1800 = vadd.f32 %v1798, %v1799
    %v1801 = vmul.f32 %v1786, %v80
    %v1802 = vadd.f32 %v1800, %v1801
    %v1803 = vmul.f32 %v1788, %v82
    %v1804 = vadd.f32 %v1802, %v1803
    %v1805 = vadd.f32 %v1804, %v102
    %v1806 = vtanh.pop %v1805
    %v1807 = vmul.f32 %v1782, %v84
    %v1808 = vmul.f32 %v1784, %v86
    %v1809 = vadd.f32 %v1807, %v1808
    %v1810 = vmul.f32 %v1786, %v88
    %v1811 = vadd.f32 %v1809, %v1810
    %v1812 = vmul.f32 %v1788, %v90
    %v1813 = vadd.f32 %v1811, %v1812
    %v1814 = vadd.f32 %v1813, %v104
    %v1815 = vtanh.pop %v1814
    %v1816 = vmul.f32 %v1782, %v92
    %v1817 = vmul.f32 %v1784, %v94
    %v1818 = vadd.f32 %v1816, %v1817
    %v1819 = vmul.f32 %v1786, %v96
    %v1820 = vadd.f32 %v1818, %v1819
    %v1821 = vmul.f32 %v1788, %v98
    %v1822 = vadd.f32 %v1820, %v1821
    %v1823 = vadd.f32 %v1822, %v106
    %v1824 = vtanh.pop %v1823
    %v1825 = vmul.f32 %v1629, %v1797
    %v1826 = vadd.f32 %v1774, %v1825
    %v1827 = vmul.f32 %v1629, %v1806
    %v1828 = vadd.f32 %v1776, %v1827
    %v1829 = vmul.f32 %v1629, %v1815
    %v1830 = vadd.f32 %v1778, %v1829
    %v1831 = vmul.f32 %v1629, %v1824
    %v1832 = vadd.f32 %v1780, %v1831
    %s1833 = scalar_lea.vmem [#allocation11], 112
    %1834 = vst [vmem:[%s1833] sm:$0xf] %v1826
    %s1835 = scalar_lea.vmem [#allocation11], 116
    %1836 = vst [vmem:[%s1835] sm:$0xf] %v1828
    %s1837 = scalar_lea.vmem [#allocation11], 120
    %1838 = vst [vmem:[%s1837] sm:$0xf] %v1830
    %s1839 = scalar_lea.vmem [#allocation11], 124
    %1840 = vst [vmem:[%s1839] sm:$0xf] %v1832
    // Predicated region
    $region34: #{tpu_custom_call.1} parent=1 // pred_check
      _
    $region35: #{tpu_custom_call.1} parent=1 // pred_check_branch
      %1842 = sbr.rel (0) target = $region37
    $region36: #{tpu_custom_call.1} parent=1 // pred_region
      %s1844 = ssub.s32 2048, 2048
      %1845 = vsyncadd [#allocation4], %s1844
      %s1846 = sshll.u32 [#allocation11], 4
      %s1847 = int_to_ptr.vmem [resolvable:$true] %s1846
      %1852 = dma.vmem_to_hbm [thread:$0]  %s1847, 2048, %s4, [#allocation4], 64, 64, 4
    $region37: #{tpu_custom_call.1} parent=1 // pred_fallthru
      _
    // Predicated region
    $region38: #{tpu_custom_call.1} parent=1 // pred_check
      _
    $region39: #{tpu_custom_call.1} parent=1 // pred_check_branch
      %1854 = sbr.rel (0) target = $region41
    $region40: #{tpu_custom_call.1} parent=1 // pred_region
      %1855 = dma.done [#allocation4], 2048
    $region41: #{tpu_custom_call.1} parent=1 // pred_fallthru
      _
    %1856 = vsyncpa [#allocation3], 1
    %1857 = vsyncpa [#allocation4], 1
    %1858 = vsyncpa [#allocation5], 1
    %1859 = vsyncpa [#allocation6], 1
    %1860 = vsyncpa [#allocation9], 1

</llo_original>
